<compile_context>
chip_gen: v7x
topology: tpu7x:2x2x1
jax: 0.10.0
libtpu: 0.0.40
codegen_flags: <defaults>
</compile_context>

<pallas_src>
import functools

import jax
import jax.numpy as jnp
from jax import lax
from jax.experimental import pallas as pl
from jax.experimental.pallas import tpu as pltpu


def _bgc_kernel(
    # scalar-prefetch (SMEM)
    s_idx_ref, o_idx_ref,
    # VMEM inputs (tiled or full-resident)
    obj_ref, pred_ref, soh_ref, ooh_ref, invc_ref,
    w1s_ref, w1p_ref, w1o_ref, b1_ref,
    w2_ref, b2_ref, w3_ref, b3_ref, w4_ref, b4_ref,
    # outputs
    new_obj_ref, new_p_ref,
    # scratch
    ps_ref, po_ref, gath_ref, pooled_ref,
):
    t = pl.program_id(0)
    t_tile, hidden = gath_ref.shape
    dout = new_p_ref.shape[1]

    # Once per call: project every object through W1s / W1o and zero the
    # pooled accumulator (scratch persists across grid steps).
    @pl.when(t == 0)
    def _init():
        obj = obj_ref[...]                                   # (N, Din_obj) bf16
        ps_ref[...] = jnp.dot(obj, w1s_ref[...],
                              preferred_element_type=jnp.float32)
        po_ref[...] = jnp.dot(obj, w1o_ref[...],
                              preferred_element_type=jnp.float32)
        pooled_ref[...] = jnp.zeros_like(pooled_ref)

    # Gather the projected subject/object rows for this tile of triples.
    # Pure scalar addressing + row copies; no one-hot gather matmul.
    base = t * t_tile

    def _gather(i, carry):
        s = s_idx_ref[base + i]
        o = o_idx_ref[base + i]
        gath_ref[pl.ds(i, 1), :] = (ps_ref[pl.ds(s, 1), :]
                                    + po_ref[pl.ds(o, 1), :])
        return carry

    lax.fori_loop(0, t_tile, _gather, 0, unroll=True)

    # net1 layer 1: gathered obj contribution + pred @ W1p + b1 (f32).
    h = (gath_ref[...]
         + jnp.dot(pred_ref[...], w1p_ref[...],
                   preferred_element_type=jnp.float32)
         + b1_ref[...])                                       # (tT, H) f32

    # net1 layer 2: single fused matmul, lane-dense (2H + Dout) output slab.
    tvec = (jnp.dot(h.astype(jnp.bfloat16), w2_ref[...],
                    preferred_element_type=jnp.float32)
            + b2_ref[...])                                    # (tT, 2H+Dout)
    new_s = tvec[:, :hidden]
    new_p = tvec[:, hidden:hidden + dout]
    new_o = tvec[:, hidden + dout:]
    new_p_ref[...] = new_p.astype(new_p_ref.dtype)

    # scatter_add via one-hot^T matmuls (MXU-friendly), f32 accumulation.
    contract_rows = (((0,), (0,)), ((), ()))
    pooled_ref[...] += (
        lax.dot_general(soh_ref[...], new_s.astype(jnp.bfloat16),
                        contract_rows, preferred_element_type=jnp.float32)
        + lax.dot_general(ooh_ref[...], new_o.astype(jnp.bfloat16),
                          contract_rows, preferred_element_type=jnp.float32))

    # Last tile: avg-pool scaling + net2 + store the new object vectors.
    @pl.when(t == pl.num_programs(0) - 1)
    def _finalize():
        pooled = pooled_ref[...] * invc_ref[...]              # (N, H) f32
        h2 = (jnp.dot(pooled.astype(jnp.bfloat16), w3_ref[...],
                      preferred_element_type=jnp.float32) + b3_ref[...])
        new_obj = (jnp.dot(h2.astype(jnp.bfloat16), w4_ref[...],
                           preferred_element_type=jnp.float32) + b4_ref[...])
        new_obj_ref[...] = new_obj.astype(new_obj_ref.dtype)


@functools.partial(jax.jit, static_argnames=("pooling", "t_tile"))
def batch_graph_triple_conv(obj_vecs, pred_vecs, edges, params,
                            pooling="avg", t_tile=32):
    """One BatchGraphTripleConv forward as a single gridded pallas_call."""
    assert pooling in ("sum", "avg")
    n_obj, din_obj = obj_vecs.shape
    n_tri, din_pred = pred_vecs.shape
    hidden = params["w1p"].shape[1]
    dout = params["w4"].shape[1]
    assert n_tri % t_tile == 0, "test shapes keep T divisible by the T-tile"

    # NOTE: the PyTorch source gathers cur_o_vecs with s_idx (apparent typo);
    # we keep the canonical GraphTripleConv semantics (o_idx), matching the
    # pure-JAX reference below.
    s_idx = edges[:, 0].astype(jnp.int32)
    o_idx = edges[:, -1].astype(jnp.int32)

    # One-hot matrices only for the MXU-friendly scatter_add (exact in bf16).
    s_oh = jax.nn.one_hot(s_idx, n_obj, dtype=jnp.bfloat16)
    o_oh = jax.nn.one_hot(o_idx, n_obj, dtype=jnp.bfloat16)

    # avg pooling: precompute 1/clamp(counts, 1) in the wrapper glue.
    if pooling == "avg":
        counts = (jnp.zeros((n_obj,), jnp.float32)
                  .at[s_idx].add(1.0).at[o_idx].add(1.0))
        inv_counts = 1.0 / jnp.maximum(counts, 1.0)
    else:
        inv_counts = jnp.ones((n_obj,), jnp.float32)
    inv_counts = inv_counts[:, None]                          # (N, 1) f32

    bf16 = jnp.bfloat16
    obj_bf = obj_vecs.astype(bf16)
    pred_bf = pred_vecs.astype(bf16)
    w1s = params["w1s"].astype(bf16)
    w1p = params["w1p"].astype(bf16)
    w1o = params["w1o"].astype(bf16)
    w2 = params["w2"].astype(bf16)
    w3 = params["w3"].astype(bf16)
    w4 = params["w4"].astype(bf16)
    b1, b2, b3, b4 = params["b1"], params["b2"], params["b3"], params["b4"]

    grid = (n_tri // t_tile,)
    full = lambda shape: pl.BlockSpec(shape, lambda t, *_: (0, 0))
    tiled = lambda shape: pl.BlockSpec(shape, lambda t, *_: (t, 0))

    in_specs = [
        full((n_obj, din_obj)),             # obj (resident)
        tiled((t_tile, din_pred)),          # pred tile
        tiled((t_tile, n_obj)),             # subject one-hot tile
        tiled((t_tile, n_obj)),             # object one-hot tile
        full((n_obj, 1)),                   # 1/counts
        full((din_obj, hidden)),            # w1s
        full((din_pred, hidden)),           # w1p
        full((din_obj, hidden)),            # w1o
        full((1, hidden)),                  # b1
        full((hidden, 2 * hidden + dout)),  # w2 (fused net1 layer 2)
        full((1, 2 * hidden + dout)),       # b2
        full((hidden, hidden)),             # w3
        full((1, hidden)),                  # b3
        full((hidden, dout)),               # w4
        full((1, dout)),                    # b4
    ]
    out_specs = (
        full((n_obj, dout)),                # new_obj (resident, stored on last tile)
        tiled((t_tile, dout)),              # new_p tile
    )
    scratch_shapes = [
        pltpu.VMEM((n_obj, hidden), jnp.float32),     # obj @ W1s
        pltpu.VMEM((n_obj, hidden), jnp.float32),     # obj @ W1o
        pltpu.VMEM((t_tile, hidden), jnp.float32),    # gathered rows
        pltpu.VMEM((n_obj, hidden), jnp.float32),     # pooled accumulator
    ]

    # VMEM budget (double-buffering headroom, clipped below v7x physical) and
    # an advisory cost estimate for XLA's scheduler.
    w_bytes = 2 * (2 * din_obj * hidden + din_pred * hidden
                   + hidden * (2 * hidden + dout) + hidden * hidden
                   + hidden * dout)
    b_bytes = 4 * (4 * hidden + 2 * dout)
    tile_bytes = 2 * (t_tile * din_pred + 2 * t_tile * n_obj)
    out_bytes = 4 * (n_obj * dout + t_tile * dout)
    scratch_bytes = 4 * hidden * (3 * n_obj + t_tile)
    resident_bytes = 2 * n_obj * din_obj + 4 * n_obj
    est = (w_bytes + b_bytes + resident_bytes + scratch_bytes
           + 2 * (tile_bytes + out_bytes))
    vmem_limit = int(min(48 * 2 ** 20, max(4 * 2 ** 20, 2 * est)))

    flops = (4 * n_obj * din_obj * hidden              # obj @ W1s, obj @ W1o
             + 2 * n_tri * din_pred * hidden           # pred @ W1p
             + 2 * n_tri * hidden * (2 * hidden + dout)
             + 4 * n_tri * n_obj * hidden              # scatter one-hot matmuls
             + 2 * n_obj * hidden * (hidden + dout))   # net2
    bytes_accessed = (2 * n_obj * din_obj + 2 * n_tri * din_pred
                      + 4 * n_tri * n_obj + 4 * n_obj
                      + w_bytes + b_bytes
                      + 4 * n_obj * dout + 4 * n_tri * dout)

    kernel = pl.pallas_call(
        _bgc_kernel,
        out_shape=(
            jax.ShapeDtypeStruct((n_obj, dout), jnp.float32),
            jax.ShapeDtypeStruct((n_tri, dout), jnp.float32),
        ),
        grid_spec=pltpu.PrefetchScalarGridSpec(
            num_scalar_prefetch=2,
            grid=grid,
            in_specs=in_specs,
            out_specs=out_specs,
            scratch_shapes=scratch_shapes,
        ),
        compiler_params=pltpu.CompilerParams(
            dimension_semantics=("arbitrary",),   # T carries the pooled accumulator
            vmem_limit_bytes=vmem_limit,
        ),
        cost_estimate=pl.CostEstimate(flops=flops, transcendentals=0,
                                      bytes_accessed=bytes_accessed),
    )
    return kernel(s_idx, o_idx,
                  obj_bf, pred_bf, s_oh, o_oh, inv_counts,
                  w1s, w1p, w1o, b1, w2, b2, w3, b3, w4, b4)


def graph_triple_conv_net(obj_vecs, pred_vecs, edges, layer_params,
                          pooling="avg", t_tile=32):
    """Mirrors GraphTripleConvNet.forward: every gconv layer is applied to the
    ORIGINAL inputs (the PyTorch loop never feeds outputs forward) and the
    last layer's output is returned."""
    new_obj = new_p = None
    for params in layer_params:
        new_obj, new_p = batch_graph_triple_conv(
            obj_vecs, pred_vecs, edges, params, pooling=pooling, t_tile=t_tile)
    return new_obj, new_p


def init_params(key, din_obj, din_pred, hidden, dout):
    """Deterministic synthetic init matching the nn.Linear shapes."""
    ks = jax.random.split(key, 4)

    def lin(k, fan_in, fan_out):
        scale = 1.0 / (fan_in ** 0.5)
        kw, kb = jax.random.split(k)
        w = jax.random.uniform(kw, (fan_in, fan_out), jnp.float32, -scale, scale)
        b = jax.random.uniform(kb, (1, fan_out), jnp.float32, -scale, scale)
        return w, b

    w1, b1 = lin(ks[0], 2 * din_obj + din_pred, hidden)        # net1[0]
    w2, b2 = lin(ks[1], hidden, 2 * hidden + dout)             # net1[1] (fused)
    w3, b3 = lin(ks[2], hidden, hidden)                        # net2[0]
    w4, b4 = lin(ks[3], hidden, dout)                          # net2[1]

    # split w1 along the input dim to match torch.cat([s, p, o], dim=-1)
    w1s = w1[:din_obj]
    w1p = w1[din_obj:din_obj + din_pred]
    w1o = w1[din_obj + din_pred:]
    return dict(w1s=w1s, w1p=w1p, w1o=w1o, b1=b1,
                w2=w2, b2=b2, w3=w3, b3=b3, w4=w4, b4=b4)


def reference_layer(obj_vecs, pred_vecs, edges, p, pooling="avg"):
    """Pure-JAX (f32) reference mirroring one gconv forward."""
    s_idx, o_idx = edges[:, 0], edges[:, -1]
    h = (obj_vecs[s_idx] @ p["w1s"] + pred_vecs @ p["w1p"]
         + obj_vecs[o_idx] @ p["w1o"] + p["b1"])
    tvec = h @ p["w2"] + p["b2"]
    hidden = p["w1p"].shape[1]
    dout = p["w4"].shape[1]
    new_s = tvec[:, :hidden]
    new_p = tvec[:, hidden:hidden + dout]
    new_o = tvec[:, hidden + dout:]
    n_obj = obj_vecs.shape[0]
    pooled = (jnp.zeros((n_obj, hidden), jnp.float32)
              .at[s_idx].add(new_s).at[o_idx].add(new_o))
    if pooling == "avg":
        counts = (jnp.zeros((n_obj,), jnp.float32)
                  .at[s_idx].add(1.0).at[o_idx].add(1.0))
        pooled = pooled / jnp.maximum(counts, 1.0)[:, None]
    h2 = pooled @ p["w3"] + p["b3"]
    new_obj = h2 @ p["w4"] + p["b4"]
    return new_obj, new_p


def reference_net(obj_vecs, pred_vecs, edges, layer_params, pooling="avg"):
    new_obj = new_p = None
    for p in layer_params:
        new_obj, new_p = reference_layer(obj_vecs, pred_vecs, edges, p, pooling)
    return new_obj, new_p


if __name__ == "__main__":
    # Small shapes, lane-dense feature dims (multiples of 128).
    N, T = 32, 128                       # objects, triples
    DIN_OBJ = DIN_PRED = 128
    HIDDEN = 128
    DOUT = 128
    NUM_LAYERS = 2
    T_TILE = 32

    key = jax.random.PRNGKey(0)
    k_obj, k_pred, k_edge, k_par = jax.random.split(key, 4)
    obj_vecs = jax.random.normal(k_obj, (N, DIN_OBJ), jnp.float32)
    pred_vecs = jax.random.normal(k_pred, (T, DIN_PRED), jnp.float32)
    edges = jax.random.randint(k_edge, (T, 2), 0, N, jnp.int32)
    layer_params = [init_params(k, DIN_OBJ, DIN_PRED, HIDDEN, DOUT)
                    for k in jax.random.split(k_par, NUM_LAYERS)]

    new_obj, new_p = graph_triple_conv_net(obj_vecs, pred_vecs, edges,
                                           layer_params, pooling="avg",
                                           t_tile=T_TILE)
    new_obj = jax.block_until_ready(new_obj)
    new_p = jax.block_until_ready(new_p)

    ref_obj, ref_p = reference_net(obj_vecs, pred_vecs, edges, layer_params,
                                   pooling="avg")

    assert new_obj.shape == (N, DOUT) and new_p.shape == (T, DOUT)
    assert jnp.allclose(new_obj, ref_obj, atol=5e-2, rtol=5e-2)
    assert jnp.allclose(new_p, ref_p, atol=5e-2, rtol=5e-2)

    print("KERNEL_OK")
</pallas_src>

<mosaic_0001>
module attributes {stable_mosaic.version = 11 : i64} {
  func.func private @main(%arg0: i32) attributes {dimension_semantics = [#tpu.dimension_semantics<core_parallel>], iteration_bounds = array<i64: 2>, tpu.core_type = #tpu.core_type<sc_scalar_subcore>, window_params = []} {
    return
  }
}

module attributes {stable_mosaic.version = 11 : i64} {
  func.func private @main(%arg0: i32) attributes {dimension_semantics = [#tpu.dimension_semantics<core_parallel>], iteration_bounds = array<i64: 2>, tpu.core_type = #tpu.core_type<sc_scalar_subcore>, window_params = []} {
    return
  }
}

module attributes {stable_mosaic.version = 11 : i64} {
  func.func @_bgc_kernel(%arg0: i32, %arg1: memref<128xi32, #tpu.memory_space<smem>>, %arg2: memref<128xi32, #tpu.memory_space<smem>>, %arg3: memref<32x128xbf16, #tpu.memory_space<vmem>>, %arg4: memref<32x128xbf16, #tpu.memory_space<vmem>>, %arg5: memref<32x32xbf16, #tpu.memory_space<vmem>>, %arg6: memref<32x32xbf16, #tpu.memory_space<vmem>>, %arg7: memref<32x1xf32, #tpu.memory_space<vmem>>, %arg8: memref<128x128xbf16, #tpu.memory_space<vmem>>, %arg9: memref<128x128xbf16, #tpu.memory_space<vmem>>, %arg10: memref<128x128xbf16, #tpu.memory_space<vmem>>, %arg11: memref<1x128xf32, #tpu.memory_space<vmem>>, %arg12: memref<128x384xbf16, #tpu.memory_space<vmem>>, %arg13: memref<1x384xf32, #tpu.memory_space<vmem>>, %arg14: memref<128x128xbf16, #tpu.memory_space<vmem>>, %arg15: memref<1x128xf32, #tpu.memory_space<vmem>>, %arg16: memref<128x128xbf16, #tpu.memory_space<vmem>>, %arg17: memref<1x128xf32, #tpu.memory_space<vmem>>, %arg18: memref<32x128xf32, #tpu.memory_space<vmem>>, %arg19: memref<32x128xf32, #tpu.memory_space<vmem>>, %arg20: memref<32x128xf32, #tpu.memory_space<vmem>>, %arg21: memref<32x128xf32, #tpu.memory_space<vmem>>, %arg22: memref<32x128xf32, #tpu.memory_space<vmem>>, %arg23: memref<32x128xf32, #tpu.memory_space<vmem>>) attributes {dimension_semantics = [#tpu.dimension_semantics<arbitrary>], iteration_bounds = array<i64: 4>, scalar_prefetch = 2 : i64, scratch_operands = 4 : i64, tpu.core_type = #tpu.core_type<tc>, window_params = [{pipeline_mode = #tpu.pipeline_mode<synchronous>, transform_indices = @transform_0, window_bounds = array<i64: 32, 128>}, {transform_indices = @transform_1, window_bounds = array<i64: 32, 128>}, {transform_indices = @transform_2, window_bounds = array<i64: 32, 32>}, {transform_indices = @transform_3, window_bounds = array<i64: 32, 32>}, {pipeline_mode = #tpu.pipeline_mode<synchronous>, transform_indices = @transform_4, window_bounds = array<i64: 32, 1>}, {pipeline_mode = #tpu.pipeline_mode<synchronous>, transform_indices = @transform_5, window_bounds = array<i64: 128, 128>}, {pipeline_mode = #tpu.pipeline_mode<synchronous>, transform_indices = @transform_6, window_bounds = array<i64: 128, 128>}, {pipeline_mode = #tpu.pipeline_mode<synchronous>, transform_indices = @transform_7, window_bounds = array<i64: 128, 128>}, {pipeline_mode = #tpu.pipeline_mode<synchronous>, transform_indices = @transform_8, window_bounds = array<i64: 1, 128>}, {pipeline_mode = #tpu.pipeline_mode<synchronous>, transform_indices = @transform_9, window_bounds = array<i64: 128, 384>}, {pipeline_mode = #tpu.pipeline_mode<synchronous>, transform_indices = @transform_10, window_bounds = array<i64: 1, 384>}, {pipeline_mode = #tpu.pipeline_mode<synchronous>, transform_indices = @transform_11, window_bounds = array<i64: 128, 128>}, {pipeline_mode = #tpu.pipeline_mode<synchronous>, transform_indices = @transform_12, window_bounds = array<i64: 1, 128>}, {pipeline_mode = #tpu.pipeline_mode<synchronous>, transform_indices = @transform_13, window_bounds = array<i64: 128, 128>}, {pipeline_mode = #tpu.pipeline_mode<synchronous>, transform_indices = @transform_14, window_bounds = array<i64: 1, 128>}, {pipeline_mode = #tpu.pipeline_mode<synchronous>, transform_indices = @transform_15, window_bounds = array<i64: 32, 128>}, {transform_indices = @transform_16, window_bounds = array<i64: 32, 128>}]} {
    %c0_i32 = arith.constant 0 : i32
    %0 = arith.cmpi eq, %arg0, %c0_i32 : i32
    %1 = arith.extui %0 : i1 to i32
    %c0_i32_0 = arith.constant 0 : i32
    %2 = arith.cmpi ne, %1, %c0_i32_0 : i32
    scf.if %2 {
      %c0_125 = arith.constant 0 : index
      %c0_126 = arith.constant 0 : index
      %451 = vector.load %arg3[%c0_125, %c0_126] : memref<32x128xbf16, #tpu.memory_space<vmem>>, vector<32x128xbf16>
      %c0_127 = arith.constant 0 : index
      %c0_128 = arith.constant 0 : index
      %452 = vector.load %arg8[%c0_127, %c0_128] : memref<128x128xbf16, #tpu.memory_space<vmem>>, vector<128x128xbf16>
      %cst_129 = arith.constant dense<0.000000e+00> : vector<32x128xf32>
      %453 = tpu.matmul %451, %452, %cst_129 {dimension_numbers = #tpu.dot_dimension_numbers<[1], [0], [0], [1], [0, 0, 1, 1], [], []>} : vector<32x128xbf16>, vector<128x128xbf16>, vector<32x128xf32> -> vector<32x128xf32>
      %c0_130 = arith.constant 0 : index
      %c0_131 = arith.constant 0 : index
      %454 = vector.load %arg20[%c0_130, %c0_131] : memref<32x128xf32, #tpu.memory_space<vmem>>, vector<32x128xf32>
      tpu.vector_store %arg20[%c0_130, %c0_131], %453 {strides = array<i32>} : memref<32x128xf32, #tpu.memory_space<vmem>>, vector<32x128xf32>,
      %c0_132 = arith.constant 0 : index
      %c0_133 = arith.constant 0 : index
      %455 = vector.load %arg10[%c0_132, %c0_133] : memref<128x128xbf16, #tpu.memory_space<vmem>>, vector<128x128xbf16>
      %cst_134 = arith.constant dense<0.000000e+00> : vector<32x128xf32>
      %456 = tpu.matmul %451, %455, %cst_134 {dimension_numbers = #tpu.dot_dimension_numbers<[1], [0], [0], [1], [0, 0, 1, 1], [], []>} : vector<32x128xbf16>, vector<128x128xbf16>, vector<32x128xf32> -> vector<32x128xf32>
      %c0_135 = arith.constant 0 : index
      %c0_136 = arith.constant 0 : index
      %457 = vector.load %arg21[%c0_135, %c0_136] : memref<32x128xf32, #tpu.memory_space<vmem>>, vector<32x128xf32>
      tpu.vector_store %arg21[%c0_135, %c0_136], %456 {strides = array<i32>} : memref<32x128xf32, #tpu.memory_space<vmem>>, vector<32x128xf32>,
      %cst_137 = arith.constant 0.000000e+00 : f32
      %458 = vector.broadcast %cst_137 : f32 to vector<32x128xf32>
      %c0_138 = arith.constant 0 : index
      %c0_139 = arith.constant 0 : index
      %459 = vector.load %arg23[%c0_138, %c0_139] : memref<32x128xf32, #tpu.memory_space<vmem>>, vector<32x128xf32>
      tpu.vector_store %arg23[%c0_138, %c0_139], %458 {strides = array<i32>} : memref<32x128xf32, #tpu.memory_space<vmem>>, vector<32x128xf32>,
    } else {
    }
    %c32_i32 = arith.constant 32 : i32
    %3 = arith.muli %arg0, %c32_i32 : i32
    %c0_i32_1 = arith.constant 0 : i32
    %4 = arith.addi %3, %c0_i32_1 : i32
    %5 = arith.index_cast %4 : i32 to index
    %6 = memref.load %arg1[%5] : memref<128xi32, #tpu.memory_space<smem>>
    %7 = arith.addi %3, %c0_i32_1 : i32
    %8 = arith.index_cast %7 : i32 to index
    %9 = memref.load %arg2[%8] : memref<128xi32, #tpu.memory_space<smem>>
    %10 = arith.index_cast %6 : i32 to index
    %c0 = arith.constant 0 : index
    %11 = vector.load %arg20[%10, %c0] : memref<32x128xf32, #tpu.memory_space<vmem>>, vector<1x128xf32>
    %12 = arith.index_cast %9 : i32 to index
    %c0_2 = arith.constant 0 : index
    %13 = vector.load %arg21[%12, %c0_2] : memref<32x128xf32, #tpu.memory_space<vmem>>, vector<1x128xf32>
    %14 = arith.addf %11, %13 : vector<1x128xf32>
    %15 = arith.index_cast %c0_i32_1 : i32 to index
    %c0_3 = arith.constant 0 : index
    %16 = vector.load %arg22[%15, %c0_3] : memref<32x128xf32, #tpu.memory_space<vmem>>, vector<1x128xf32>
    tpu.vector_store %arg22[%15, %c0_3], %14 {strides = array<i32>} : memref<32x128xf32, #tpu.memory_space<vmem>>, vector<1x128xf32>,
    %c1_i32 = arith.constant 1 : i32
    %17 = arith.addi %3, %c1_i32 : i32
    %18 = arith.index_cast %17 : i32 to index
    %19 = memref.load %arg1[%18] : memref<128xi32, #tpu.memory_space<smem>>
    %20 = arith.addi %3, %c1_i32 : i32
    %21 = arith.index_cast %20 : i32 to index
    %22 = memref.load %arg2[%21] : memref<128xi32, #tpu.memory_space<smem>>
    %23 = arith.index_cast %19 : i32 to index
    %c0_4 = arith.constant 0 : index
    %24 = vector.load %arg20[%23, %c0_4] : memref<32x128xf32, #tpu.memory_space<vmem>>, vector<1x128xf32>
    %25 = arith.index_cast %22 : i32 to index
    %c0_5 = arith.constant 0 : index
    %26 = vector.load %arg21[%25, %c0_5] : memref<32x128xf32, #tpu.memory_space<vmem>>, vector<1x128xf32>
    %27 = arith.addf %24, %26 : vector<1x128xf32>
    %28 = arith.index_cast %c1_i32 : i32 to index
    %c0_6 = arith.constant 0 : index
    %29 = vector.load %arg22[%28, %c0_6] : memref<32x128xf32, #tpu.memory_space<vmem>>, vector<1x128xf32>
    tpu.vector_store %arg22[%28, %c0_6], %27 {strides = array<i32>} : memref<32x128xf32, #tpu.memory_space<vmem>>, vector<1x128xf32>,
    %c2_i32 = arith.constant 2 : i32
    %30 = arith.addi %3, %c2_i32 : i32
    %31 = arith.index_cast %30 : i32 to index
    %32 = memref.load %arg1[%31] : memref<128xi32, #tpu.memory_space<smem>>
    %33 = arith.addi %3, %c2_i32 : i32
    %34 = arith.index_cast %33 : i32 to index
    %35 = memref.load %arg2[%34] : memref<128xi32, #tpu.memory_space<smem>>
    %36 = arith.index_cast %32 : i32 to index
    %c0_7 = arith.constant 0 : index
    %37 = vector.load %arg20[%36, %c0_7] : memref<32x128xf32, #tpu.memory_space<vmem>>, vector<1x128xf32>
    %38 = arith.index_cast %35 : i32 to index
    %c0_8 = arith.constant 0 : index
    %39 = vector.load %arg21[%38, %c0_8] : memref<32x128xf32, #tpu.memory_space<vmem>>, vector<1x128xf32>
    %40 = arith.addf %37, %39 : vector<1x128xf32>
    %41 = arith.index_cast %c2_i32 : i32 to index
    %c0_9 = arith.constant 0 : index
    %42 = vector.load %arg22[%41, %c0_9] : memref<32x128xf32, #tpu.memory_space<vmem>>, vector<1x128xf32>
    tpu.vector_store %arg22[%41, %c0_9], %40 {strides = array<i32>} : memref<32x128xf32, #tpu.memory_space<vmem>>, vector<1x128xf32>,
    %c3_i32 = arith.constant 3 : i32
    %43 = arith.addi %3, %c3_i32 : i32
    %44 = arith.index_cast %43 : i32 to index
    %45 = memref.load %arg1[%44] : memref<128xi32, #tpu.memory_space<smem>>
    %46 = arith.addi %3, %c3_i32 : i32
    %47 = arith.index_cast %46 : i32 to index
    %48 = memref.load %arg2[%47] : memref<128xi32, #tpu.memory_space<smem>>
    %49 = arith.index_cast %45 : i32 to index
    %c0_10 = arith.constant 0 : index
    %50 = vector.load %arg20[%49, %c0_10] : memref<32x128xf32, #tpu.memory_space<vmem>>, vector<1x128xf32>
    %51 = arith.index_cast %48 : i32 to index
    %c0_11 = arith.constant 0 : index
    %52 = vector.load %arg21[%51, %c0_11] : memref<32x128xf32, #tpu.memory_space<vmem>>, vector<1x128xf32>
    %53 = arith.addf %50, %52 : vector<1x128xf32>
    %54 = arith.index_cast %c3_i32 : i32 to index
    %c0_12 = arith.constant 0 : index
    %55 = vector.load %arg22[%54, %c0_12] : memref<32x128xf32, #tpu.memory_space<vmem>>, vector<1x128xf32>
    tpu.vector_store %arg22[%54, %c0_12], %53 {strides = array<i32>} : memref<32x128xf32, #tpu.memory_space<vmem>>, vector<1x128xf32>,
    %c4_i32 = arith.constant 4 : i32
    %56 = arith.addi %3, %c4_i32 : i32
    %57 = arith.index_cast %56 : i32 to index
    %58 = memref.load %arg1[%57] : memref<128xi32, #tpu.memory_space<smem>>
    %59 = arith.addi %3, %c4_i32 : i32
    %60 = arith.index_cast %59 : i32 to index
    %61 = memref.load %arg2[%60] : memref<128xi32, #tpu.memory_space<smem>>
    %62 = arith.index_cast %58 : i32 to index
    %c0_13 = arith.constant 0 : index
    %63 = vector.load %arg20[%62, %c0_13] : memref<32x128xf32, #tpu.memory_space<vmem>>, vector<1x128xf32>
    %64 = arith.index_cast %61 : i32 to index
    %c0_14 = arith.constant 0 : index
    %65 = vector.load %arg21[%64, %c0_14] : memref<32x128xf32, #tpu.memory_space<vmem>>, vector<1x128xf32>
    %66 = arith.addf %63, %65 : vector<1x128xf32>
    %67 = arith.index_cast %c4_i32 : i32 to index
    %c0_15 = arith.constant 0 : index
    %68 = vector.load %arg22[%67, %c0_15] : memref<32x128xf32, #tpu.memory_space<vmem>>, vector<1x128xf32>
    tpu.vector_store %arg22[%67, %c0_15], %66 {strides = array<i32>} : memref<32x128xf32, #tpu.memory_space<vmem>>, vector<1x128xf32>,
    %c5_i32 = arith.constant 5 : i32
    %69 = arith.addi %3, %c5_i32 : i32
    %70 = arith.index_cast %69 : i32 to index
    %71 = memref.load %arg1[%70] : memref<128xi32, #tpu.memory_space<smem>>
    %72 = arith.addi %3, %c5_i32 : i32
    %73 = arith.index_cast %72 : i32 to index
    %74 = memref.load %arg2[%73] : memref<128xi32, #tpu.memory_space<smem>>
    %75 = arith.index_cast %71 : i32 to index
    %c0_16 = arith.constant 0 : index
    %76 = vector.load %arg20[%75, %c0_16] : memref<32x128xf32, #tpu.memory_space<vmem>>, vector<1x128xf32>
    %77 = arith.index_cast %74 : i32 to index
    %c0_17 = arith.constant 0 : index
    %78 = vector.load %arg21[%77, %c0_17] : memref<32x128xf32, #tpu.memory_space<vmem>>, vector<1x128xf32>
    %79 = arith.addf %76, %78 : vector<1x128xf32>
    %80 = arith.index_cast %c5_i32 : i32 to index
    %c0_18 = arith.constant 0 : index
    %81 = vector.load %arg22[%80, %c0_18] : memref<32x128xf32, #tpu.memory_space<vmem>>, vector<1x128xf32>
    tpu.vector_store %arg22[%80, %c0_18], %79 {strides = array<i32>} : memref<32x128xf32, #tpu.memory_space<vmem>>, vector<1x128xf32>,
    %c6_i32 = arith.constant 6 : i32
    %82 = arith.addi %3, %c6_i32 : i32
    %83 = arith.index_cast %82 : i32 to index
    %84 = memref.load %arg1[%83] : memref<128xi32, #tpu.memory_space<smem>>
    %85 = arith.addi %3, %c6_i32 : i32
    %86 = arith.index_cast %85 : i32 to index
    %87 = memref.load %arg2[%86] : memref<128xi32, #tpu.memory_space<smem>>
    %88 = arith.index_cast %84 : i32 to index
    %c0_19 = arith.constant 0 : index
    %89 = vector.load %arg20[%88, %c0_19] : memref<32x128xf32, #tpu.memory_space<vmem>>, vector<1x128xf32>
    %90 = arith.index_cast %87 : i32 to index
    %c0_20 = arith.constant 0 : index
    %91 = vector.load %arg21[%90, %c0_20] : memref<32x128xf32, #tpu.memory_space<vmem>>, vector<1x128xf32>
    %92 = arith.addf %89, %91 : vector<1x128xf32>
    %93 = arith.index_cast %c6_i32 : i32 to index
    %c0_21 = arith.constant 0 : index
    %94 = vector.load %arg22[%93, %c0_21] : memref<32x128xf32, #tpu.memory_space<vmem>>, vector<1x128xf32>
    tpu.vector_store %arg22[%93, %c0_21], %92 {strides = array<i32>} : memref<32x128xf32, #tpu.memory_space<vmem>>, vector<1x128xf32>,
    %c7_i32 = arith.constant 7 : i32
    %95 = arith.addi %3, %c7_i32 : i32
    %96 = arith.index_cast %95 : i32 to index
    %97 = memref.load %arg1[%96] : memref<128xi32, #tpu.memory_space<smem>>
    %98 = arith.addi %3, %c7_i32 : i32
    %99 = arith.index_cast %98 : i32 to index
    %100 = memref.load %arg2[%99] : memref<128xi32, #tpu.memory_space<smem>>
    %101 = arith.index_cast %97 : i32 to index
    %c0_22 = arith.constant 0 : index
    %102 = vector.load %arg20[%101, %c0_22] : memref<32x128xf32, #tpu.memory_space<vmem>>, vector<1x128xf32>
    %103 = arith.index_cast %100 : i32 to index
    %c0_23 = arith.constant 0 : index
    %104 = vector.load %arg21[%103, %c0_23] : memref<32x128xf32, #tpu.memory_space<vmem>>, vector<1x128xf32>
    %105 = arith.addf %102, %104 : vector<1x128xf32>
    %106 = arith.index_cast %c7_i32 : i32 to index
    %c0_24 = arith.constant 0 : index
    %107 = vector.load %arg22[%106, %c0_24] : memref<32x128xf32, #tpu.memory_space<vmem>>, vector<1x128xf32>
    tpu.vector_store %arg22[%106, %c0_24], %105 {strides = array<i32>} : memref<32x128xf32, #tpu.memory_space<vmem>>, vector<1x128xf32>,
    %c8_i32 = arith.constant 8 : i32
    %108 = arith.addi %3, %c8_i32 : i32
    %109 = arith.index_cast %108 : i32 to index
    %110 = memref.load %arg1[%109] : memref<128xi32, #tpu.memory_space<smem>>
    %111 = arith.addi %3, %c8_i32 : i32
    %112 = arith.index_cast %111 : i32 to index
    %113 = memref.load %arg2[%112] : memref<128xi32, #tpu.memory_space<smem>>
    %114 = arith.index_cast %110 : i32 to index
    %c0_25 = arith.constant 0 : index
    %115 = vector.load %arg20[%114, %c0_25] : memref<32x128xf32, #tpu.memory_space<vmem>>, vector<1x128xf32>
    %116 = arith.index_cast %113 : i32 to index
    %c0_26 = arith.constant 0 : index
    %117 = vector.load %arg21[%116, %c0_26] : memref<32x128xf32, #tpu.memory_space<vmem>>, vector<1x128xf32>
    %118 = arith.addf %115, %117 : vector<1x128xf32>
    %119 = arith.index_cast %c8_i32 : i32 to index
    %c0_27 = arith.constant 0 : index
    %120 = vector.load %arg22[%119, %c0_27] : memref<32x128xf32, #tpu.memory_space<vmem>>, vector<1x128xf32>
    tpu.vector_store %arg22[%119, %c0_27], %118 {strides = array<i32>} : memref<32x128xf32, #tpu.memory_space<vmem>>, vector<1x128xf32>,
    %c9_i32 = arith.constant 9 : i32
    %121 = arith.addi %3, %c9_i32 : i32
    %122 = arith.index_cast %121 : i32 to index
    %123 = memref.load %arg1[%122] : memref<128xi32, #tpu.memory_space<smem>>
    %124 = arith.addi %3, %c9_i32 : i32
    %125 = arith.index_cast %124 : i32 to index
    %126 = memref.load %arg2[%125] : memref<128xi32, #tpu.memory_space<smem>>
    %127 = arith.index_cast %123 : i32 to index
    %c0_28 = arith.constant 0 : index
    %128 = vector.load %arg20[%127, %c0_28] : memref<32x128xf32, #tpu.memory_space<vmem>>, vector<1x128xf32>
    %129 = arith.index_cast %126 : i32 to index
    %c0_29 = arith.constant 0 : index
    %130 = vector.load %arg21[%129, %c0_29] : memref<32x128xf32, #tpu.memory_space<vmem>>, vector<1x128xf32>
    %131 = arith.addf %128, %130 : vector<1x128xf32>
    %132 = arith.index_cast %c9_i32 : i32 to index
    %c0_30 = arith.constant 0 : index
    %133 = vector.load %arg22[%132, %c0_30] : memref<32x128xf32, #tpu.memory_space<vmem>>, vector<1x128xf32>
    tpu.vector_store %arg22[%132, %c0_30], %131 {strides = array<i32>} : memref<32x128xf32, #tpu.memory_space<vmem>>, vector<1x128xf32>,
    %c10_i32 = arith.constant 10 : i32
    %134 = arith.addi %3, %c10_i32 : i32
    %135 = arith.index_cast %134 : i32 to index
    %136 = memref.load %arg1[%135] : memref<128xi32, #tpu.memory_space<smem>>
    %137 = arith.addi %3, %c10_i32 : i32
    %138 = arith.index_cast %137 : i32 to index
    %139 = memref.load %arg2[%138] : memref<128xi32, #tpu.memory_space<smem>>
    %140 = arith.index_cast %136 : i32 to index
    %c0_31 = arith.constant 0 : index
    %141 = vector.load %arg20[%140, %c0_31] : memref<32x128xf32, #tpu.memory_space<vmem>>, vector<1x128xf32>
    %142 = arith.index_cast %139 : i32 to index
    %c0_32 = arith.constant 0 : index
    %143 = vector.load %arg21[%142, %c0_32] : memref<32x128xf32, #tpu.memory_space<vmem>>, vector<1x128xf32>
    %144 = arith.addf %141, %143 : vector<1x128xf32>
    %145 = arith.index_cast %c10_i32 : i32 to index
    %c0_33 = arith.constant 0 : index
    %146 = vector.load %arg22[%145, %c0_33] : memref<32x128xf32, #tpu.memory_space<vmem>>, vector<1x128xf32>
    tpu.vector_store %arg22[%145, %c0_33], %144 {strides = array<i32>} : memref<32x128xf32, #tpu.memory_space<vmem>>, vector<1x128xf32>,
    %c11_i32 = arith.constant 11 : i32
    %147 = arith.addi %3, %c11_i32 : i32
    %148 = arith.index_cast %147 : i32 to index
    %149 = memref.load %arg1[%148] : memref<128xi32, #tpu.memory_space<smem>>
    %150 = arith.addi %3, %c11_i32 : i32
    %151 = arith.index_cast %150 : i32 to index
    %152 = memref.load %arg2[%151] : memref<128xi32, #tpu.memory_space<smem>>
    %153 = arith.index_cast %149 : i32 to index
    %c0_34 = arith.constant 0 : index
    %154 = vector.load %arg20[%153, %c0_34] : memref<32x128xf32, #tpu.memory_space<vmem>>, vector<1x128xf32>
    %155 = arith.index_cast %152 : i32 to index
    %c0_35 = arith.constant 0 : index
    %156 = vector.load %arg21[%155, %c0_35] : memref<32x128xf32, #tpu.memory_space<vmem>>, vector<1x128xf32>
    %157 = arith.addf %154, %156 : vector<1x128xf32>
    %158 = arith.index_cast %c11_i32 : i32 to index
    %c0_36 = arith.constant 0 : index
    %159 = vector.load %arg22[%158, %c0_36] : memref<32x128xf32, #tpu.memory_space<vmem>>, vector<1x128xf32>
    tpu.vector_store %arg22[%158, %c0_36], %157 {strides = array<i32>} : memref<32x128xf32, #tpu.memory_space<vmem>>, vector<1x128xf32>,
    %c12_i32 = arith.constant 12 : i32
    %160 = arith.addi %3, %c12_i32 : i32
    %161 = arith.index_cast %160 : i32 to index
    %162 = memref.load %arg1[%161] : memref<128xi32, #tpu.memory_space<smem>>
    %163 = arith.addi %3, %c12_i32 : i32
    %164 = arith.index_cast %163 : i32 to index
    %165 = memref.load %arg2[%164] : memref<128xi32, #tpu.memory_space<smem>>
    %166 = arith.index_cast %162 : i32 to index
    %c0_37 = arith.constant 0 : index
    %167 = vector.load %arg20[%166, %c0_37] : memref<32x128xf32, #tpu.memory_space<vmem>>, vector<1x128xf32>
    %168 = arith.index_cast %165 : i32 to index
    %c0_38 = arith.constant 0 : index
    %169 = vector.load %arg21[%168, %c0_38] : memref<32x128xf32, #tpu.memory_space<vmem>>, vector<1x128xf32>
    %170 = arith.addf %167, %169 : vector<1x128xf32>
    %171 = arith.index_cast %c12_i32 : i32 to index
    %c0_39 = arith.constant 0 : index
    %172 = vector.load %arg22[%171, %c0_39] : memref<32x128xf32, #tpu.memory_space<vmem>>, vector<1x128xf32>
    tpu.vector_store %arg22[%171, %c0_39], %170 {strides = array<i32>} : memref<32x128xf32, #tpu.memory_space<vmem>>, vector<1x128xf32>,
    %c13_i32 = arith.constant 13 : i32
    %173 = arith.addi %3, %c13_i32 : i32
    %174 = arith.index_cast %173 : i32 to index
    %175 = memref.load %arg1[%174] : memref<128xi32, #tpu.memory_space<smem>>
    %176 = arith.addi %3, %c13_i32 : i32
    %177 = arith.index_cast %176 : i32 to index
    %178 = memref.load %arg2[%177] : memref<128xi32, #tpu.memory_space<smem>>
    %179 = arith.index_cast %175 : i32 to index
    %c0_40 = arith.constant 0 : index
    %180 = vector.load %arg20[%179, %c0_40] : memref<32x128xf32, #tpu.memory_space<vmem>>, vector<1x128xf32>
    %181 = arith.index_cast %178 : i32 to index
    %c0_41 = arith.constant 0 : index
    %182 = vector.load %arg21[%181, %c0_41] : memref<32x128xf32, #tpu.memory_space<vmem>>, vector<1x128xf32>
    %183 = arith.addf %180, %182 : vector<1x128xf32>
    %184 = arith.index_cast %c13_i32 : i32 to index
    %c0_42 = arith.constant 0 : index
    %185 = vector.load %arg22[%184, %c0_42] : memref<32x128xf32, #tpu.memory_space<vmem>>, vector<1x128xf32>
    tpu.vector_store %arg22[%184, %c0_42], %183 {strides = array<i32>} : memref<32x128xf32, #tpu.memory_space<vmem>>, vector<1x128xf32>,
    %c14_i32 = arith.constant 14 : i32
    %186 = arith.addi %3, %c14_i32 : i32
    %187 = arith.index_cast %186 : i32 to index
    %188 = memref.load %arg1[%187] : memref<128xi32, #tpu.memory_space<smem>>
    %189 = arith.addi %3, %c14_i32 : i32
    %190 = arith.index_cast %189 : i32 to index
    %191 = memref.load %arg2[%190] : memref<128xi32, #tpu.memory_space<smem>>
    %192 = arith.index_cast %188 : i32 to index
    %c0_43 = arith.constant 0 : index
    %193 = vector.load %arg20[%192, %c0_43] : memref<32x128xf32, #tpu.memory_space<vmem>>, vector<1x128xf32>
    %194 = arith.index_cast %191 : i32 to index
    %c0_44 = arith.constant 0 : index
    %195 = vector.load %arg21[%194, %c0_44] : memref<32x128xf32, #tpu.memory_space<vmem>>, vector<1x128xf32>
    %196 = arith.addf %193, %195 : vector<1x128xf32>
    %197 = arith.index_cast %c14_i32 : i32 to index
    %c0_45 = arith.constant 0 : index
    %198 = vector.load %arg22[%197, %c0_45] : memref<32x128xf32, #tpu.memory_space<vmem>>, vector<1x128xf32>
    tpu.vector_store %arg22[%197, %c0_45], %196 {strides = array<i32>} : memref<32x128xf32, #tpu.memory_space<vmem>>, vector<1x128xf32>,
    %c15_i32 = arith.constant 15 : i32
    %199 = arith.addi %3, %c15_i32 : i32
    %200 = arith.index_cast %199 : i32 to index
    %201 = memref.load %arg1[%200] : memref<128xi32, #tpu.memory_space<smem>>
    %202 = arith.addi %3, %c15_i32 : i32
    %203 = arith.index_cast %202 : i32 to index
    %204 = memref.load %arg2[%203] : memref<128xi32, #tpu.memory_space<smem>>
    %205 = arith.index_cast %201 : i32 to index
    %c0_46 = arith.constant 0 : index
    %206 = vector.load %arg20[%205, %c0_46] : memref<32x128xf32, #tpu.memory_space<vmem>>, vector<1x128xf32>
    %207 = arith.index_cast %204 : i32 to index
    %c0_47 = arith.constant 0 : index
    %208 = vector.load %arg21[%207, %c0_47] : memref<32x128xf32, #tpu.memory_space<vmem>>, vector<1x128xf32>
    %209 = arith.addf %206, %208 : vector<1x128xf32>
    %210 = arith.index_cast %c15_i32 : i32 to index
    %c0_48 = arith.constant 0 : index
    %211 = vector.load %arg22[%210, %c0_48] : memref<32x128xf32, #tpu.memory_space<vmem>>, vector<1x128xf32>
    tpu.vector_store %arg22[%210, %c0_48], %209 {strides = array<i32>} : memref<32x128xf32, #tpu.memory_space<vmem>>, vector<1x128xf32>,
    %c16_i32 = arith.constant 16 : i32
    %212 = arith.addi %3, %c16_i32 : i32
    %213 = arith.index_cast %212 : i32 to index
    %214 = memref.load %arg1[%213] : memref<128xi32, #tpu.memory_space<smem>>
    %215 = arith.addi %3, %c16_i32 : i32
    %216 = arith.index_cast %215 : i32 to index
    %217 = memref.load %arg2[%216] : memref<128xi32, #tpu.memory_space<smem>>
    %218 = arith.index_cast %214 : i32 to index
    %c0_49 = arith.constant 0 : index
    %219 = vector.load %arg20[%218, %c0_49] : memref<32x128xf32, #tpu.memory_space<vmem>>, vector<1x128xf32>
    %220 = arith.index_cast %217 : i32 to index
    %c0_50 = arith.constant 0 : index
    %221 = vector.load %arg21[%220, %c0_50] : memref<32x128xf32, #tpu.memory_space<vmem>>, vector<1x128xf32>
    %222 = arith.addf %219, %221 : vector<1x128xf32>
    %223 = arith.index_cast %c16_i32 : i32 to index
    %c0_51 = arith.constant 0 : index
    %224 = vector.load %arg22[%223, %c0_51] : memref<32x128xf32, #tpu.memory_space<vmem>>, vector<1x128xf32>
    tpu.vector_store %arg22[%223, %c0_51], %222 {strides = array<i32>} : memref<32x128xf32, #tpu.memory_space<vmem>>, vector<1x128xf32>,
    %c17_i32 = arith.constant 17 : i32
    %225 = arith.addi %3, %c17_i32 : i32
    %226 = arith.index_cast %225 : i32 to index
    %227 = memref.load %arg1[%226] : memref<128xi32, #tpu.memory_space<smem>>
    %228 = arith.addi %3, %c17_i32 : i32
    %229 = arith.index_cast %228 : i32 to index
    %230 = memref.load %arg2[%229] : memref<128xi32, #tpu.memory_space<smem>>
    %231 = arith.index_cast %227 : i32 to index
    %c0_52 = arith.constant 0 : index
    %232 = vector.load %arg20[%231, %c0_52] : memref<32x128xf32, #tpu.memory_space<vmem>>, vector<1x128xf32>
    %233 = arith.index_cast %230 : i32 to index
    %c0_53 = arith.constant 0 : index
    %234 = vector.load %arg21[%233, %c0_53] : memref<32x128xf32, #tpu.memory_space<vmem>>, vector<1x128xf32>
    %235 = arith.addf %232, %234 : vector<1x128xf32>
    %236 = arith.index_cast %c17_i32 : i32 to index
    %c0_54 = arith.constant 0 : index
    %237 = vector.load %arg22[%236, %c0_54] : memref<32x128xf32, #tpu.memory_space<vmem>>, vector<1x128xf32>
    tpu.vector_store %arg22[%236, %c0_54], %235 {strides = array<i32>} : memref<32x128xf32, #tpu.memory_space<vmem>>, vector<1x128xf32>,
    %c18_i32 = arith.constant 18 : i32
    %238 = arith.addi %3, %c18_i32 : i32
    %239 = arith.index_cast %238 : i32 to index
    %240 = memref.load %arg1[%239] : memref<128xi32, #tpu.memory_space<smem>>
    %241 = arith.addi %3, %c18_i32 : i32
    %242 = arith.index_cast %241 : i32 to index
    %243 = memref.load %arg2[%242] : memref<128xi32, #tpu.memory_space<smem>>
    %244 = arith.index_cast %240 : i32 to index
    %c0_55 = arith.constant 0 : index
    %245 = vector.load %arg20[%244, %c0_55] : memref<32x128xf32, #tpu.memory_space<vmem>>, vector<1x128xf32>
    %246 = arith.index_cast %243 : i32 to index
    %c0_56 = arith.constant 0 : index
    %247 = vector.load %arg21[%246, %c0_56] : memref<32x128xf32, #tpu.memory_space<vmem>>, vector<1x128xf32>
    %248 = arith.addf %245, %247 : vector<1x128xf32>
    %249 = arith.index_cast %c18_i32 : i32 to index
    %c0_57 = arith.constant 0 : index
    %250 = vector.load %arg22[%249, %c0_57] : memref<32x128xf32, #tpu.memory_space<vmem>>, vector<1x128xf32>
    tpu.vector_store %arg22[%249, %c0_57], %248 {strides = array<i32>} : memref<32x128xf32, #tpu.memory_space<vmem>>, vector<1x128xf32>,
    %c19_i32 = arith.constant 19 : i32
    %251 = arith.addi %3, %c19_i32 : i32
    %252 = arith.index_cast %251 : i32 to index
    %253 = memref.load %arg1[%252] : memref<128xi32, #tpu.memory_space<smem>>
    %254 = arith.addi %3, %c19_i32 : i32
    %255 = arith.index_cast %254 : i32 to index
    %256 = memref.load %arg2[%255] : memref<128xi32, #tpu.memory_space<smem>>
    %257 = arith.index_cast %253 : i32 to index
    %c0_58 = arith.constant 0 : index
    %258 = vector.load %arg20[%257, %c0_58] : memref<32x128xf32, #tpu.memory_space<vmem>>, vector<1x128xf32>
    %259 = arith.index_cast %256 : i32 to index
    %c0_59 = arith.constant 0 : index
    %260 = vector.load %arg21[%259, %c0_59] : memref<32x128xf32, #tpu.memory_space<vmem>>, vector<1x128xf32>
    %261 = arith.addf %258, %260 : vector<1x128xf32>
    %262 = arith.index_cast %c19_i32 : i32 to index
    %c0_60 = arith.constant 0 : index
    %263 = vector.load %arg22[%262, %c0_60] : memref<32x128xf32, #tpu.memory_space<vmem>>, vector<1x128xf32>
    tpu.vector_store %arg22[%262, %c0_60], %261 {strides = array<i32>} : memref<32x128xf32, #tpu.memory_space<vmem>>, vector<1x128xf32>,
    %c20_i32 = arith.constant 20 : i32
    %264 = arith.addi %3, %c20_i32 : i32
    %265 = arith.index_cast %264 : i32 to index
    %266 = memref.load %arg1[%265] : memref<128xi32, #tpu.memory_space<smem>>
    %267 = arith.addi %3, %c20_i32 : i32
    %268 = arith.index_cast %267 : i32 to index
    %269 = memref.load %arg2[%268] : memref<128xi32, #tpu.memory_space<smem>>
    %270 = arith.index_cast %266 : i32 to index
    %c0_61 = arith.constant 0 : index
    %271 = vector.load %arg20[%270, %c0_61] : memref<32x128xf32, #tpu.memory_space<vmem>>, vector<1x128xf32>
    %272 = arith.index_cast %269 : i32 to index
    %c0_62 = arith.constant 0 : index
    %273 = vector.load %arg21[%272, %c0_62] : memref<32x128xf32, #tpu.memory_space<vmem>>, vector<1x128xf32>
    %274 = arith.addf %271, %273 : vector<1x128xf32>
    %275 = arith.index_cast %c20_i32 : i32 to index
    %c0_63 = arith.constant 0 : index
    %276 = vector.load %arg22[%275, %c0_63] : memref<32x128xf32, #tpu.memory_space<vmem>>, vector<1x128xf32>
    tpu.vector_store %arg22[%275, %c0_63], %274 {strides = array<i32>} : memref<32x128xf32, #tpu.memory_space<vmem>>, vector<1x128xf32>,
    %c21_i32 = arith.constant 21 : i32
    %277 = arith.addi %3, %c21_i32 : i32
    %278 = arith.index_cast %277 : i32 to index
    %279 = memref.load %arg1[%278] : memref<128xi32, #tpu.memory_space<smem>>
    %280 = arith.addi %3, %c21_i32 : i32
    %281 = arith.index_cast %280 : i32 to index
    %282 = memref.load %arg2[%281] : memref<128xi32, #tpu.memory_space<smem>>
    %283 = arith.index_cast %279 : i32 to index
    %c0_64 = arith.constant 0 : index
    %284 = vector.load %arg20[%283, %c0_64] : memref<32x128xf32, #tpu.memory_space<vmem>>, vector<1x128xf32>
    %285 = arith.index_cast %282 : i32 to index
    %c0_65 = arith.constant 0 : index
    %286 = vector.load %arg21[%285, %c0_65] : memref<32x128xf32, #tpu.memory_space<vmem>>, vector<1x128xf32>
    %287 = arith.addf %284, %286 : vector<1x128xf32>
    %288 = arith.index_cast %c21_i32 : i32 to index
    %c0_66 = arith.constant 0 : index
    %289 = vector.load %arg22[%288, %c0_66] : memref<32x128xf32, #tpu.memory_space<vmem>>, vector<1x128xf32>
    tpu.vector_store %arg22[%288, %c0_66], %287 {strides = array<i32>} : memref<32x128xf32, #tpu.memory_space<vmem>>, vector<1x128xf32>,
    %c22_i32 = arith.constant 22 : i32
    %290 = arith.addi %3, %c22_i32 : i32
    %291 = arith.index_cast %290 : i32 to index
    %292 = memref.load %arg1[%291] : memref<128xi32, #tpu.memory_space<smem>>
    %293 = arith.addi %3, %c22_i32 : i32
    %294 = arith.index_cast %293 : i32 to index
    %295 = memref.load %arg2[%294] : memref<128xi32, #tpu.memory_space<smem>>
    %296 = arith.index_cast %292 : i32 to index
    %c0_67 = arith.constant 0 : index
    %297 = vector.load %arg20[%296, %c0_67] : memref<32x128xf32, #tpu.memory_space<vmem>>, vector<1x128xf32>
    %298 = arith.index_cast %295 : i32 to index
    %c0_68 = arith.constant 0 : index
    %299 = vector.load %arg21[%298, %c0_68] : memref<32x128xf32, #tpu.memory_space<vmem>>, vector<1x128xf32>
    %300 = arith.addf %297, %299 : vector<1x128xf32>
    %301 = arith.index_cast %c22_i32 : i32 to index
    %c0_69 = arith.constant 0 : index
    %302 = vector.load %arg22[%301, %c0_69] : memref<32x128xf32, #tpu.memory_space<vmem>>, vector<1x128xf32>
    tpu.vector_store %arg22[%301, %c0_69], %300 {strides = array<i32>} : memref<32x128xf32, #tpu.memory_space<vmem>>, vector<1x128xf32>,
    %c23_i32 = arith.constant 23 : i32
    %303 = arith.addi %3, %c23_i32 : i32
    %304 = arith.index_cast %303 : i32 to index
    %305 = memref.load %arg1[%304] : memref<128xi32, #tpu.memory_space<smem>>
    %306 = arith.addi %3, %c23_i32 : i32
    %307 = arith.index_cast %306 : i32 to index
    %308 = memref.load %arg2[%307] : memref<128xi32, #tpu.memory_space<smem>>
    %309 = arith.index_cast %305 : i32 to index
    %c0_70 = arith.constant 0 : index
    %310 = vector.load %arg20[%309, %c0_70] : memref<32x128xf32, #tpu.memory_space<vmem>>, vector<1x128xf32>
    %311 = arith.index_cast %308 : i32 to index
    %c0_71 = arith.constant 0 : index
    %312 = vector.load %arg21[%311, %c0_71] : memref<32x128xf32, #tpu.memory_space<vmem>>, vector<1x128xf32>
    %313 = arith.addf %310, %312 : vector<1x128xf32>
    %314 = arith.index_cast %c23_i32 : i32 to index
    %c0_72 = arith.constant 0 : index
    %315 = vector.load %arg22[%314, %c0_72] : memref<32x128xf32, #tpu.memory_space<vmem>>, vector<1x128xf32>
    tpu.vector_store %arg22[%314, %c0_72], %313 {strides = array<i32>} : memref<32x128xf32, #tpu.memory_space<vmem>>, vector<1x128xf32>,
    %c24_i32 = arith.constant 24 : i32
    %316 = arith.addi %3, %c24_i32 : i32
    %317 = arith.index_cast %316 : i32 to index
    %318 = memref.load %arg1[%317] : memref<128xi32, #tpu.memory_space<smem>>
    %319 = arith.addi %3, %c24_i32 : i32
    %320 = arith.index_cast %319 : i32 to index
    %321 = memref.load %arg2[%320] : memref<128xi32, #tpu.memory_space<smem>>
    %322 = arith.index_cast %318 : i32 to index
    %c0_73 = arith.constant 0 : index
    %323 = vector.load %arg20[%322, %c0_73] : memref<32x128xf32, #tpu.memory_space<vmem>>, vector<1x128xf32>
    %324 = arith.index_cast %321 : i32 to index
    %c0_74 = arith.constant 0 : index
    %325 = vector.load %arg21[%324, %c0_74] : memref<32x128xf32, #tpu.memory_space<vmem>>, vector<1x128xf32>
    %326 = arith.addf %323, %325 : vector<1x128xf32>
    %327 = arith.index_cast %c24_i32 : i32 to index
    %c0_75 = arith.constant 0 : index
    %328 = vector.load %arg22[%327, %c0_75] : memref<32x128xf32, #tpu.memory_space<vmem>>, vector<1x128xf32>
    tpu.vector_store %arg22[%327, %c0_75], %326 {strides = array<i32>} : memref<32x128xf32, #tpu.memory_space<vmem>>, vector<1x128xf32>,
    %c25_i32 = arith.constant 25 : i32
    %329 = arith.addi %3, %c25_i32 : i32
    %330 = arith.index_cast %329 : i32 to index
    %331 = memref.load %arg1[%330] : memref<128xi32, #tpu.memory_space<smem>>
    %332 = arith.addi %3, %c25_i32 : i32
    %333 = arith.index_cast %332 : i32 to index
    %334 = memref.load %arg2[%333] : memref<128xi32, #tpu.memory_space<smem>>
    %335 = arith.index_cast %331 : i32 to index
    %c0_76 = arith.constant 0 : index
    %336 = vector.load %arg20[%335, %c0_76] : memref<32x128xf32, #tpu.memory_space<vmem>>, vector<1x128xf32>
    %337 = arith.index_cast %334 : i32 to index
    %c0_77 = arith.constant 0 : index
    %338 = vector.load %arg21[%337, %c0_77] : memref<32x128xf32, #tpu.memory_space<vmem>>, vector<1x128xf32>
    %339 = arith.addf %336, %338 : vector<1x128xf32>
    %340 = arith.index_cast %c25_i32 : i32 to index
    %c0_78 = arith.constant 0 : index
    %341 = vector.load %arg22[%340, %c0_78] : memref<32x128xf32, #tpu.memory_space<vmem>>, vector<1x128xf32>
    tpu.vector_store %arg22[%340, %c0_78], %339 {strides = array<i32>} : memref<32x128xf32, #tpu.memory_space<vmem>>, vector<1x128xf32>,
    %c26_i32 = arith.constant 26 : i32
    %342 = arith.addi %3, %c26_i32 : i32
    %343 = arith.index_cast %342 : i32 to index
    %344 = memref.load %arg1[%343] : memref<128xi32, #tpu.memory_space<smem>>
    %345 = arith.addi %3, %c26_i32 : i32
    %346 = arith.index_cast %345 : i32 to index
    %347 = memref.load %arg2[%346] : memref<128xi32, #tpu.memory_space<smem>>
    %348 = arith.index_cast %344 : i32 to index
    %c0_79 = arith.constant 0 : index
    %349 = vector.load %arg20[%348, %c0_79] : memref<32x128xf32, #tpu.memory_space<vmem>>, vector<1x128xf32>
    %350 = arith.index_cast %347 : i32 to index
    %c0_80 = arith.constant 0 : index
    %351 = vector.load %arg21[%350, %c0_80] : memref<32x128xf32, #tpu.memory_space<vmem>>, vector<1x128xf32>
    %352 = arith.addf %349, %351 : vector<1x128xf32>
    %353 = arith.index_cast %c26_i32 : i32 to index
    %c0_81 = arith.constant 0 : index
    %354 = vector.load %arg22[%353, %c0_81] : memref<32x128xf32, #tpu.memory_space<vmem>>, vector<1x128xf32>
    tpu.vector_store %arg22[%353, %c0_81], %352 {strides = array<i32>} : memref<32x128xf32, #tpu.memory_space<vmem>>, vector<1x128xf32>,
    %c27_i32 = arith.constant 27 : i32
    %355 = arith.addi %3, %c27_i32 : i32
    %356 = arith.index_cast %355 : i32 to index
    %357 = memref.load %arg1[%356] : memref<128xi32, #tpu.memory_space<smem>>
    %358 = arith.addi %3, %c27_i32 : i32
    %359 = arith.index_cast %358 : i32 to index
    %360 = memref.load %arg2[%359] : memref<128xi32, #tpu.memory_space<smem>>
    %361 = arith.index_cast %357 : i32 to index
    %c0_82 = arith.constant 0 : index
    %362 = vector.load %arg20[%361, %c0_82] : memref<32x128xf32, #tpu.memory_space<vmem>>, vector<1x128xf32>
    %363 = arith.index_cast %360 : i32 to index
    %c0_83 = arith.constant 0 : index
    %364 = vector.load %arg21[%363, %c0_83] : memref<32x128xf32, #tpu.memory_space<vmem>>, vector<1x128xf32>
    %365 = arith.addf %362, %364 : vector<1x128xf32>
    %366 = arith.index_cast %c27_i32 : i32 to index
    %c0_84 = arith.constant 0 : index
    %367 = vector.load %arg22[%366, %c0_84] : memref<32x128xf32, #tpu.memory_space<vmem>>, vector<1x128xf32>
    tpu.vector_store %arg22[%366, %c0_84], %365 {strides = array<i32>} : memref<32x128xf32, #tpu.memory_space<vmem>>, vector<1x128xf32>,
    %c28_i32 = arith.constant 28 : i32
    %368 = arith.addi %3, %c28_i32 : i32
    %369 = arith.index_cast %368 : i32 to index
    %370 = memref.load %arg1[%369] : memref<128xi32, #tpu.memory_space<smem>>
    %371 = arith.addi %3, %c28_i32 : i32
    %372 = arith.index_cast %371 : i32 to index
    %373 = memref.load %arg2[%372] : memref<128xi32, #tpu.memory_space<smem>>
    %374 = arith.index_cast %370 : i32 to index
    %c0_85 = arith.constant 0 : index
    %375 = vector.load %arg20[%374, %c0_85] : memref<32x128xf32, #tpu.memory_space<vmem>>, vector<1x128xf32>
    %376 = arith.index_cast %373 : i32 to index
    %c0_86 = arith.constant 0 : index
    %377 = vector.load %arg21[%376, %c0_86] : memref<32x128xf32, #tpu.memory_space<vmem>>, vector<1x128xf32>
    %378 = arith.addf %375, %377 : vector<1x128xf32>
    %379 = arith.index_cast %c28_i32 : i32 to index
    %c0_87 = arith.constant 0 : index
    %380 = vector.load %arg22[%379, %c0_87] : memref<32x128xf32, #tpu.memory_space<vmem>>, vector<1x128xf32>
    tpu.vector_store %arg22[%379, %c0_87], %378 {strides = array<i32>} : memref<32x128xf32, #tpu.memory_space<vmem>>, vector<1x128xf32>,
    %c29_i32 = arith.constant 29 : i32
    %381 = arith.addi %3, %c29_i32 : i32
    %382 = arith.index_cast %381 : i32 to index
    %383 = memref.load %arg1[%382] : memref<128xi32, #tpu.memory_space<smem>>
    %384 = arith.addi %3, %c29_i32 : i32
    %385 = arith.index_cast %384 : i32 to index
    %386 = memref.load %arg2[%385] : memref<128xi32, #tpu.memory_space<smem>>
    %387 = arith.index_cast %383 : i32 to index
    %c0_88 = arith.constant 0 : index
    %388 = vector.load %arg20[%387, %c0_88] : memref<32x128xf32, #tpu.memory_space<vmem>>, vector<1x128xf32>
    %389 = arith.index_cast %386 : i32 to index
    %c0_89 = arith.constant 0 : index
    %390 = vector.load %arg21[%389, %c0_89] : memref<32x128xf32, #tpu.memory_space<vmem>>, vector<1x128xf32>
    %391 = arith.addf %388, %390 : vector<1x128xf32>
    %392 = arith.index_cast %c29_i32 : i32 to index
    %c0_90 = arith.constant 0 : index
    %393 = vector.load %arg22[%392, %c0_90] : memref<32x128xf32, #tpu.memory_space<vmem>>, vector<1x128xf32>
    tpu.vector_store %arg22[%392, %c0_90], %391 {strides = array<i32>} : memref<32x128xf32, #tpu.memory_space<vmem>>, vector<1x128xf32>,
    %c30_i32 = arith.constant 30 : i32
    %394 = arith.addi %3, %c30_i32 : i32
    %395 = arith.index_cast %394 : i32 to index
    %396 = memref.load %arg1[%395] : memref<128xi32, #tpu.memory_space<smem>>
    %397 = arith.addi %3, %c30_i32 : i32
    %398 = arith.index_cast %397 : i32 to index
    %399 = memref.load %arg2[%398] : memref<128xi32, #tpu.memory_space<smem>>
    %400 = arith.index_cast %396 : i32 to index
    %c0_91 = arith.constant 0 : index
    %401 = vector.load %arg20[%400, %c0_91] : memref<32x128xf32, #tpu.memory_space<vmem>>, vector<1x128xf32>
    %402 = arith.index_cast %399 : i32 to index
    %c0_92 = arith.constant 0 : index
    %403 = vector.load %arg21[%402, %c0_92] : memref<32x128xf32, #tpu.memory_space<vmem>>, vector<1x128xf32>
    %404 = arith.addf %401, %403 : vector<1x128xf32>
    %405 = arith.index_cast %c30_i32 : i32 to index
    %c0_93 = arith.constant 0 : index
    %406 = vector.load %arg22[%405, %c0_93] : memref<32x128xf32, #tpu.memory_space<vmem>>, vector<1x128xf32>
    tpu.vector_store %arg22[%405, %c0_93], %404 {strides = array<i32>} : memref<32x128xf32, #tpu.memory_space<vmem>>, vector<1x128xf32>,
    %c31_i32 = arith.constant 31 : i32
    %407 = arith.addi %3, %c31_i32 : i32
    %408 = arith.index_cast %407 : i32 to index
    %409 = memref.load %arg1[%408] : memref<128xi32, #tpu.memory_space<smem>>
    %410 = arith.addi %3, %c31_i32 : i32
    %411 = arith.index_cast %410 : i32 to index
    %412 = memref.load %arg2[%411] : memref<128xi32, #tpu.memory_space<smem>>
    %413 = arith.index_cast %409 : i32 to index
    %c0_94 = arith.constant 0 : index
    %414 = vector.load %arg20[%413, %c0_94] : memref<32x128xf32, #tpu.memory_space<vmem>>, vector<1x128xf32>
    %415 = arith.index_cast %412 : i32 to index
    %c0_95 = arith.constant 0 : index
    %416 = vector.load %arg21[%415, %c0_95] : memref<32x128xf32, #tpu.memory_space<vmem>>, vector<1x128xf32>
    %417 = arith.addf %414, %416 : vector<1x128xf32>
    %418 = arith.index_cast %c31_i32 : i32 to index
    %c0_96 = arith.constant 0 : index
    %419 = vector.load %arg22[%418, %c0_96] : memref<32x128xf32, #tpu.memory_space<vmem>>, vector<1x128xf32>
    tpu.vector_store %arg22[%418, %c0_96], %417 {strides = array<i32>} : memref<32x128xf32, #tpu.memory_space<vmem>>, vector<1x128xf32>,
    %c32_i32_97 = arith.constant 32 : i32
    %c0_98 = arith.constant 0 : index
    %c0_99 = arith.constant 0 : index
    %420 = vector.load %arg22[%c0_98, %c0_99] : memref<32x128xf32, #tpu.memory_space<vmem>>, vector<32x128xf32>
    %c0_100 = arith.constant 0 : index
    %c0_101 = arith.constant 0 : index
    %421 = vector.load %arg4[%c0_100, %c0_101] : memref<32x128xbf16, #tpu.memory_space<vmem>>, vector<32x128xbf16>
    %c0_102 = arith.constant 0 : index
    %c0_103 = arith.constant 0 : index
    %422 = vector.load %arg9[%c0_102, %c0_103] : memref<128x128xbf16, #tpu.memory_space<vmem>>, vector<128x128xbf16>
    %cst = arith.constant dense<0.000000e+00> : vector<32x128xf32>
    %423 = tpu.matmul %421, %422, %cst {dimension_numbers = #tpu.dot_dimension_numbers<[1], [0], [0], [1], [0, 0, 1, 1], [], []>} : vector<32x128xbf16>, vector<128x128xbf16>, vector<32x128xf32> -> vector<32x128xf32>
    %424 = arith.addf %420, %423 : vector<32x128xf32>
    %c0_104 = arith.constant 0 : index
    %c0_105 = arith.constant 0 : index
    %425 = vector.load %arg11[%c0_104, %c0_105] : memref<1x128xf32, #tpu.memory_space<vmem>>, vector<1x128xf32>
    %426 = vector.broadcast %425 : vector<1x128xf32> to vector<32x128xf32>
    %427 = arith.addf %424, %426 : vector<32x128xf32>
    %428 = arith.truncf %427 : vector<32x128xf32> to vector<32x128xbf16>
    %c0_106 = arith.constant 0 : index
    %c0_107 = arith.constant 0 : index
    %429 = vector.load %arg12[%c0_106, %c0_107] : memref<128x384xbf16, #tpu.memory_space<vmem>>, vector<128x384xbf16>
    %cst_108 = arith.constant dense<0.000000e+00> : vector<32x384xf32>
    %430 = tpu.matmul %428, %429, %cst_108 {dimension_numbers = #tpu.dot_dimension_numbers<[1], [0], [0], [1], [0, 0, 1, 1], [], []>} : vector<32x128xbf16>, vector<128x384xbf16>, vector<32x384xf32> -> vector<32x384xf32>
    %c0_109 = arith.constant 0 : index
    %c0_110 = arith.constant 0 : index
    %431 = vector.load %arg13[%c0_109, %c0_110] : memref<1x384xf32, #tpu.memory_space<vmem>>, vector<1x384xf32>
    %432 = vector.broadcast %431 : vector<1x384xf32> to vector<32x384xf32>
    %433 = arith.addf %430, %432 : vector<32x384xf32>
    %434 = vector.extract_strided_slice %433 {offsets = [0, 0], sizes = [32, 128], strides = [1, 1]} : vector<32x384xf32> to vector<32x128xf32>
    %435 = vector.extract_strided_slice %433 {offsets = [0, 128], sizes = [32, 128], strides = [1, 1]} : vector<32x384xf32> to vector<32x128xf32>
    %436 = vector.extract_strided_slice %433 {offsets = [0, 256], sizes = [32, 128], strides = [1, 1]} : vector<32x384xf32> to vector<32x128xf32>
    %c0_111 = arith.constant 0 : index
    %c0_112 = arith.constant 0 : index
    %437 = vector.load %arg19[%c0_111, %c0_112] : memref<32x128xf32, #tpu.memory_space<vmem>>, vector<32x128xf32>
    tpu.vector_store %arg19[%c0_111, %c0_112], %435 {strides = array<i32>} : memref<32x128xf32, #tpu.memory_space<vmem>>, vector<32x128xf32>,
    %c0_113 = arith.constant 0 : index
    %c0_114 = arith.constant 0 : index
    %438 = vector.load %arg23[%c0_113, %c0_114] : memref<32x128xf32, #tpu.memory_space<vmem>>, vector<32x128xf32>
    %c0_115 = arith.constant 0 : index
    %c0_116 = arith.constant 0 : index
    %439 = vector.load %arg5[%c0_115, %c0_116] : memref<32x32xbf16, #tpu.memory_space<vmem>>, vector<32x32xbf16>
    %440 = arith.truncf %434 : vector<32x128xf32> to vector<32x128xbf16>
    %cst_117 = arith.constant dense<0.000000e+00> : vector<32x128xf32>
    %441 = tpu.matmul %439, %440, %cst_117 {dimension_numbers = #tpu.dot_dimension_numbers<[0], [0], [1], [1], [0, 1, 1, 1], [], []>} : vector<32x32xbf16>, vector<32x128xbf16>, vector<32x128xf32> -> vector<32x128xf32>
    %c0_118 = arith.constant 0 : index
    %c0_119 = arith.constant 0 : index
    %442 = vector.load %arg6[%c0_118, %c0_119] : memref<32x32xbf16, #tpu.memory_space<vmem>>, vector<32x32xbf16>
    %443 = arith.truncf %436 : vector<32x128xf32> to vector<32x128xbf16>
    %cst_120 = arith.constant dense<0.000000e+00> : vector<32x128xf32>
    %444 = tpu.matmul %442, %443, %cst_120 {dimension_numbers = #tpu.dot_dimension_numbers<[0], [0], [1], [1], [0, 1, 1, 1], [], []>} : vector<32x32xbf16>, vector<32x128xbf16>, vector<32x128xf32> -> vector<32x128xf32>
    %445 = arith.addf %441, %444 : vector<32x128xf32>
    %446 = arith.addf %438, %445 : vector<32x128xf32>
    %c0_121 = arith.constant 0 : index
    %c0_122 = arith.constant 0 : index
    %447 = vector.load %arg23[%c0_121, %c0_122] : memref<32x128xf32, #tpu.memory_space<vmem>>, vector<32x128xf32>
    tpu.vector_store %arg23[%c0_121, %c0_122], %446 {strides = array<i32>} : memref<32x128xf32, #tpu.memory_space<vmem>>, vector<32x128xf32>,
    %c3_i32_123 = arith.constant 3 : i32
    %448 = arith.cmpi eq, %arg0, %c3_i32_123 : i32
    %449 = arith.extui %448 : i1 to i32
    %c0_i32_124 = arith.constant 0 : i32
    %450 = arith.cmpi ne, %449, %c0_i32_124 : i32
    scf.if %450 {
      %c0_125 = arith.constant 0 : index
      %c0_126 = arith.constant 0 : index
      %451 = vector.load %arg23[%c0_125, %c0_126] : memref<32x128xf32, #tpu.memory_space<vmem>>, vector<32x128xf32>
      %c0_127 = arith.constant 0 : index
      %c0_128 = arith.constant 0 : index
      %452 = vector.load %arg7[%c0_127, %c0_128] : memref<32x1xf32, #tpu.memory_space<vmem>>, vector<32x1xf32>
      %453 = vector.broadcast %452 : vector<32x1xf32> to vector<32x128xf32>
      %454 = arith.mulf %451, %453 : vector<32x128xf32>
      %455 = arith.truncf %454 : vector<32x128xf32> to vector<32x128xbf16>
      %c0_129 = arith.constant 0 : index
      %c0_130 = arith.constant 0 : index
      %456 = vector.load %arg14[%c0_129, %c0_130] : memref<128x128xbf16, #tpu.memory_space<vmem>>, vector<128x128xbf16>
      %cst_131 = arith.constant dense<0.000000e+00> : vector<32x128xf32>
      %457 = tpu.matmul %455, %456, %cst_131 {dimension_numbers = #tpu.dot_dimension_numbers<[1], [0], [0], [1], [0, 0, 1, 1], [], []>} : vector<32x128xbf16>, vector<128x128xbf16>, vector<32x128xf32> -> vector<32x128xf32>
      %c0_132 = arith.constant 0 : index
      %c0_133 = arith.constant 0 : index
      %458 = vector.load %arg15[%c0_132, %c0_133] : memref<1x128xf32, #tpu.memory_space<vmem>>, vector<1x128xf32>
      %459 = vector.broadcast %458 : vector<1x128xf32> to vector<32x128xf32>
      %460 = arith.addf %457, %459 : vector<32x128xf32>
      %461 = arith.truncf %460 : vector<32x128xf32> to vector<32x128xbf16>
      %c0_134 = arith.constant 0 : index
      %c0_135 = arith.constant 0 : index
      %462 = vector.load %arg16[%c0_134, %c0_135] : memref<128x128xbf16, #tpu.memory_space<vmem>>, vector<128x128xbf16>
      %cst_136 = arith.constant dense<0.000000e+00> : vector<32x128xf32>
      %463 = tpu.matmul %461, %462, %cst_136 {dimension_numbers = #tpu.dot_dimension_numbers<[1], [0], [0], [1], [0, 0, 1, 1], [], []>} : vector<32x128xbf16>, vector<128x128xbf16>, vector<32x128xf32> -> vector<32x128xf32>
      %c0_137 = arith.constant 0 : index
      %c0_138 = arith.constant 0 : index
      %464 = vector.load %arg17[%c0_137, %c0_138] : memref<1x128xf32, #tpu.memory_space<vmem>>, vector<1x128xf32>
      %465 = vector.broadcast %464 : vector<1x128xf32> to vector<32x128xf32>
      %466 = arith.addf %463, %465 : vector<32x128xf32>
      %c0_139 = arith.constant 0 : index
      %c0_140 = arith.constant 0 : index
      %467 = vector.load %arg18[%c0_139, %c0_140] : memref<32x128xf32, #tpu.memory_space<vmem>>, vector<32x128xf32>
      tpu.vector_store %arg18[%c0_139, %c0_140], %466 {strides = array<i32>} : memref<32x128xf32, #tpu.memory_space<vmem>>, vector<32x128xf32>,
    } else {
    }
    return
  }
  func.func @transform_0(%arg0: i32, %arg1: memref<128xi32, #tpu.memory_space<smem>>, %arg2: memref<128xi32, #tpu.memory_space<smem>>) -> (i32, i32) {
    %c0_i32 = arith.constant 0 : i32
    %c0_i32_0 = arith.constant 0 : i32
    %c0_i32_1 = arith.constant 0 : i32
    return %c0_i32, %c0_i32_0 : i32, i32
  }
  func.func @transform_1(%arg0: i32, %arg1: memref<128xi32, #tpu.memory_space<smem>>, %arg2: memref<128xi32, #tpu.memory_space<smem>>) -> (i32, i32) {
    %c0_i32 = arith.constant 0 : i32
    %c0_i32_0 = arith.constant 0 : i32
    return %arg0, %c0_i32 : i32, i32
  }
  func.func @transform_2(%arg0: i32, %arg1: memref<128xi32, #tpu.memory_space<smem>>, %arg2: memref<128xi32, #tpu.memory_space<smem>>) -> (i32, i32) {
    %c0_i32 = arith.constant 0 : i32
    %c0_i32_0 = arith.constant 0 : i32
    return %arg0, %c0_i32 : i32, i32
  }
  func.func @transform_3(%arg0: i32, %arg1: memref<128xi32, #tpu.memory_space<smem>>, %arg2: memref<128xi32, #tpu.memory_space<smem>>) -> (i32, i32) {
    %c0_i32 = arith.constant 0 : i32
    %c0_i32_0 = arith.constant 0 : i32
    return %arg0, %c0_i32 : i32, i32
  }
  func.func @transform_4(%arg0: i32, %arg1: memref<128xi32, #tpu.memory_space<smem>>, %arg2: memref<128xi32, #tpu.memory_space<smem>>) -> (i32, i32) {
    %c0_i32 = arith.constant 0 : i32
    %c0_i32_0 = arith.constant 0 : i32
    %c0_i32_1 = arith.constant 0 : i32
    return %c0_i32, %c0_i32_0 : i32, i32
  }
  func.func @transform_5(%arg0: i32, %arg1: memref<128xi32, #tpu.memory_space<smem>>, %arg2: memref<128xi32, #tpu.memory_space<smem>>) -> (i32, i32) {
    %c0_i32 = arith.constant 0 : i32
    %c0_i32_0 = arith.constant 0 : i32
    %c0_i32_1 = arith.constant 0 : i32
    return %c0_i32, %c0_i32_0 : i32, i32
  }
  func.func @transform_6(%arg0: i32, %arg1: memref<128xi32, #tpu.memory_space<smem>>, %arg2: memref<128xi32, #tpu.memory_space<smem>>) -> (i32, i32) {
    %c0_i32 = arith.constant 0 : i32
    %c0_i32_0 = arith.constant 0 : i32
    %c0_i32_1 = arith.constant 0 : i32
    return %c0_i32, %c0_i32_0 : i32, i32
  }
  func.func @transform_7(%arg0: i32, %arg1: memref<128xi32, #tpu.memory_space<smem>>, %arg2: memref<128xi32, #tpu.memory_space<smem>>) -> (i32, i32) {
    %c0_i32 = arith.constant 0 : i32
    %c0_i32_0 = arith.constant 0 : i32
    %c0_i32_1 = arith.constant 0 : i32
    return %c0_i32, %c0_i32_0 : i32, i32
  }
  func.func @transform_8(%arg0: i32, %arg1: memref<128xi32, #tpu.memory_space<smem>>, %arg2: memref<128xi32, #tpu.memory_space<smem>>) -> (i32, i32) {
    %c0_i32 = arith.constant 0 : i32
    %c0_i32_0 = arith.constant 0 : i32
    %c0_i32_1 = arith.constant 0 : i32
    return %c0_i32, %c0_i32_0 : i32, i32
  }
  func.func @transform_9(%arg0: i32, %arg1: memref<128xi32, #tpu.memory_space<smem>>, %arg2: memref<128xi32, #tpu.memory_space<smem>>) -> (i32, i32) {
    %c0_i32 = arith.constant 0 : i32
    %c0_i32_0 = arith.constant 0 : i32
    %c0_i32_1 = arith.constant 0 : i32
    return %c0_i32, %c0_i32_0 : i32, i32
  }
  func.func @transform_10(%arg0: i32, %arg1: memref<128xi32, #tpu.memory_space<smem>>, %arg2: memref<128xi32, #tpu.memory_space<smem>>) -> (i32, i32) {
    %c0_i32 = arith.constant 0 : i32
    %c0_i32_0 = arith.constant 0 : i32
    %c0_i32_1 = arith.constant 0 : i32
    return %c0_i32, %c0_i32_0 : i32, i32
  }
  func.func @transform_11(%arg0: i32, %arg1: memref<128xi32, #tpu.memory_space<smem>>, %arg2: memref<128xi32, #tpu.memory_space<smem>>) -> (i32, i32) {
    %c0_i32 = arith.constant 0 : i32
    %c0_i32_0 = arith.constant 0 : i32
    %c0_i32_1 = arith.constant 0 : i32
    return %c0_i32, %c0_i32_0 : i32, i32
  }
  func.func @transform_12(%arg0: i32, %arg1: memref<128xi32, #tpu.memory_space<smem>>, %arg2: memref<128xi32, #tpu.memory_space<smem>>) -> (i32, i32) {
    %c0_i32 = arith.constant 0 : i32
    %c0_i32_0 = arith.constant 0 : i32
    %c0_i32_1 = arith.constant 0 : i32
    return %c0_i32, %c0_i32_0 : i32, i32
  }
  func.func @transform_13(%arg0: i32, %arg1: memref<128xi32, #tpu.memory_space<smem>>, %arg2: memref<128xi32, #tpu.memory_space<smem>>) -> (i32, i32) {
    %c0_i32 = arith.constant 0 : i32
    %c0_i32_0 = arith.constant 0 : i32
    %c0_i32_1 = arith.constant 0 : i32
    return %c0_i32, %c0_i32_0 : i32, i32
  }
  func.func @transform_14(%arg0: i32, %arg1: memref<128xi32, #tpu.memory_space<smem>>, %arg2: memref<128xi32, #tpu.memory_space<smem>>) -> (i32, i32) {
    %c0_i32 = arith.constant 0 : i32
    %c0_i32_0 = arith.constant 0 : i32
    %c0_i32_1 = arith.constant 0 : i32
    return %c0_i32, %c0_i32_0 : i32, i32
  }
  func.func @transform_15(%arg0: i32, %arg1: memref<128xi32, #tpu.memory_space<smem>>, %arg2: memref<128xi32, #tpu.memory_space<smem>>) -> (i32, i32) {
    %c0_i32 = arith.constant 0 : i32
    %c0_i32_0 = arith.constant 0 : i32
    %c0_i32_1 = arith.constant 0 : i32
    return %c0_i32, %c0_i32_0 : i32, i32
  }
  func.func @transform_16(%arg0: i32, %arg1: memref<128xi32, #tpu.memory_space<smem>>, %arg2: memref<128xi32, #tpu.memory_space<smem>>) -> (i32, i32) {
    %c0_i32 = arith.constant 0 : i32
    %c0_i32_0 = arith.constant 0 : i32
    return %arg0, %c0_i32 : i32, i32
  }
}

</mosaic_0001>

<llo_original>
// kernel: batch_graph_triple_conv.1
$region0: #{batch_graph_triple_conv.1}
  #allocation0 [shape = 'u32[]', space=smem, size = 0x4, offset = 0x4, fixed_abs, tag = 'smem constant byte address 0x4 - core index']
  #allocation1 [shape = 'u32[144,128]{1,0:T(1,128)}', space=vmem, size = 0x12000, scoped, tag = 'internal scratch']
  #allocation2 [shape = 'f32[32,128]{1,0:T(8,128)}', space=vmem, size = 0x4000, scoped, tag = 'scratch operand']
  #allocation3 [shape = 'f32[32,128]{1,0:T(8,128)}', space=vmem, size = 0x4000, scoped, tag = 'scratch operand']
  #allocation4 [shape = 'f32[32,128]{1,0:T(8,128)}', space=vmem, size = 0x4000, scoped, tag = 'scratch operand']
  #allocation5 [shape = 'f32[32,128]{1,0:T(8,128)}', space=vmem, size = 0x4000, scoped, tag = 'scratch operand']
  #allocation6 [shape = 's32[1]{0}', space=sflag, size = 0x4, scoped, tag = 'scoped memory for batch_graph_triple_conv.1']
  #allocation7 [shape = 'u8[512]{0}', space=smem, size = 0x200, scoped, tag = 'prefetched SMEM operand 0']
  #allocation8 [shape = 'u8[512]{0}', space=smem, size = 0x200, scoped, tag = 'prefetched SMEM operand 1']
  %s0 = inlined_call_operand.vmem [shape: s32[128], index: 0, kind: input, shape index: {}]
  %s1 = inlined_call_operand.vmem [shape: s32[128], index: 1, kind: input, shape index: {}]
  %s2 = inlined_call_operand.vmem [shape: bf16[32,128], index: 2, kind: input, shape index: {}]
  %s3 = inlined_call_operand.vmem [shape: bf16[128,128], index: 3, kind: input, shape index: {}]
  %s4 = inlined_call_operand.vmem [shape: bf16[128,32], index: 4, kind: input, shape index: {}]
  %s5 = inlined_call_operand.vmem [shape: bf16[128,32], index: 5, kind: input, shape index: {}]
  %s6 = inlined_call_operand.vmem [shape: f32[32,1], index: 6, kind: input, shape index: {}]
  %s7 = inlined_call_operand.vmem [shape: bf16[128,128], index: 7, kind: input, shape index: {}]
  %s8 = inlined_call_operand.vmem [shape: bf16[128,128], index: 8, kind: input, shape index: {}]
  %s9 = inlined_call_operand.vmem [shape: bf16[128,128], index: 9, kind: input, shape index: {}]
  %s10 = inlined_call_operand.vmem [shape: f32[1,128], index: 10, kind: input, shape index: {}]
  %s11 = inlined_call_operand.vmem [shape: bf16[128,384], index: 11, kind: input, shape index: {}]
  %s12 = inlined_call_operand.vmem [shape: f32[1,384], index: 12, kind: input, shape index: {}]
  %s13 = inlined_call_operand.vmem [shape: bf16[128,128], index: 13, kind: input, shape index: {}]
  %s14 = inlined_call_operand.vmem [shape: f32[1,128], index: 14, kind: input, shape index: {}]
  %s15 = inlined_call_operand.vmem [shape: bf16[128,128], index: 15, kind: input, shape index: {}]
  %s16 = inlined_call_operand.vmem [shape: f32[1,128], index: 16, kind: input, shape index: {}]
  %s17 = inlined_call_operand.hbm [shape: f32[32,128], index: 17, kind: output, shape index: {0}]
  %s18 = inlined_call_operand.hbm [shape: f32[128,128], index: 18, kind: output, shape index: {1}]
  %19 = xla_tuple %s17, %s18
  %s20 = sld [smem:[#allocation0]]
  $region109: #{batch_graph_triple_conv.1} parent=0
    _
  %s22 = ssub.s32 1, %s20
  %s23 = scalar_select 0, %s22, %s20
  %s24 = sshll.u32 %s0, 4
  %s25 = int_to_ptr.vmem [resolvable:$true] %s24
  %27 = dma.vmem_to_smem %s25, 16, [#allocation7], [#allocation6]
  %s28 = sshll.u32 %s1, 4
  %s29 = int_to_ptr.vmem [resolvable:$true] %s28
  %31 = dma.vmem_to_smem %s29, 16, [#allocation8], [#allocation6]
  %32 = dma.done [#allocation6], 32
  %33 = sfence
  $region1: #{batch_graph_triple_conv.1} parent=0
    #allocation9 [shape = 'u8[16384]{0}', space=vmem, size = 0x4000, scoped, tag = 'output window, operand 0, single buffered']
    #allocation10 [shape = 's32[2]{0}', space=sflag, size = 0x8, scoped, tag = 'scoped memory for batch_graph_triple_conv.1']
    #allocation11 [shape = 'u8[32768]{0}', space=vmem, size = 0x8000, scoped, tag = 'output window, operand 1']
    #allocation12 [shape = 's32[2]{0}', space=sflag, size = 0x8, scoped, tag = 'scoped memory for batch_graph_triple_conv.1']
    %34 = vsyncpa [#allocation10], 0
    %35 = vsyncpa [#allocation12], 0
    %s36 = scalar_lea.sflag [#allocation12], 1
    %37 = vsyncpa %s36, 0
    loop: start=0, step=1, limit=6
    $region2: #{batch_graph_triple_conv.1} parent=1 // loop_pre_header
      _
    $region3: #{batch_graph_triple_conv.1} parent=1 // loop_header
      %s39 = sphi 0, %s43
      %p40 = scmp.ge.s32.totalorder %s39, 6
      %s47 = sphi 0, %s47
      %s49 = sphi 0, %s47
      %s50 = sphi 0, %s49
      %s64 = sphi 0, %s50
      %s70 = sphi 0, %s72
      %s73 = sphi 0, %s70
      %s74 = sphi 0, %s73
      %s90 = sphi 0, %s74
      %s96 = sphi 0, %s98
      %s99 = sphi 0, %s96
      %s100 = sphi 0, %s99
      %s116 = sphi 0, %s100
      %s122 = sphi 0, %s124
      %s125 = sphi 0, %s122
      %s126 = sphi 0, %s125
      %s142 = sphi 0, %s126
      %s146 = sphi 0, %s146
      %s148 = sphi 0, %s146
      %s149 = sphi 0, %s148
      %s163 = sphi 0, %s149
      %s167 = sphi 0, %s167
      %s169 = sphi 0, %s167
      %s170 = sphi 0, %s169
      %s184 = sphi 0, %s170
      %s188 = sphi 0, %s188
      %s190 = sphi 0, %s188
      %s191 = sphi 0, %s190
      %s205 = sphi 0, %s191
      %s209 = sphi 0, %s209
      %s211 = sphi 0, %s209
      %s212 = sphi 0, %s211
      %s226 = sphi 0, %s212
      %s230 = sphi 0, %s230
      %s232 = sphi 0, %s230
      %s233 = sphi 0, %s232
      %s247 = sphi 0, %s233
      %s251 = sphi 0, %s251
      %s253 = sphi 0, %s251
      %s254 = sphi 0, %s253
      %s268 = sphi 0, %s254
      %s272 = sphi 0, %s272
      %s274 = sphi 0, %s272
      %s275 = sphi 0, %s274
      %s289 = sphi 0, %s275
      %s293 = sphi 0, %s293
      %s295 = sphi 0, %s293
      %s296 = sphi 0, %s295
      %s310 = sphi 0, %s296
      %s314 = sphi 0, %s314
      %s316 = sphi 0, %s314
      %s317 = sphi 0, %s316
      %s331 = sphi 0, %s317
      %s335 = sphi 0, %s335
      %s337 = sphi 0, %s335
      %s338 = sphi 0, %s337
      %s352 = sphi 0, %s338
      %s356 = sphi 0, %s356
      %s358 = sphi 0, %s356
      %s359 = sphi 0, %s358
      %s373 = sphi 0, %s359
      %s377 = sphi 0, %s377
      %s379 = sphi 0, %s377
      %s380 = sphi 0, %s379
      %s394 = sphi 0, %s380
      %s400 = sphi 0, %s402
      %s403 = sphi 0, %s400
      %s404 = sphi 0, %s403
      %s420 = sphi 0, %s404
    $region4: #{batch_graph_triple_conv.1} parent=1 // loop_header_branch
      %42 = sbr.rel (%p40) target = $region8
    $region5: #{batch_graph_triple_conv.1} parent=1 // loop_body
      %s44 = ssub.s32 %s39, 1
      %s45 = ssub.s32 %s39, 2
      %s46 = sadd.s32 %s39, 1
      %s48 = sadd.s32 %s47, 1
      %p51 = scmp.eq.s32.totalorder %s39, 3
      %p52 = scmp.ne.s32.totalorder %s47, %s49
      %p53 = scmp.eq.s32.totalorder %s39, 0
      %p54 = por %p52, %p53
      %p55 = scmp.ne.s32.totalorder %s47, %s49
      %p56 = scmp.eq.s32.totalorder %s44, 3
      %p57 = por %p55, %p56
      %p58 = scmp.ne.s32.totalorder %s49, %s50
      %p59 = scmp.eq.s32.totalorder %s44, 0
      %p60 = por %p58, %p59
      %p61 = scmp.ne.s32.totalorder %s49, %s50
      %p62 = scmp.eq.s32.totalorder %s45, 3
      %p63 = por %p61, %p62
      %p65 = scmp.ne.s32.totalorder %s50, %s64
      %p66 = scmp.eq.s32.totalorder %s45, 0
      %p67 = por %p65, %p66
      %s68 = ssub.s32 %s39, %s46
      %p69 = scmp.eq.s32.totalorder %s68, 0
      %s71 = sadd.s32 %s70, 1
      %s72 = scalar_select %p69, %s70, %s71
      %p75 = pneg %p69
      %p76 = scmp.eq.s32.totalorder %s39, 3
      %p77 = por %p75, %p76
      %p78 = scmp.ne.s32.totalorder %s70, %s73
      %p79 = scmp.eq.s32.totalorder %s39, 0
      %p80 = por %p78, %p79
      %p81 = scmp.ne.s32.totalorder %s70, %s73
      %p82 = scmp.eq.s32.totalorder %s44, 3
      %p83 = por %p81, %p82
      %p84 = scmp.ne.s32.totalorder %s73, %s74
      %p85 = scmp.eq.s32.totalorder %s44, 0
      %p86 = por %p84, %p85
      %p87 = scmp.ne.s32.totalorder %s73, %s74
      %p88 = scmp.eq.s32.totalorder %s45, 3
      %p89 = por %p87, %p88
      %p91 = scmp.ne.s32.totalorder %s74, %s90
      %p92 = scmp.eq.s32.totalorder %s45, 0
      %p93 = por %p91, %p92
      %s94 = ssub.s32 %s39, %s46
      %p95 = scmp.eq.s32.totalorder %s94, 0
      %s97 = sadd.s32 %s96, 1
      %s98 = scalar_select %p95, %s96, %s97
      %p101 = pneg %p95
      %p102 = scmp.eq.s32.totalorder %s39, 3
      %p103 = por %p101, %p102
      %p104 = scmp.ne.s32.totalorder %s96, %s99
      %p105 = scmp.eq.s32.totalorder %s39, 0
      %p106 = por %p104, %p105
      %p107 = scmp.ne.s32.totalorder %s96, %s99
      %p108 = scmp.eq.s32.totalorder %s44, 3
      %p109 = por %p107, %p108
      %p110 = scmp.ne.s32.totalorder %s99, %s100
      %p111 = scmp.eq.s32.totalorder %s44, 0
      %p112 = por %p110, %p111
      %p113 = scmp.ne.s32.totalorder %s99, %s100
      %p114 = scmp.eq.s32.totalorder %s45, 3
      %p115 = por %p113, %p114
      %p117 = scmp.ne.s32.totalorder %s100, %s116
      %p118 = scmp.eq.s32.totalorder %s45, 0
      %p119 = por %p117, %p118
      %s120 = ssub.s32 %s39, %s46
      %p121 = scmp.eq.s32.totalorder %s120, 0
      %s123 = sadd.s32 %s122, 1
      %s124 = scalar_select %p121, %s122, %s123
      %p127 = pneg %p121
      %p128 = scmp.eq.s32.totalorder %s39, 3
      %p129 = por %p127, %p128
      %p130 = scmp.ne.s32.totalorder %s122, %s125
      %p131 = scmp.eq.s32.totalorder %s39, 0
      %p132 = por %p130, %p131
      %p133 = scmp.ne.s32.totalorder %s122, %s125
      %p134 = scmp.eq.s32.totalorder %s44, 3
      %p135 = por %p133, %p134
      %p136 = scmp.ne.s32.totalorder %s125, %s126
      %p137 = scmp.eq.s32.totalorder %s44, 0
      %p138 = por %p136, %p137
      %p139 = scmp.ne.s32.totalorder %s125, %s126
      %p140 = scmp.eq.s32.totalorder %s45, 3
      %p141 = por %p139, %p140
      %p143 = scmp.ne.s32.totalorder %s126, %s142
      %p144 = scmp.eq.s32.totalorder %s45, 0
      %p145 = por %p143, %p144
      %s147 = sadd.s32 %s146, 1
      %p150 = scmp.eq.s32.totalorder %s39, 3
      %p151 = scmp.ne.s32.totalorder %s146, %s148
      %p152 = scmp.eq.s32.totalorder %s39, 0
      %p153 = por %p151, %p152
      %p154 = scmp.ne.s32.totalorder %s146, %s148
      %p155 = scmp.eq.s32.totalorder %s44, 3
      %p156 = por %p154, %p155
      %p157 = scmp.ne.s32.totalorder %s148, %s149
      %p158 = scmp.eq.s32.totalorder %s44, 0
      %p159 = por %p157, %p158
      %p160 = scmp.ne.s32.totalorder %s148, %s149
      %p161 = scmp.eq.s32.totalorder %s45, 3
      %p162 = por %p160, %p161
      %p164 = scmp.ne.s32.totalorder %s149, %s163
      %p165 = scmp.eq.s32.totalorder %s45, 0
      %p166 = por %p164, %p165
      %s168 = sadd.s32 %s167, 1
      %p171 = scmp.eq.s32.totalorder %s39, 3
      %p172 = scmp.ne.s32.totalorder %s167, %s169
      %p173 = scmp.eq.s32.totalorder %s39, 0
      %p174 = por %p172, %p173
      %p175 = scmp.ne.s32.totalorder %s167, %s169
      %p176 = scmp.eq.s32.totalorder %s44, 3
      %p177 = por %p175, %p176
      %p178 = scmp.ne.s32.totalorder %s169, %s170
      %p179 = scmp.eq.s32.totalorder %s44, 0
      %p180 = por %p178, %p179
      %p181 = scmp.ne.s32.totalorder %s169, %s170
      %p182 = scmp.eq.s32.totalorder %s45, 3
      %p183 = por %p181, %p182
      %p185 = scmp.ne.s32.totalorder %s170, %s184
      %p186 = scmp.eq.s32.totalorder %s45, 0
      %p187 = por %p185, %p186
      %s189 = sadd.s32 %s188, 1
      %p192 = scmp.eq.s32.totalorder %s39, 3
      %p193 = scmp.ne.s32.totalorder %s188, %s190
      %p194 = scmp.eq.s32.totalorder %s39, 0
      %p195 = por %p193, %p194
      %p196 = scmp.ne.s32.totalorder %s188, %s190
      %p197 = scmp.eq.s32.totalorder %s44, 3
      %p198 = por %p196, %p197
      %p199 = scmp.ne.s32.totalorder %s190, %s191
      %p200 = scmp.eq.s32.totalorder %s44, 0
      %p201 = por %p199, %p200
      %p202 = scmp.ne.s32.totalorder %s190, %s191
      %p203 = scmp.eq.s32.totalorder %s45, 3
      %p204 = por %p202, %p203
      %p206 = scmp.ne.s32.totalorder %s191, %s205
      %p207 = scmp.eq.s32.totalorder %s45, 0
      %p208 = por %p206, %p207
      %s210 = sadd.s32 %s209, 1
      %p213 = scmp.eq.s32.totalorder %s39, 3
      %p214 = scmp.ne.s32.totalorder %s209, %s211
      %p215 = scmp.eq.s32.totalorder %s39, 0
      %p216 = por %p214, %p215
      %p217 = scmp.ne.s32.totalorder %s209, %s211
      %p218 = scmp.eq.s32.totalorder %s44, 3
      %p219 = por %p217, %p218
      %p220 = scmp.ne.s32.totalorder %s211, %s212
      %p221 = scmp.eq.s32.totalorder %s44, 0
      %p222 = por %p220, %p221
      %p223 = scmp.ne.s32.totalorder %s211, %s212
      %p224 = scmp.eq.s32.totalorder %s45, 3
      %p225 = por %p223, %p224
      %p227 = scmp.ne.s32.totalorder %s212, %s226
      %p228 = scmp.eq.s32.totalorder %s45, 0
      %p229 = por %p227, %p228
      %s231 = sadd.s32 %s230, 1
      %p234 = scmp.eq.s32.totalorder %s39, 3
      %p235 = scmp.ne.s32.totalorder %s230, %s232
      %p236 = scmp.eq.s32.totalorder %s39, 0
      %p237 = por %p235, %p236
      %p238 = scmp.ne.s32.totalorder %s230, %s232
      %p239 = scmp.eq.s32.totalorder %s44, 3
      %p240 = por %p238, %p239
      %p241 = scmp.ne.s32.totalorder %s232, %s233
      %p242 = scmp.eq.s32.totalorder %s44, 0
      %p243 = por %p241, %p242
      %p244 = scmp.ne.s32.totalorder %s232, %s233
      %p245 = scmp.eq.s32.totalorder %s45, 3
      %p246 = por %p244, %p245
      %p248 = scmp.ne.s32.totalorder %s233, %s247
      %p249 = scmp.eq.s32.totalorder %s45, 0
      %p250 = por %p248, %p249
      %s252 = sadd.s32 %s251, 1
      %p255 = scmp.eq.s32.totalorder %s39, 3
      %p256 = scmp.ne.s32.totalorder %s251, %s253
      %p257 = scmp.eq.s32.totalorder %s39, 0
      %p258 = por %p256, %p257
      %p259 = scmp.ne.s32.totalorder %s251, %s253
      %p260 = scmp.eq.s32.totalorder %s44, 3
      %p261 = por %p259, %p260
      %p262 = scmp.ne.s32.totalorder %s253, %s254
      %p263 = scmp.eq.s32.totalorder %s44, 0
      %p264 = por %p262, %p263
      %p265 = scmp.ne.s32.totalorder %s253, %s254
      %p266 = scmp.eq.s32.totalorder %s45, 3
      %p267 = por %p265, %p266
      %p269 = scmp.ne.s32.totalorder %s254, %s268
      %p270 = scmp.eq.s32.totalorder %s45, 0
      %p271 = por %p269, %p270
      %s273 = sadd.s32 %s272, 1
      %p276 = scmp.eq.s32.totalorder %s39, 3
      %p277 = scmp.ne.s32.totalorder %s272, %s274
      %p278 = scmp.eq.s32.totalorder %s39, 0
      %p279 = por %p277, %p278
      %p280 = scmp.ne.s32.totalorder %s272, %s274
      %p281 = scmp.eq.s32.totalorder %s44, 3
      %p282 = por %p280, %p281
      %p283 = scmp.ne.s32.totalorder %s274, %s275
      %p284 = scmp.eq.s32.totalorder %s44, 0
      %p285 = por %p283, %p284
      %p286 = scmp.ne.s32.totalorder %s274, %s275
      %p287 = scmp.eq.s32.totalorder %s45, 3
      %p288 = por %p286, %p287
      %p290 = scmp.ne.s32.totalorder %s275, %s289
      %p291 = scmp.eq.s32.totalorder %s45, 0
      %p292 = por %p290, %p291
      %s294 = sadd.s32 %s293, 1
      %p297 = scmp.eq.s32.totalorder %s39, 3
      %p298 = scmp.ne.s32.totalorder %s293, %s295
      %p299 = scmp.eq.s32.totalorder %s39, 0
      %p300 = por %p298, %p299
      %p301 = scmp.ne.s32.totalorder %s293, %s295
      %p302 = scmp.eq.s32.totalorder %s44, 3
      %p303 = por %p301, %p302
      %p304 = scmp.ne.s32.totalorder %s295, %s296
      %p305 = scmp.eq.s32.totalorder %s44, 0
      %p306 = por %p304, %p305
      %p307 = scmp.ne.s32.totalorder %s295, %s296
      %p308 = scmp.eq.s32.totalorder %s45, 3
      %p309 = por %p307, %p308
      %p311 = scmp.ne.s32.totalorder %s296, %s310
      %p312 = scmp.eq.s32.totalorder %s45, 0
      %p313 = por %p311, %p312
      %s315 = sadd.s32 %s314, 1
      %p318 = scmp.eq.s32.totalorder %s39, 3
      %p319 = scmp.ne.s32.totalorder %s314, %s316
      %p320 = scmp.eq.s32.totalorder %s39, 0
      %p321 = por %p319, %p320
      %p322 = scmp.ne.s32.totalorder %s314, %s316
      %p323 = scmp.eq.s32.totalorder %s44, 3
      %p324 = por %p322, %p323
      %p325 = scmp.ne.s32.totalorder %s316, %s317
      %p326 = scmp.eq.s32.totalorder %s44, 0
      %p327 = por %p325, %p326
      %p328 = scmp.ne.s32.totalorder %s316, %s317
      %p329 = scmp.eq.s32.totalorder %s45, 3
      %p330 = por %p328, %p329
      %p332 = scmp.ne.s32.totalorder %s317, %s331
      %p333 = scmp.eq.s32.totalorder %s45, 0
      %p334 = por %p332, %p333
      %s336 = sadd.s32 %s335, 1
      %p339 = scmp.eq.s32.totalorder %s39, 3
      %p340 = scmp.ne.s32.totalorder %s335, %s337
      %p341 = scmp.eq.s32.totalorder %s39, 0
      %p342 = por %p340, %p341
      %p343 = scmp.ne.s32.totalorder %s335, %s337
      %p344 = scmp.eq.s32.totalorder %s44, 3
      %p345 = por %p343, %p344
      %p346 = scmp.ne.s32.totalorder %s337, %s338
      %p347 = scmp.eq.s32.totalorder %s44, 0
      %p348 = por %p346, %p347
      %p349 = scmp.ne.s32.totalorder %s337, %s338
      %p350 = scmp.eq.s32.totalorder %s45, 3
      %p351 = por %p349, %p350
      %p353 = scmp.ne.s32.totalorder %s338, %s352
      %p354 = scmp.eq.s32.totalorder %s45, 0
      %p355 = por %p353, %p354
      %s357 = sadd.s32 %s356, 1
      %p360 = scmp.eq.s32.totalorder %s39, 3
      %p361 = scmp.ne.s32.totalorder %s356, %s358
      %p362 = scmp.eq.s32.totalorder %s39, 0
      %p363 = por %p361, %p362
      %p364 = scmp.ne.s32.totalorder %s356, %s358
      %p365 = scmp.eq.s32.totalorder %s44, 3
      %p366 = por %p364, %p365
      %p367 = scmp.ne.s32.totalorder %s358, %s359
      %p368 = scmp.eq.s32.totalorder %s44, 0
      %p369 = por %p367, %p368
      %p370 = scmp.ne.s32.totalorder %s358, %s359
      %p371 = scmp.eq.s32.totalorder %s45, 3
      %p372 = por %p370, %p371
      %p374 = scmp.ne.s32.totalorder %s359, %s373
      %p375 = scmp.eq.s32.totalorder %s45, 0
      %p376 = por %p374, %p375
      %s378 = sadd.s32 %s377, 1
      %p381 = scmp.eq.s32.totalorder %s39, 3
      %p382 = scmp.ne.s32.totalorder %s377, %s379
      %p383 = scmp.eq.s32.totalorder %s39, 0
      %p384 = por %p382, %p383
      %p385 = scmp.ne.s32.totalorder %s377, %s379
      %p386 = scmp.eq.s32.totalorder %s44, 3
      %p387 = por %p385, %p386
      %p388 = scmp.ne.s32.totalorder %s379, %s380
      %p389 = scmp.eq.s32.totalorder %s44, 0
      %p390 = por %p388, %p389
      %p391 = scmp.ne.s32.totalorder %s379, %s380
      %p392 = scmp.eq.s32.totalorder %s45, 3
      %p393 = por %p391, %p392
      %p395 = scmp.ne.s32.totalorder %s380, %s394
      %p396 = scmp.eq.s32.totalorder %s45, 0
      %p397 = por %p395, %p396
      %s398 = ssub.s32 %s39, %s46
      %p399 = scmp.eq.s32.totalorder %s398, 0
      %s401 = sadd.s32 %s400, 1
      %s402 = scalar_select %p399, %s400, %s401
      %p405 = pneg %p399
      %p406 = scmp.eq.s32.totalorder %s39, 3
      %p407 = por %p405, %p406
      %p408 = scmp.ne.s32.totalorder %s400, %s403
      %p409 = scmp.eq.s32.totalorder %s39, 0
      %p410 = por %p408, %p409
      %p411 = scmp.ne.s32.totalorder %s400, %s403
      %p412 = scmp.eq.s32.totalorder %s44, 3
      %p413 = por %p411, %p412
      %p414 = scmp.ne.s32.totalorder %s403, %s404
      %p415 = scmp.eq.s32.totalorder %s44, 0
      %p416 = por %p414, %p415
      %p417 = scmp.ne.s32.totalorder %s403, %s404
      %p418 = scmp.eq.s32.totalorder %s45, 3
      %p419 = por %p417, %p418
      %p421 = scmp.ne.s32.totalorder %s404, %s420
      %p422 = scmp.eq.s32.totalorder %s45, 0
      %p423 = por %p421, %p422
      %p424 = scmp.le.s32.totalorder 1, %s39
      %p425 = scmp.lt.s32.totalorder %s39, 5
      %p426 = pnand %p424, %p425
      %p427 = pneg %p426
      // Predicated region
      $region9: #{batch_graph_triple_conv.1} parent=5 // pred_check
        _
      $region10: #{batch_graph_triple_conv.1} parent=5 // pred_check_branch
        %429 = sbr.rel (%p426) target = $region12
      $region11: #{batch_graph_triple_conv.1} parent=5 // pred_region
        %s430 = ssub.s32 %s39, 1
        // Predicated region
        $region13: #{batch_graph_triple_conv.1} parent=11 // pred_check
          %p431 = pneg %p60
        $region14: #{batch_graph_triple_conv.1} parent=11 // pred_check_branch
          %433 = sbr.rel (%p431) target = $region16
        $region15: #{batch_graph_triple_conv.1} parent=11 // pred_region
          _
        $region16: #{batch_graph_triple_conv.1} parent=11 // pred_fallthru
          _
        // Predicated region
        $region17: #{batch_graph_triple_conv.1} parent=11 // pred_check
          %p434 = pneg %p159
        $region18: #{batch_graph_triple_conv.1} parent=11 // pred_check_branch
          %436 = sbr.rel (%p434) target = $region20
        $region19: #{batch_graph_triple_conv.1} parent=11 // pred_region
          _
        $region20: #{batch_graph_triple_conv.1} parent=11 // pred_fallthru
          _
        // Predicated region
        $region21: #{batch_graph_triple_conv.1} parent=11 // pred_check
          %p437 = pneg %p180
        $region22: #{batch_graph_triple_conv.1} parent=11 // pred_check_branch
          %439 = sbr.rel (%p437) target = $region24
        $region23: #{batch_graph_triple_conv.1} parent=11 // pred_region
          _
        $region24: #{batch_graph_triple_conv.1} parent=11 // pred_fallthru
          _
        // Predicated region
        $region25: #{batch_graph_triple_conv.1} parent=11 // pred_check
          %p440 = pneg %p201
        $region26: #{batch_graph_triple_conv.1} parent=11 // pred_check_branch
          %442 = sbr.rel (%p440) target = $region28
        $region27: #{batch_graph_triple_conv.1} parent=11 // pred_region
          _
        $region28: #{batch_graph_triple_conv.1} parent=11 // pred_fallthru
          _
        // Predicated region
        $region29: #{batch_graph_triple_conv.1} parent=11 // pred_check
          %p443 = pneg %p222
        $region30: #{batch_graph_triple_conv.1} parent=11 // pred_check_branch
          %445 = sbr.rel (%p443) target = $region32
        $region31: #{batch_graph_triple_conv.1} parent=11 // pred_region
          _
        $region32: #{batch_graph_triple_conv.1} parent=11 // pred_fallthru
          _
        // Predicated region
        $region33: #{batch_graph_triple_conv.1} parent=11 // pred_check
          %p446 = pneg %p243
        $region34: #{batch_graph_triple_conv.1} parent=11 // pred_check_branch
          %448 = sbr.rel (%p446) target = $region36
        $region35: #{batch_graph_triple_conv.1} parent=11 // pred_region
          _
        $region36: #{batch_graph_triple_conv.1} parent=11 // pred_fallthru
          _
        // Predicated region
        $region37: #{batch_graph_triple_conv.1} parent=11 // pred_check
          %p449 = pneg %p264
        $region38: #{batch_graph_triple_conv.1} parent=11 // pred_check_branch
          %451 = sbr.rel (%p449) target = $region40
        $region39: #{batch_graph_triple_conv.1} parent=11 // pred_region
          _
        $region40: #{batch_graph_triple_conv.1} parent=11 // pred_fallthru
          _
        // Predicated region
        $region41: #{batch_graph_triple_conv.1} parent=11 // pred_check
          %p452 = pneg %p285
        $region42: #{batch_graph_triple_conv.1} parent=11 // pred_check_branch
          %454 = sbr.rel (%p452) target = $region44
        $region43: #{batch_graph_triple_conv.1} parent=11 // pred_region
          _
        $region44: #{batch_graph_triple_conv.1} parent=11 // pred_fallthru
          _
        // Predicated region
        $region45: #{batch_graph_triple_conv.1} parent=11 // pred_check
          %p455 = pneg %p306
        $region46: #{batch_graph_triple_conv.1} parent=11 // pred_check_branch
          %457 = sbr.rel (%p455) target = $region48
        $region47: #{batch_graph_triple_conv.1} parent=11 // pred_region
          _
        $region48: #{batch_graph_triple_conv.1} parent=11 // pred_fallthru
          _
        // Predicated region
        $region49: #{batch_graph_triple_conv.1} parent=11 // pred_check
          %p458 = pneg %p327
        $region50: #{batch_graph_triple_conv.1} parent=11 // pred_check_branch
          %460 = sbr.rel (%p458) target = $region52
        $region51: #{batch_graph_triple_conv.1} parent=11 // pred_region
          _
        $region52: #{batch_graph_triple_conv.1} parent=11 // pred_fallthru
          _
        // Predicated region
        $region53: #{batch_graph_triple_conv.1} parent=11 // pred_check
          %p461 = pneg %p348
        $region54: #{batch_graph_triple_conv.1} parent=11 // pred_check_branch
          %463 = sbr.rel (%p461) target = $region56
        $region55: #{batch_graph_triple_conv.1} parent=11 // pred_region
          _
        $region56: #{batch_graph_triple_conv.1} parent=11 // pred_fallthru
          _
        // Predicated region
        $region57: #{batch_graph_triple_conv.1} parent=11 // pred_check
          %p464 = pneg %p369
        $region58: #{batch_graph_triple_conv.1} parent=11 // pred_check_branch
          %466 = sbr.rel (%p464) target = $region60
        $region59: #{batch_graph_triple_conv.1} parent=11 // pred_region
          _
        $region60: #{batch_graph_triple_conv.1} parent=11 // pred_fallthru
          _
      $region12: #{batch_graph_triple_conv.1} parent=5 // pred_fallthru
        _
      %p467 = scmp.lt.s32.totalorder %s39, 4
      // Predicated region
      $region61: #{batch_graph_triple_conv.1} parent=5 // pred_check
        %p468 = pneg %p467
      $region62: #{batch_graph_triple_conv.1} parent=5 // pred_check_branch
        %470 = sbr.rel (%p468) target = $region64
      $region63: #{batch_graph_triple_conv.1} parent=5 // pred_region
        // Predicated region
        $region65: #{batch_graph_triple_conv.1} parent=63 // pred_check
          %p471 = pneg %p80
        $region66: #{batch_graph_triple_conv.1} parent=63 // pred_check_branch
          %473 = sbr.rel (%p471) target = $region68
        $region67: #{batch_graph_triple_conv.1} parent=63 // pred_region
          %s474 = smul.u32 4, %s39
          %p475 = scmp.lt.s32.totalorder %s474, 15
          %s476 = scalar_select %p475, %s474, 15
          %s477 = smul.addr %s476, 4
          %s478 = scalar_lea.vmem %s3, %s477
          %s479 = smul.u32 4, %s39
        $region68: #{batch_graph_triple_conv.1} parent=63 // pred_fallthru
          _
        // Predicated region
        $region69: #{batch_graph_triple_conv.1} parent=63 // pred_check
          %p480 = pneg %p106
        $region70: #{batch_graph_triple_conv.1} parent=63 // pred_check_branch
          %482 = sbr.rel (%p480) target = $region72
        $region71: #{batch_graph_triple_conv.1} parent=63 // pred_region
          %s483 = smul.u32 4, %s39
          %p484 = scmp.lt.s32.totalorder %s483, 15
          %s485 = scalar_select %p484, %s483, 15
          %s486 = smul.addr %s485, 4
          %s487 = scalar_lea.vmem %s4, %s486
          %s488 = smul.u32 4, %s39
        $region72: #{batch_graph_triple_conv.1} parent=63 // pred_fallthru
          _
        // Predicated region
        $region73: #{batch_graph_triple_conv.1} parent=63 // pred_check
          %p489 = pneg %p132
        $region74: #{batch_graph_triple_conv.1} parent=63 // pred_check_branch
          %491 = sbr.rel (%p489) target = $region76
        $region75: #{batch_graph_triple_conv.1} parent=63 // pred_region
          %s492 = smul.u32 4, %s39
          %p493 = scmp.lt.s32.totalorder %s492, 15
          %s494 = scalar_select %p493, %s492, 15
          %s495 = smul.addr %s494, 4
          %s496 = scalar_lea.vmem %s5, %s495
          %s497 = smul.u32 4, %s39
        $region76: #{batch_graph_triple_conv.1} parent=63 // pred_fallthru
          _
      $region64: #{batch_graph_triple_conv.1} parent=5 // pred_fallthru
        _
      %p498 = scmp.le.s32.totalorder 1, %s39
      %p499 = scmp.lt.s32.totalorder %s39, 5
      %p500 = pnand %p498, %p499
      %p501 = pneg %p500
      // Predicated region
      $region77: #{batch_graph_triple_conv.1} parent=5 // pred_check
        _
      $region78: #{batch_graph_triple_conv.1} parent=5 // pred_check_branch
        %503 = sbr.rel (%p500) target = $region80
      $region79: #{batch_graph_triple_conv.1} parent=5 // pred_region
        %s504 = ssub.s32 %s39, 1
        %p505 = pneg %p60
        %p506 = pneg %p57
        %s507 = smul.u32 4, %s44
        %p508 = scmp.lt.s32.totalorder %s507, 15
        %s509 = scalar_select %p508, %s507, 15
        %s510 = smul.addr %s509, 4
        %s511 = scalar_lea.vmem %s3, %s510
        %p512 = pneg %p86
        %p513 = pneg %p83
        %s514 = smul.u32 4, %s44
        %p515 = scmp.lt.s32.totalorder %s514, 15
        %s516 = scalar_select %p515, %s514, 15
        %s517 = smul.addr %s516, 4
        %s518 = scalar_lea.vmem %s4, %s517
        %p519 = pneg %p112
        %p520 = pneg %p109
        %s521 = smul.u32 4, %s44
        %p522 = scmp.lt.s32.totalorder %s521, 15
        %s523 = scalar_select %p522, %s521, 15
        %s524 = smul.addr %s523, 4
        %s525 = scalar_lea.vmem %s5, %s524
        %p526 = pneg %p138
        %p527 = pneg %p135
        %p528 = pneg %p159
        %p529 = pneg %p156
        %p530 = pneg %p180
        %p531 = pneg %p177
        %p532 = pneg %p201
        %p533 = pneg %p198
        %p534 = pneg %p222
        %p535 = pneg %p219
        %p536 = pneg %p243
        %p537 = pneg %p240
        %p538 = pneg %p264
        %p539 = pneg %p261
        %p540 = pneg %p285
        %p541 = pneg %p282
        %p542 = pneg %p306
        %p543 = pneg %p303
        %p544 = pneg %p327
        %p545 = pneg %p324
        %p546 = pneg %p348
        %p547 = pneg %p345
        %p548 = pneg %p369
        %p549 = pneg %p366
        %p550 = pneg %p390
        %p551 = pneg %p387
        %p552 = pneg %p416
        %p553 = pneg %p413
        %s554 = sand.u32 %s403, 1
        %s555 = scalar_lea.sflag [#allocation12], %s554
        %s556 = sand.u32 %s403, 1
        %s557 = smul.addr %s556, 32
        %s558 = scalar_lea.vmem [#allocation11], %s557
        %s559 = smul.u32 4, %s44
        %p560 = scmp.lt.s32.totalorder %s559, 15
        %s561 = scalar_select %p560, %s559, 15
        %s562 = smul.addr %s561, 4
        %s563 = scalar_lea.vmem %s3, %s562
        %s564 = smul.u32 4, %s44
        %s565 = smul.u32 4, %s44
        %p566 = scmp.lt.s32.totalorder %s565, 15
        %s567 = scalar_select %p566, %s565, 15
        %s568 = smul.addr %s567, 4
        %s569 = scalar_lea.vmem %s4, %s568
        %s570 = smul.u32 4, %s44
        %s571 = smul.u32 4, %s44
        %p572 = scmp.lt.s32.totalorder %s571, 15
        %s573 = scalar_select %p572, %s571, 15
        %s574 = smul.addr %s573, 4
        %s575 = scalar_lea.vmem %s5, %s574
        %s576 = smul.u32 4, %s44
        %s577 = smul.u32 4, %s44
        %p579 = scmp.eq.s32.totalorder %s44, 0
        // Predicated region
        $region81: #{batch_graph_triple_conv.1} parent=79 // pred_check
          %p580 = pneg %p579
        $region82: #{batch_graph_triple_conv.1} parent=79 // pred_check_branch
          %582 = sbr.rel (%p580) target = $region84
        $region83: #{batch_graph_triple_conv.1} parent=79 // pred_region
          %v583 = vld [vmem:[%s2] sm:$0xf]
          %v584 = vld [vmem:[%s2 + $0x4] sm:$0xf]
          %v585 = vld [vmem:[%s2 + $0x8] sm:$0xf]
          %v586 = vld [vmem:[%s2 + $0xc] sm:$0xf]
          %v587 = vld [vmem:[%s7] sm:$0xf]
          %v588 = vld [vmem:[%s7 + $0x4] sm:$0xf]
          %v589 = vld [vmem:[%s7 + $0x8] sm:$0xf]
          %v590 = vld [vmem:[%s7 + $0xc] sm:$0xf]
          %v591 = vld [vmem:[%s7 + $0x10] sm:$0xf]
          %v592 = vld [vmem:[%s7 + $0x14] sm:$0xf]
          %v593 = vld [vmem:[%s7 + $0x18] sm:$0xf]
          %v594 = vld [vmem:[%s7 + $0x1c] sm:$0xf]
          %v595 = vld [vmem:[%s7 + $0x20] sm:$0xf]
          %v596 = vld [vmem:[%s7 + $0x24] sm:$0xf]
          %v597 = vld [vmem:[%s7 + $0x28] sm:$0xf]
          %v598 = vld [vmem:[%s7 + $0x2c] sm:$0xf]
          %v599 = vld [vmem:[%s7 + $0x30] sm:$0xf]
          %v600 = vld [vmem:[%s7 + $0x34] sm:$0xf]
          %v601 = vld [vmem:[%s7 + $0x38] sm:$0xf]
          %v602 = vld [vmem:[%s7 + $0x3c] sm:$0xf]
          %v607 = vunpack.c.l.b16 %v583
          %v608 = vunpack.c.l.b16 %v584
          %v609 = vunpack.c.l.b16 %v585
          %v610 = vunpack.c.l.b16 %v586
          %v611 = vpack.c.b16 %v608, %v607
          %v612 = vpack.c.b16 %v610, %v609
          %v631 = vunpack.c.l.b16 %v587
          %v632 = vunpack.c.l.b16 %v588
          %v633 = vunpack.c.l.b16 %v589
          %v634 = vunpack.c.l.b16 %v590
          %v635 = vunpack.c.l.b16 %v591
          %v636 = vunpack.c.l.b16 %v592
          %v637 = vunpack.c.l.b16 %v593
          %v638 = vunpack.c.l.b16 %v594
          %v639 = vunpack.c.l.b16 %v595
          %v640 = vunpack.c.l.b16 %v596
          %v641 = vunpack.c.l.b16 %v597
          %v642 = vunpack.c.l.b16 %v598
          %v643 = vunpack.c.l.b16 %v599
          %v644 = vunpack.c.l.b16 %v600
          %v645 = vunpack.c.l.b16 %v601
          %v646 = vunpack.c.l.b16 %v602
          %v647 = vpack.c.b16 %v632, %v631
          %v648 = vpack.c.b16 %v634, %v633
          %v649 = vpack.c.b16 %v636, %v635
          %v650 = vpack.c.b16 %v638, %v637
          %v651 = vpack.c.b16 %v640, %v639
          %v652 = vpack.c.b16 %v642, %v641
          %v653 = vpack.c.b16 %v644, %v643
          %v654 = vpack.c.b16 %v646, %v645
          %663 = vmatprep.subr.bf16.mxu0 0
          %664 = vmatpush1.bf16.msra.mxu0 %v647
          %665 = vmatprep.subr.bf16.mxu0 0
          %666 = vmatpush1.bf16.msra.mxu0 %v648
          %667 = vmatprep.subr.bf16.mxu0 0
          %668 = vmatpush1.bf16.msra.mxu0 %v649
          %669 = vmatprep.subr.bf16.mxu0 0
          %670 = vmatpush1.bf16.msra.mxu0 %v650
          %671 = vmatprep.subr.bf16.mxu0 0
          %672 = vmatpush1.bf16.msra.mxu0 %v651
          %673 = vmatprep.subr.bf16.mxu0 0
          %674 = vmatpush1.bf16.msra.mxu0 %v652
          %675 = vmatprep.subr.bf16.mxu0 0
          %676 = vmatpush1.bf16.msra.mxu0 %v653
          %677 = vmatprep.subr.bf16.mxu0 0
          %678 = vmatpush1.bf16.msra.mxu0 %v654
          %679 = vmatprep.subr.bf16.mxu0 0
          %680 = vmatpush1.bf16.msra.mxu0 0
          %681 = vmatprep.subr.bf16.mxu0 0
          %682 = vmatpush1.bf16.msra.mxu0 0
          %683 = vmatprep.subr.bf16.mxu0 0
          %684 = vmatpush1.bf16.msra.mxu0 0
          %685 = vmatprep.subr.bf16.mxu0 0
          %686 = vmatpush1.bf16.msra.mxu0 0
          %687 = vmatprep.subr.bf16.mxu0 0
          %688 = vmatpush1.bf16.msra.mxu0 0
          %689 = vmatprep.subr.bf16.mxu0 0
          %690 = vmatpush1.bf16.msra.mxu0 0
          %691 = vmatprep.subr.bf16.mxu0 0
          %692 = vmatpush1.bf16.msra.mxu0 0
          %693 = vmatprep.subr.bf16.mxu0 0
          %694 = vmatpush1.bf16.msra.mxu0 0
          %695 = vmatprep.mubr.bf16.mxu0 0
          %696 = vmatmul.mubr.bf16.gmra.mrb[0].mxu0 %v611
          %v697 = vpop.f32.mrb[0].mxu0
          %v698 = vadd.f32 0.0, %v697
          %v699 = vpop.f32.mrb[0].mxu0
          %v700 = vpop.f32.mrb[0].mxu0
          %v701 = vadd.f32 0.0, %v700
          %v702 = vpop.f32.mrb[0].mxu0
          %703 = vmatprep.mubr.bf16.mxu0 0
          %704 = vmatmul.mubr.bf16.gmra.mrb[0].mxu0 %v612
          %v705 = vpop.f32.mrb[0].mxu0
          %v706 = vadd.f32 0.0, %v705
          %v707 = vpop.f32.mrb[0].mxu0
          %v708 = vpop.f32.mrb[0].mxu0
          %v709 = vadd.f32 0.0, %v708
          %v710 = vpop.f32.mrb[0].mxu0
          %711 = vdwg.mxu0
          %712 = vst [vmem:[#allocation2] sm:$0xff] %v698
          %713 = vst [vmem:[#allocation2 + $0x8] sm:$0xff] %v701
          %714 = vst [vmem:[#allocation2 + $0x10] sm:$0xff] %v706
          %715 = vst [vmem:[#allocation2 + $0x18] sm:$0xff] %v709
          %v716 = vld [vmem:[%s9] sm:$0xf]
          %v717 = vld [vmem:[%s9 + $0x4] sm:$0xf]
          %v718 = vld [vmem:[%s9 + $0x8] sm:$0xf]
          %v719 = vld [vmem:[%s9 + $0xc] sm:$0xf]
          %v720 = vld [vmem:[%s9 + $0x10] sm:$0xf]
          %v721 = vld [vmem:[%s9 + $0x14] sm:$0xf]
          %v722 = vld [vmem:[%s9 + $0x18] sm:$0xf]
          %v723 = vld [vmem:[%s9 + $0x1c] sm:$0xf]
          %v724 = vld [vmem:[%s9 + $0x20] sm:$0xf]
          %v725 = vld [vmem:[%s9 + $0x24] sm:$0xf]
          %v726 = vld [vmem:[%s9 + $0x28] sm:$0xf]
          %v727 = vld [vmem:[%s9 + $0x2c] sm:$0xf]
          %v728 = vld [vmem:[%s9 + $0x30] sm:$0xf]
          %v729 = vld [vmem:[%s9 + $0x34] sm:$0xf]
          %v730 = vld [vmem:[%s9 + $0x38] sm:$0xf]
          %v731 = vld [vmem:[%s9 + $0x3c] sm:$0xf]
          %v748 = vunpack.c.l.b16 %v716
          %v749 = vunpack.c.l.b16 %v717
          %v750 = vunpack.c.l.b16 %v718
          %v751 = vunpack.c.l.b16 %v719
          %v752 = vunpack.c.l.b16 %v720
          %v753 = vunpack.c.l.b16 %v721
          %v754 = vunpack.c.l.b16 %v722
          %v755 = vunpack.c.l.b16 %v723
          %v756 = vunpack.c.l.b16 %v724
          %v757 = vunpack.c.l.b16 %v725
          %v758 = vunpack.c.l.b16 %v726
          %v759 = vunpack.c.l.b16 %v727
          %v760 = vunpack.c.l.b16 %v728
          %v761 = vunpack.c.l.b16 %v729
          %v762 = vunpack.c.l.b16 %v730
          %v763 = vunpack.c.l.b16 %v731
          %v764 = vpack.c.b16 %v749, %v748
          %v765 = vpack.c.b16 %v751, %v750
          %v766 = vpack.c.b16 %v753, %v752
          %v767 = vpack.c.b16 %v755, %v754
          %v768 = vpack.c.b16 %v757, %v756
          %v769 = vpack.c.b16 %v759, %v758
          %v770 = vpack.c.b16 %v761, %v760
          %v771 = vpack.c.b16 %v763, %v762
          %780 = vmatprep.subr.bf16.mxu0 0
          %781 = vmatpush1.bf16.msra.mxu0 %v764
          %782 = vmatprep.subr.bf16.mxu0 0
          %783 = vmatpush1.bf16.msra.mxu0 %v765
          %784 = vmatprep.subr.bf16.mxu0 0
          %785 = vmatpush1.bf16.msra.mxu0 %v766
          %786 = vmatprep.subr.bf16.mxu0 0
          %787 = vmatpush1.bf16.msra.mxu0 %v767
          %788 = vmatprep.subr.bf16.mxu0 0
          %789 = vmatpush1.bf16.msra.mxu0 %v768
          %790 = vmatprep.subr.bf16.mxu0 0
          %791 = vmatpush1.bf16.msra.mxu0 %v769
          %792 = vmatprep.subr.bf16.mxu0 0
          %793 = vmatpush1.bf16.msra.mxu0 %v770
          %794 = vmatprep.subr.bf16.mxu0 0
          %795 = vmatpush1.bf16.msra.mxu0 %v771
          %796 = vmatprep.subr.bf16.mxu0 0
          %797 = vmatpush1.bf16.msra.mxu0 0
          %798 = vmatprep.subr.bf16.mxu0 0
          %799 = vmatpush1.bf16.msra.mxu0 0
          %800 = vmatprep.subr.bf16.mxu0 0
          %801 = vmatpush1.bf16.msra.mxu0 0
          %802 = vmatprep.subr.bf16.mxu0 0
          %803 = vmatpush1.bf16.msra.mxu0 0
          %804 = vmatprep.subr.bf16.mxu0 0
          %805 = vmatpush1.bf16.msra.mxu0 0
          %806 = vmatprep.subr.bf16.mxu0 0
          %807 = vmatpush1.bf16.msra.mxu0 0
          %808 = vmatprep.subr.bf16.mxu0 0
          %809 = vmatpush1.bf16.msra.mxu0 0
          %810 = vmatprep.subr.bf16.mxu0 0
          %811 = vmatpush1.bf16.msra.mxu0 0
          %812 = vmatprep.mubr.bf16.mxu0 0
          %813 = vmatmul.mubr.bf16.gmra.mrb[0].mxu0 %v611
          %v814 = vpop.f32.mrb[0].mxu0
          %v815 = vadd.f32 0.0, %v814
          %v816 = vpop.f32.mrb[0].mxu0
          %v817 = vpop.f32.mrb[0].mxu0
          %v818 = vadd.f32 0.0, %v817
          %v819 = vpop.f32.mrb[0].mxu0
          %820 = vmatprep.mubr.bf16.mxu0 0
          %821 = vmatmul.mubr.bf16.gmra.mrb[0].mxu0 %v612
          %v822 = vpop.f32.mrb[0].mxu0
          %v823 = vadd.f32 0.0, %v822
          %v824 = vpop.f32.mrb[0].mxu0
          %v825 = vpop.f32.mrb[0].mxu0
          %v826 = vadd.f32 0.0, %v825
          %v827 = vpop.f32.mrb[0].mxu0
          %828 = vdwg.mxu0
          %829 = vst [vmem:[#allocation3] sm:$0xff] %v815
          %830 = vst [vmem:[#allocation3 + $0x8] sm:$0xff] %v818
          %831 = vst [vmem:[#allocation3 + $0x10] sm:$0xff] %v823
          %832 = vst [vmem:[#allocation3 + $0x18] sm:$0xff] %v826
          %833 = vst [vmem:[#allocation5] sm:$0xff] 0.0
          %834 = vst [vmem:[#allocation5 + $0x8] sm:$0xff] 0.0
          %835 = vst [vmem:[#allocation5 + $0x10] sm:$0xff] 0.0
          %836 = vst [vmem:[#allocation5 + $0x18] sm:$0xff] 0.0
        $region84: #{batch_graph_triple_conv.1} parent=79 // pred_fallthru
          _
        %s837 = smul.u32 %s44, 32
        %s838 = sld [smem:[#allocation7 + %s837]]
        %s839 = sld [smem:[#allocation8 + %s837]]
        %s840 = scalar_lea.vmem [#allocation2], %s838
        %v841 = vld [vmem:[%s840] sm:$0x1]
        %s842 = scalar_lea.vmem [#allocation3], %s839
        %v843 = vld [vmem:[%s842] sm:$0x1]
        %v844 = vadd.f32 %v841, %v843
        %845 = vst [vmem:[#allocation4] sm:$0x1] %v844
        %s846 = sadd.s32 %s837, 1
        %s847 = sld [smem:[#allocation7 + %s846]]
        %s848 = sld [smem:[#allocation8 + %s846]]
        %s849 = scalar_lea.vmem [#allocation2], %s847
        %v850 = vld [vmem:[%s849] sm:$0x1]
        %s851 = scalar_lea.vmem [#allocation3], %s848
        %v852 = vld [vmem:[%s851] sm:$0x1]
        %v853 = vadd.f32 %v850, %v852
        %854 = vst [vmem:[#allocation4 + $0x1] sm:$0x1] %v853
        %s855 = sadd.s32 %s837, 2
        %s856 = sld [smem:[#allocation7 + %s855]]
        %s857 = sld [smem:[#allocation8 + %s855]]
        %s858 = scalar_lea.vmem [#allocation2], %s856
        %v859 = vld [vmem:[%s858] sm:$0x1]
        %s860 = scalar_lea.vmem [#allocation3], %s857
        %v861 = vld [vmem:[%s860] sm:$0x1]
        %v862 = vadd.f32 %v859, %v861
        %863 = vst [vmem:[#allocation4 + $0x2] sm:$0x1] %v862
        %s864 = sadd.s32 %s837, 3
        %s865 = sld [smem:[#allocation7 + %s864]]
        %s866 = sld [smem:[#allocation8 + %s864]]
        %s867 = scalar_lea.vmem [#allocation2], %s865
        %v868 = vld [vmem:[%s867] sm:$0x1]
        %s869 = scalar_lea.vmem [#allocation3], %s866
        %v870 = vld [vmem:[%s869] sm:$0x1]
        %v871 = vadd.f32 %v868, %v870
        %872 = vst [vmem:[#allocation4 + $0x3] sm:$0x1] %v871
        %s873 = sadd.s32 %s837, 4
        %s874 = sld [smem:[#allocation7 + %s873]]
        %s875 = sld [smem:[#allocation8 + %s873]]
        %s876 = scalar_lea.vmem [#allocation2], %s874
        %v877 = vld [vmem:[%s876] sm:$0x1]
        %s878 = scalar_lea.vmem [#allocation3], %s875
        %v879 = vld [vmem:[%s878] sm:$0x1]
        %v880 = vadd.f32 %v877, %v879
        %881 = vst [vmem:[#allocation4 + $0x4] sm:$0x1] %v880
        %s882 = sadd.s32 %s837, 5
        %s883 = sld [smem:[#allocation7 + %s882]]
        %s884 = sld [smem:[#allocation8 + %s882]]
        %s885 = scalar_lea.vmem [#allocation2], %s883
        %v886 = vld [vmem:[%s885] sm:$0x1]
        %s887 = scalar_lea.vmem [#allocation3], %s884
        %v888 = vld [vmem:[%s887] sm:$0x1]
        %v889 = vadd.f32 %v886, %v888
        %890 = vst [vmem:[#allocation4 + $0x5] sm:$0x1] %v889
        %s891 = sadd.s32 %s837, 6
        %s892 = sld [smem:[#allocation7 + %s891]]
        %s893 = sld [smem:[#allocation8 + %s891]]
        %s894 = scalar_lea.vmem [#allocation2], %s892
        %v895 = vld [vmem:[%s894] sm:$0x1]
        %s896 = scalar_lea.vmem [#allocation3], %s893
        %v897 = vld [vmem:[%s896] sm:$0x1]
        %v898 = vadd.f32 %v895, %v897
        %899 = vst [vmem:[#allocation4 + $0x6] sm:$0x1] %v898
        %s900 = sadd.s32 %s837, 7
        %s901 = sld [smem:[#allocation7 + %s900]]
        %s902 = sld [smem:[#allocation8 + %s900]]
        %s903 = scalar_lea.vmem [#allocation2], %s901
        %v904 = vld [vmem:[%s903] sm:$0x1]
        %s905 = scalar_lea.vmem [#allocation3], %s902
        %v906 = vld [vmem:[%s905] sm:$0x1]
        %v907 = vadd.f32 %v904, %v906
        %908 = vst [vmem:[#allocation4 + $0x7] sm:$0x1] %v907
        %s909 = sadd.s32 %s837, 8
        %s910 = sld [smem:[#allocation7 + %s909]]
        %s911 = sld [smem:[#allocation8 + %s909]]
        %s912 = scalar_lea.vmem [#allocation2], %s910
        %v913 = vld [vmem:[%s912] sm:$0x1]
        %s914 = scalar_lea.vmem [#allocation3], %s911
        %v915 = vld [vmem:[%s914] sm:$0x1]
        %v916 = vadd.f32 %v913, %v915
        %917 = vst [vmem:[#allocation4 + $0x8] sm:$0x1] %v916
        %s918 = sadd.s32 %s837, 9
        %s919 = sld [smem:[#allocation7 + %s918]]
        %s920 = sld [smem:[#allocation8 + %s918]]
        %s921 = scalar_lea.vmem [#allocation2], %s919
        %v922 = vld [vmem:[%s921] sm:$0x1]
        %s923 = scalar_lea.vmem [#allocation3], %s920
        %v924 = vld [vmem:[%s923] sm:$0x1]
        %v925 = vadd.f32 %v922, %v924
        %926 = vst [vmem:[#allocation4 + $0x9] sm:$0x1] %v925
        %s927 = sadd.s32 %s837, 10
        %s928 = sld [smem:[#allocation7 + %s927]]
        %s929 = sld [smem:[#allocation8 + %s927]]
        %s930 = scalar_lea.vmem [#allocation2], %s928
        %v931 = vld [vmem:[%s930] sm:$0x1]
        %s932 = scalar_lea.vmem [#allocation3], %s929
        %v933 = vld [vmem:[%s932] sm:$0x1]
        %v934 = vadd.f32 %v931, %v933
        %935 = vst [vmem:[#allocation4 + $0xa] sm:$0x1] %v934
        %s936 = sadd.s32 %s837, 11
        %s937 = sld [smem:[#allocation7 + %s936]]
        %s938 = sld [smem:[#allocation8 + %s936]]
        %s939 = scalar_lea.vmem [#allocation2], %s937
        %v940 = vld [vmem:[%s939] sm:$0x1]
        %s941 = scalar_lea.vmem [#allocation3], %s938
        %v942 = vld [vmem:[%s941] sm:$0x1]
        %v943 = vadd.f32 %v940, %v942
        %944 = vst [vmem:[#allocation4 + $0xb] sm:$0x1] %v943
        %s945 = sadd.s32 %s837, 12
        %s946 = sld [smem:[#allocation7 + %s945]]
        %s947 = sld [smem:[#allocation8 + %s945]]
        %s948 = scalar_lea.vmem [#allocation2], %s946
        %v949 = vld [vmem:[%s948] sm:$0x1]
        %s950 = scalar_lea.vmem [#allocation3], %s947
        %v951 = vld [vmem:[%s950] sm:$0x1]
        %v952 = vadd.f32 %v949, %v951
        %953 = vst [vmem:[#allocation4 + $0xc] sm:$0x1] %v952
        %s954 = sadd.s32 %s837, 13
        %s955 = sld [smem:[#allocation7 + %s954]]
        %s956 = sld [smem:[#allocation8 + %s954]]
        %s957 = scalar_lea.vmem [#allocation2], %s955
        %v958 = vld [vmem:[%s957] sm:$0x1]
        %s959 = scalar_lea.vmem [#allocation3], %s956
        %v960 = vld [vmem:[%s959] sm:$0x1]
        %v961 = vadd.f32 %v958, %v960
        %962 = vst [vmem:[#allocation4 + $0xd] sm:$0x1] %v961
        %s963 = sadd.s32 %s837, 14
        %s964 = sld [smem:[#allocation7 + %s963]]
        %s965 = sld [smem:[#allocation8 + %s963]]
        %s966 = scalar_lea.vmem [#allocation2], %s964
        %v967 = vld [vmem:[%s966] sm:$0x1]
        %s968 = scalar_lea.vmem [#allocation3], %s965
        %v969 = vld [vmem:[%s968] sm:$0x1]
        %v970 = vadd.f32 %v967, %v969
        %971 = vst [vmem:[#allocation4 + $0xe] sm:$0x1] %v970
        %s972 = sadd.s32 %s837, 15
        %s973 = sld [smem:[#allocation7 + %s972]]
        %s974 = sld [smem:[#allocation8 + %s972]]
        %s975 = scalar_lea.vmem [#allocation2], %s973
        %v976 = vld [vmem:[%s975] sm:$0x1]
        %s977 = scalar_lea.vmem [#allocation3], %s974
        %v978 = vld [vmem:[%s977] sm:$0x1]
        %v979 = vadd.f32 %v976, %v978
        %980 = vst [vmem:[#allocation4 + $0xf] sm:$0x1] %v979
        %s981 = sadd.s32 %s837, 16
        %s982 = sld [smem:[#allocation7 + %s981]]
        %s983 = sld [smem:[#allocation8 + %s981]]
        %s984 = scalar_lea.vmem [#allocation2], %s982
        %v985 = vld [vmem:[%s984] sm:$0x1]
        %s986 = scalar_lea.vmem [#allocation3], %s983
        %v987 = vld [vmem:[%s986] sm:$0x1]
        %v988 = vadd.f32 %v985, %v987
        %989 = vst [vmem:[#allocation4 + $0x10] sm:$0x1] %v988
        %s990 = sadd.s32 %s837, 17
        %s991 = sld [smem:[#allocation7 + %s990]]
        %s992 = sld [smem:[#allocation8 + %s990]]
        %s993 = scalar_lea.vmem [#allocation2], %s991
        %v994 = vld [vmem:[%s993] sm:$0x1]
        %s995 = scalar_lea.vmem [#allocation3], %s992
        %v996 = vld [vmem:[%s995] sm:$0x1]
        %v997 = vadd.f32 %v994, %v996
        %998 = vst [vmem:[#allocation4 + $0x11] sm:$0x1] %v997
        %s999 = sadd.s32 %s837, 18
        %s1000 = sld [smem:[#allocation7 + %s999]]
        %s1001 = sld [smem:[#allocation8 + %s999]]
        %s1002 = scalar_lea.vmem [#allocation2], %s1000
        %v1003 = vld [vmem:[%s1002] sm:$0x1]
        %s1004 = scalar_lea.vmem [#allocation3], %s1001
        %v1005 = vld [vmem:[%s1004] sm:$0x1]
        %v1006 = vadd.f32 %v1003, %v1005
        %1007 = vst [vmem:[#allocation4 + $0x12] sm:$0x1] %v1006
        %s1008 = sadd.s32 %s837, 19
        %s1009 = sld [smem:[#allocation7 + %s1008]]
        %s1010 = sld [smem:[#allocation8 + %s1008]]
        %s1011 = scalar_lea.vmem [#allocation2], %s1009
        %v1012 = vld [vmem:[%s1011] sm:$0x1]
        %s1013 = scalar_lea.vmem [#allocation3], %s1010
        %v1014 = vld [vmem:[%s1013] sm:$0x1]
        %v1015 = vadd.f32 %v1012, %v1014
        %1016 = vst [vmem:[#allocation4 + $0x13] sm:$0x1] %v1015
        %s1017 = sadd.s32 %s837, 20
        %s1018 = sld [smem:[#allocation7 + %s1017]]
        %s1019 = sld [smem:[#allocation8 + %s1017]]
        %s1020 = scalar_lea.vmem [#allocation2], %s1018
        %v1021 = vld [vmem:[%s1020] sm:$0x1]
        %s1022 = scalar_lea.vmem [#allocation3], %s1019
        %v1023 = vld [vmem:[%s1022] sm:$0x1]
        %v1024 = vadd.f32 %v1021, %v1023
        %1025 = vst [vmem:[#allocation4 + $0x14] sm:$0x1] %v1024
        %s1026 = sadd.s32 %s837, 21
        %s1027 = sld [smem:[#allocation7 + %s1026]]
        %s1028 = sld [smem:[#allocation8 + %s1026]]
        %s1029 = scalar_lea.vmem [#allocation2], %s1027
        %v1030 = vld [vmem:[%s1029] sm:$0x1]
        %s1031 = scalar_lea.vmem [#allocation3], %s1028
        %v1032 = vld [vmem:[%s1031] sm:$0x1]
        %v1033 = vadd.f32 %v1030, %v1032
        %1034 = vst [vmem:[#allocation4 + $0x15] sm:$0x1] %v1033
        %s1035 = sadd.s32 %s837, 22
        %s1036 = sld [smem:[#allocation7 + %s1035]]
        %s1037 = sld [smem:[#allocation8 + %s1035]]
        %s1038 = scalar_lea.vmem [#allocation2], %s1036
        %v1039 = vld [vmem:[%s1038] sm:$0x1]
        %s1040 = scalar_lea.vmem [#allocation3], %s1037
        %v1041 = vld [vmem:[%s1040] sm:$0x1]
        %v1042 = vadd.f32 %v1039, %v1041
        %1043 = vst [vmem:[#allocation4 + $0x16] sm:$0x1] %v1042
        %s1044 = sadd.s32 %s837, 23
        %s1045 = sld [smem:[#allocation7 + %s1044]]
        %s1046 = sld [smem:[#allocation8 + %s1044]]
        %s1047 = scalar_lea.vmem [#allocation2], %s1045
        %v1048 = vld [vmem:[%s1047] sm:$0x1]
        %s1049 = scalar_lea.vmem [#allocation3], %s1046
        %v1050 = vld [vmem:[%s1049] sm:$0x1]
        %v1051 = vadd.f32 %v1048, %v1050
        %1052 = vst [vmem:[#allocation4 + $0x17] sm:$0x1] %v1051
        %s1053 = sadd.s32 %s837, 24
        %s1054 = sld [smem:[#allocation7 + %s1053]]
        %s1055 = sld [smem:[#allocation8 + %s1053]]
        %s1056 = scalar_lea.vmem [#allocation2], %s1054
        %v1057 = vld [vmem:[%s1056] sm:$0x1]
        %s1058 = scalar_lea.vmem [#allocation3], %s1055
        %v1059 = vld [vmem:[%s1058] sm:$0x1]
        %v1060 = vadd.f32 %v1057, %v1059
        %1061 = vst [vmem:[#allocation4 + $0x18] sm:$0x1] %v1060
        %s1062 = sadd.s32 %s837, 25
        %s1063 = sld [smem:[#allocation7 + %s1062]]
        %s1064 = sld [smem:[#allocation8 + %s1062]]
        %s1065 = scalar_lea.vmem [#allocation2], %s1063
        %v1066 = vld [vmem:[%s1065] sm:$0x1]
        %s1067 = scalar_lea.vmem [#allocation3], %s1064
        %v1068 = vld [vmem:[%s1067] sm:$0x1]
        %v1069 = vadd.f32 %v1066, %v1068
        %1070 = vst [vmem:[#allocation4 + $0x19] sm:$0x1] %v1069
        %s1071 = sadd.s32 %s837, 26
        %s1072 = sld [smem:[#allocation7 + %s1071]]
        %s1073 = sld [smem:[#allocation8 + %s1071]]
        %s1074 = scalar_lea.vmem [#allocation2], %s1072
        %v1075 = vld [vmem:[%s1074] sm:$0x1]
        %s1076 = scalar_lea.vmem [#allocation3], %s1073
        %v1077 = vld [vmem:[%s1076] sm:$0x1]
        %v1078 = vadd.f32 %v1075, %v1077
        %1079 = vst [vmem:[#allocation4 + $0x1a] sm:$0x1] %v1078
        %s1080 = sadd.s32 %s837, 27
        %s1081 = sld [smem:[#allocation7 + %s1080]]
        %s1082 = sld [smem:[#allocation8 + %s1080]]
        %s1083 = scalar_lea.vmem [#allocation2], %s1081
        %v1084 = vld [vmem:[%s1083] sm:$0x1]
        %s1085 = scalar_lea.vmem [#allocation3], %s1082
        %v1086 = vld [vmem:[%s1085] sm:$0x1]
        %v1087 = vadd.f32 %v1084, %v1086
        %1088 = vst [vmem:[#allocation4 + $0x1b] sm:$0x1] %v1087
        %s1089 = sadd.s32 %s837, 28
        %s1090 = sld [smem:[#allocation7 + %s1089]]
        %s1091 = sld [smem:[#allocation8 + %s1089]]
        %s1092 = scalar_lea.vmem [#allocation2], %s1090
        %v1093 = vld [vmem:[%s1092] sm:$0x1]
        %s1094 = scalar_lea.vmem [#allocation3], %s1091
        %v1095 = vld [vmem:[%s1094] sm:$0x1]
        %v1096 = vadd.f32 %v1093, %v1095
        %1097 = vst [vmem:[#allocation4 + $0x1c] sm:$0x1] %v1096
        %s1098 = sadd.s32 %s837, 29
        %s1099 = sld [smem:[#allocation7 + %s1098]]
        %s1100 = sld [smem:[#allocation8 + %s1098]]
        %s1101 = scalar_lea.vmem [#allocation2], %s1099
        %v1102 = vld [vmem:[%s1101] sm:$0x1]
        %s1103 = scalar_lea.vmem [#allocation3], %s1100
        %v1104 = vld [vmem:[%s1103] sm:$0x1]
        %v1105 = vadd.f32 %v1102, %v1104
        %1106 = vst [vmem:[#allocation4 + $0x1d] sm:$0x1] %v1105
        %s1107 = sadd.s32 %s837, 30
        %s1108 = sld [smem:[#allocation7 + %s1107]]
        %s1109 = sld [smem:[#allocation8 + %s1107]]
        %s1110 = scalar_lea.vmem [#allocation2], %s1108
        %v1111 = vld [vmem:[%s1110] sm:$0x1]
        %s1112 = scalar_lea.vmem [#allocation3], %s1109
        %v1113 = vld [vmem:[%s1112] sm:$0x1]
        %v1114 = vadd.f32 %v1111, %v1113
        %1115 = vst [vmem:[#allocation4 + $0x1e] sm:$0x1] %v1114
        %s1116 = sadd.s32 %s837, 31
        %s1117 = sld [smem:[#allocation7 + %s1116]]
        %s1118 = sld [smem:[#allocation8 + %s1116]]
        %s1119 = scalar_lea.vmem [#allocation2], %s1117
        %v1120 = vld [vmem:[%s1119] sm:$0x1]
        %s1121 = scalar_lea.vmem [#allocation3], %s1118
        %v1122 = vld [vmem:[%s1121] sm:$0x1]
        %v1123 = vadd.f32 %v1120, %v1122
        %1124 = vst [vmem:[#allocation4 + $0x1f] sm:$0x1] %v1123
        %v1125 = vld [vmem:[#allocation4] sm:$0xff]
        %v1126 = vld [vmem:[#allocation4 + $0x8] sm:$0xff]
        %v1127 = vld [vmem:[#allocation4 + $0x10] sm:$0xff]
        %v1128 = vld [vmem:[#allocation4 + $0x18] sm:$0xff]
        %v1129 = vld [vmem:[%s563] sm:$0xf]
        %v1130 = vld [vmem:[%s563 + $0x4] sm:$0xf]
        %v1131 = vld [vmem:[%s563 + $0x8] sm:$0xf]
        %v1132 = vld [vmem:[%s563 + $0xc] sm:$0xf]
        %v1133 = vld [vmem:[%s8] sm:$0xf]
        %v1134 = vld [vmem:[%s8 + $0x4] sm:$0xf]
        %v1135 = vld [vmem:[%s8 + $0x8] sm:$0xf]
        %v1136 = vld [vmem:[%s8 + $0xc] sm:$0xf]
        %v1137 = vld [vmem:[%s8 + $0x10] sm:$0xf]
        %v1138 = vld [vmem:[%s8 + $0x14] sm:$0xf]
        %v1139 = vld [vmem:[%s8 + $0x18] sm:$0xf]
        %v1140 = vld [vmem:[%s8 + $0x1c] sm:$0xf]
        %v1141 = vld [vmem:[%s8 + $0x20] sm:$0xf]
        %v1142 = vld [vmem:[%s8 + $0x24] sm:$0xf]
        %v1143 = vld [vmem:[%s8 + $0x28] sm:$0xf]
        %v1144 = vld [vmem:[%s8 + $0x2c] sm:$0xf]
        %v1145 = vld [vmem:[%s8 + $0x30] sm:$0xf]
        %v1146 = vld [vmem:[%s8 + $0x34] sm:$0xf]
        %v1147 = vld [vmem:[%s8 + $0x38] sm:$0xf]
        %v1148 = vld [vmem:[%s8 + $0x3c] sm:$0xf]
        %v1153 = vunpack.c.l.b16 %v1129
        %v1154 = vunpack.c.l.b16 %v1130
        %v1155 = vunpack.c.l.b16 %v1131
        %v1156 = vunpack.c.l.b16 %v1132
        %v1157 = vpack.c.b16 %v1154, %v1153
        %v1158 = vpack.c.b16 %v1156, %v1155
        %v1177 = vunpack.c.l.b16 %v1133
        %v1178 = vunpack.c.l.b16 %v1134
        %v1179 = vunpack.c.l.b16 %v1135
        %v1180 = vunpack.c.l.b16 %v1136
        %v1181 = vunpack.c.l.b16 %v1137
        %v1182 = vunpack.c.l.b16 %v1138
        %v1183 = vunpack.c.l.b16 %v1139
        %v1184 = vunpack.c.l.b16 %v1140
        %v1185 = vunpack.c.l.b16 %v1141
        %v1186 = vunpack.c.l.b16 %v1142
        %v1187 = vunpack.c.l.b16 %v1143
        %v1188 = vunpack.c.l.b16 %v1144
        %v1189 = vunpack.c.l.b16 %v1145
        %v1190 = vunpack.c.l.b16 %v1146
        %v1191 = vunpack.c.l.b16 %v1147
        %v1192 = vunpack.c.l.b16 %v1148
        %v1193 = vpack.c.b16 %v1178, %v1177
        %v1194 = vpack.c.b16 %v1180, %v1179
        %v1195 = vpack.c.b16 %v1182, %v1181
        %v1196 = vpack.c.b16 %v1184, %v1183
        %v1197 = vpack.c.b16 %v1186, %v1185
        %v1198 = vpack.c.b16 %v1188, %v1187
        %v1199 = vpack.c.b16 %v1190, %v1189
        %v1200 = vpack.c.b16 %v1192, %v1191
        %1209 = vmatprep.subr.bf16.mxu0 0
        %1210 = vmatpush1.bf16.msra.mxu0 %v1193
        %1211 = vmatprep.subr.bf16.mxu0 0
        %1212 = vmatpush1.bf16.msra.mxu0 %v1194
        %1213 = vmatprep.subr.bf16.mxu0 0
        %1214 = vmatpush1.bf16.msra.mxu0 %v1195
        %1215 = vmatprep.subr.bf16.mxu0 0
        %1216 = vmatpush1.bf16.msra.mxu0 %v1196
        %1217 = vmatprep.subr.bf16.mxu0 0
        %1218 = vmatpush1.bf16.msra.mxu0 %v1197
        %1219 = vmatprep.subr.bf16.mxu0 0
        %1220 = vmatpush1.bf16.msra.mxu0 %v1198
        %1221 = vmatprep.subr.bf16.mxu0 0
        %1222 = vmatpush1.bf16.msra.mxu0 %v1199
        %1223 = vmatprep.subr.bf16.mxu0 0
        %1224 = vmatpush1.bf16.msra.mxu0 %v1200
        %1225 = vmatprep.subr.bf16.mxu0 0
        %1226 = vmatpush1.bf16.msra.mxu0 0
        %1227 = vmatprep.subr.bf16.mxu0 0
        %1228 = vmatpush1.bf16.msra.mxu0 0
        %1229 = vmatprep.subr.bf16.mxu0 0
        %1230 = vmatpush1.bf16.msra.mxu0 0
        %1231 = vmatprep.subr.bf16.mxu0 0
        %1232 = vmatpush1.bf16.msra.mxu0 0
        %1233 = vmatprep.subr.bf16.mxu0 0
        %1234 = vmatpush1.bf16.msra.mxu0 0
        %1235 = vmatprep.subr.bf16.mxu0 0
        %1236 = vmatpush1.bf16.msra.mxu0 0
        %1237 = vmatprep.subr.bf16.mxu0 0
        %1238 = vmatpush1.bf16.msra.mxu0 0
        %1239 = vmatprep.subr.bf16.mxu0 0
        %1240 = vmatpush1.bf16.msra.mxu0 0
        %1241 = vmatprep.mubr.bf16.mxu0 0
        %1242 = vmatmul.mubr.bf16.gmra.mrb[0].mxu0 %v1157
        %v1243 = vpop.f32.mrb[0].mxu0
        %v1244 = vadd.f32 0.0, %v1243
        %v1245 = vpop.f32.mrb[0].mxu0
        %v1246 = vpop.f32.mrb[0].mxu0
        %v1247 = vadd.f32 0.0, %v1246
        %v1248 = vpop.f32.mrb[0].mxu0
        %1249 = vmatprep.mubr.bf16.mxu0 0
        %1250 = vmatmul.mubr.bf16.gmra.mrb[0].mxu0 %v1158
        %v1251 = vpop.f32.mrb[0].mxu0
        %v1252 = vadd.f32 0.0, %v1251
        %v1253 = vpop.f32.mrb[0].mxu0
        %v1254 = vpop.f32.mrb[0].mxu0
        %v1255 = vadd.f32 0.0, %v1254
        %v1256 = vpop.f32.mrb[0].mxu0
        %1257 = vdwg.mxu0
        %v1258 = vadd.f32 %v1125, %v1244
        %v1259 = vadd.f32 %v1126, %v1247
        %v1260 = vadd.f32 %v1127, %v1252
        %v1261 = vadd.f32 %v1128, %v1255
        %v1262 = vld [vmem:[%s10] sm:$0x1]
        %v1264 = vlaneseq
        %v1265 = vshrl.u32 %v1264, 7
        %v1266 = vsub.s32 0, %v1265
        %v1267 = vrot.slane %v1262, %v1266
        %v1269 = vadd.f32 %v1258, %v1267
        %v1270 = vadd.f32 %v1259, %v1267
        %v1271 = vadd.f32 %v1260, %v1267
        %v1272 = vadd.f32 %v1261, %v1267
        %v1273 = vpack.c.bf16 %v1270, %v1269
        %v1274 = vpack.c.bf16 %v1272, %v1271
        %v1275 = vld [vmem:[%s11] sm:$0xff]
        %v1276 = vld [vmem:[%s11 + $0x8] sm:$0xf]
        %v1277 = vld [vmem:[%s11 + $0xc] sm:$0xff]
        %v1278 = vld [vmem:[%s11 + $0x14] sm:$0xf]
        %v1279 = vld [vmem:[%s11 + $0x18] sm:$0xff]
        %v1280 = vld [vmem:[%s11 + $0x20] sm:$0xf]
        %v1281 = vld [vmem:[%s11 + $0x24] sm:$0xff]
        %v1282 = vld [vmem:[%s11 + $0x2c] sm:$0xf]
        %v1283 = vld [vmem:[%s11 + $0x30] sm:$0xff]
        %v1284 = vld [vmem:[%s11 + $0x38] sm:$0xf]
        %v1285 = vld [vmem:[%s11 + $0x3c] sm:$0xff]
        %v1286 = vld [vmem:[%s11 + $0x44] sm:$0xf]
        %v1287 = vld [vmem:[%s11 + $0x48] sm:$0xff]
        %v1288 = vld [vmem:[%s11 + $0x50] sm:$0xf]
        %v1289 = vld [vmem:[%s11 + $0x54] sm:$0xff]
        %v1290 = vld [vmem:[%s11 + $0x5c] sm:$0xf]
        %v1291 = vld [vmem:[%s11 + $0x60] sm:$0xff]
        %v1292 = vld [vmem:[%s11 + $0x68] sm:$0xf]
        %v1293 = vld [vmem:[%s11 + $0x6c] sm:$0xff]
        %v1294 = vld [vmem:[%s11 + $0x74] sm:$0xf]
        %v1295 = vld [vmem:[%s11 + $0x78] sm:$0xff]
        %v1296 = vld [vmem:[%s11 + $0x80] sm:$0xf]
        %v1297 = vld [vmem:[%s11 + $0x84] sm:$0xff]
        %v1298 = vld [vmem:[%s11 + $0x8c] sm:$0xf]
        %v1299 = vld [vmem:[%s11 + $0x90] sm:$0xff]
        %v1300 = vld [vmem:[%s11 + $0x98] sm:$0xf]
        %v1301 = vld [vmem:[%s11 + $0x9c] sm:$0xff]
        %v1302 = vld [vmem:[%s11 + $0xa4] sm:$0xf]
        %v1303 = vld [vmem:[%s11 + $0xa8] sm:$0xff]
        %v1304 = vld [vmem:[%s11 + $0xb0] sm:$0xf]
        %v1305 = vld [vmem:[%s11 + $0xb4] sm:$0xff]
        %v1306 = vld [vmem:[%s11 + $0xbc] sm:$0xf]
        %v1307 = vld [vmem:[%s12] sm:$0x7]
        %v1309 = vlaneseq
        %v1310 = vshrl.u32 %v1309, 7
        %v1311 = vsub.s32 0, %v1310
        %v1312 = vrot.slane %v1307, %v1311
        %v1313 = vlaneseq
        %v1314 = vshrl.u32 %v1313, 7
        %v1315 = vsub.s32 1, %v1314
        %v1316 = vrot.slane %v1307, %v1315
        %v1317 = vlaneseq
        %v1318 = vshrl.u32 %v1317, 7
        %v1319 = vsub.s32 2, %v1318
        %v1320 = vrot.slane %v1307, %v1319
        %v1356 = vunpack.c.l.b16 %v1275
        %v1357 = vunpack.c.h.b16 %v1275
        %v1358 = vunpack.c.l.b16 %v1276
        %v1359 = vunpack.c.l.b16 %v1277
        %v1360 = vunpack.c.h.b16 %v1277
        %v1361 = vunpack.c.l.b16 %v1278
        %v1362 = vunpack.c.l.b16 %v1279
        %v1363 = vunpack.c.h.b16 %v1279
        %v1364 = vunpack.c.l.b16 %v1280
        %v1365 = vunpack.c.l.b16 %v1281
        %v1366 = vunpack.c.h.b16 %v1281
        %v1367 = vunpack.c.l.b16 %v1282
        %v1368 = vunpack.c.l.b16 %v1283
        %v1369 = vunpack.c.h.b16 %v1283
        %v1370 = vunpack.c.l.b16 %v1284
        %v1371 = vunpack.c.l.b16 %v1285
        %v1372 = vunpack.c.h.b16 %v1285
        %v1373 = vunpack.c.l.b16 %v1286
        %v1374 = vunpack.c.l.b16 %v1287
        %v1375 = vunpack.c.h.b16 %v1287
        %v1376 = vunpack.c.l.b16 %v1288
        %v1377 = vunpack.c.l.b16 %v1289
        %v1378 = vunpack.c.h.b16 %v1289
        %v1379 = vunpack.c.l.b16 %v1290
        %v1380 = vunpack.c.l.b16 %v1291
        %v1381 = vunpack.c.h.b16 %v1291
        %v1382 = vunpack.c.l.b16 %v1292
        %v1383 = vunpack.c.l.b16 %v1293
        %v1384 = vunpack.c.h.b16 %v1293
        %v1385 = vunpack.c.l.b16 %v1294
        %v1386 = vunpack.c.l.b16 %v1295
        %v1387 = vunpack.c.h.b16 %v1295
        %v1388 = vunpack.c.l.b16 %v1296
        %v1389 = vunpack.c.l.b16 %v1297
        %v1390 = vunpack.c.h.b16 %v1297
        %v1391 = vunpack.c.l.b16 %v1298
        %v1392 = vunpack.c.l.b16 %v1299
        %v1393 = vunpack.c.h.b16 %v1299
        %v1394 = vunpack.c.l.b16 %v1300
        %v1395 = vunpack.c.l.b16 %v1301
        %v1396 = vunpack.c.h.b16 %v1301
        %v1397 = vunpack.c.l.b16 %v1302
        %v1398 = vunpack.c.l.b16 %v1303
        %v1399 = vunpack.c.h.b16 %v1303
        %v1400 = vunpack.c.l.b16 %v1304
        %v1401 = vunpack.c.l.b16 %v1305
        %v1402 = vunpack.c.h.b16 %v1305
        %v1403 = vunpack.c.l.b16 %v1306
        %v1404 = vpack.c.b16 %v1359, %v1356
        %v1405 = vpack.c.b16 %v1360, %v1357
        %v1406 = vpack.c.b16 %v1361, %v1358
        %v1407 = vpack.c.b16 %v1365, %v1362
        %v1408 = vpack.c.b16 %v1366, %v1363
        %v1409 = vpack.c.b16 %v1367, %v1364
        %v1410 = vpack.c.b16 %v1371, %v1368
        %v1411 = vpack.c.b16 %v1372, %v1369
        %v1412 = vpack.c.b16 %v1373, %v1370
        %v1413 = vpack.c.b16 %v1377, %v1374
        %v1414 = vpack.c.b16 %v1378, %v1375
        %v1415 = vpack.c.b16 %v1379, %v1376
        %v1416 = vpack.c.b16 %v1383, %v1380
        %v1417 = vpack.c.b16 %v1384, %v1381
        %v1418 = vpack.c.b16 %v1385, %v1382
        %v1419 = vpack.c.b16 %v1389, %v1386
        %v1420 = vpack.c.b16 %v1390, %v1387
        %v1421 = vpack.c.b16 %v1391, %v1388
        %v1422 = vpack.c.b16 %v1395, %v1392
        %v1423 = vpack.c.b16 %v1396, %v1393
        %v1424 = vpack.c.b16 %v1397, %v1394
        %v1425 = vpack.c.b16 %v1401, %v1398
        %v1426 = vpack.c.b16 %v1402, %v1399
        %v1427 = vpack.c.b16 %v1403, %v1400
        %1452 = vmatprep.subr.bf16.mxu0 %v1405
        %1453 = vmatpush1.bf16.msra.mxu0 %v1404
        %1454 = vmatprep.subr.bf16.mxu0 %v1408
        %1455 = vmatpush1.bf16.msra.mxu0 %v1407
        %1456 = vmatprep.subr.bf16.mxu0 %v1411
        %1457 = vmatpush1.bf16.msra.mxu0 %v1410
        %1458 = vmatprep.subr.bf16.mxu0 %v1414
        %1459 = vmatpush1.bf16.msra.mxu0 %v1413
        %1460 = vmatprep.subr.bf16.mxu0 %v1417
        %1461 = vmatpush1.bf16.msra.mxu0 %v1416
        %1462 = vmatprep.subr.bf16.mxu0 %v1420
        %1463 = vmatpush1.bf16.msra.mxu0 %v1419
        %1464 = vmatprep.subr.bf16.mxu0 %v1423
        %1465 = vmatpush1.bf16.msra.mxu0 %v1422
        %1466 = vmatprep.subr.bf16.mxu0 %v1426
        %1467 = vmatpush1.bf16.msra.mxu0 %v1425
        %1468 = vmatprep.subr.bf16.mxu0 0
        %1469 = vmatpush1.bf16.msra.mxu0 0
        %1470 = vmatprep.subr.bf16.mxu0 0
        %1471 = vmatpush1.bf16.msra.mxu0 0
        %1472 = vmatprep.subr.bf16.mxu0 0
        %1473 = vmatpush1.bf16.msra.mxu0 0
        %1474 = vmatprep.subr.bf16.mxu0 0
        %1475 = vmatpush1.bf16.msra.mxu0 0
        %1476 = vmatprep.subr.bf16.mxu0 0
        %1477 = vmatpush1.bf16.msra.mxu0 0
        %1478 = vmatprep.subr.bf16.mxu0 0
        %1479 = vmatpush1.bf16.msra.mxu0 0
        %1480 = vmatprep.subr.bf16.mxu0 0
        %1481 = vmatpush1.bf16.msra.mxu0 0
        %1482 = vmatprep.subr.bf16.mxu0 0
        %1483 = vmatpush1.bf16.msra.mxu0 0
        %1484 = vmatprep.mubr.bf16.mxu0 0
        %1485 = vmatmul.mubr.bf16.gmra.mrb[0].mxu0 %v1273
        %v1486 = vpop.f32.mrb[0].mxu0
        %v1487 = vadd.f32 %v1312, %v1486
        %v1488 = vpop.f32.mrb[0].mxu0
        %v1489 = vadd.f32 %v1316, %v1488
        %v1490 = vpop.f32.mrb[0].mxu0
        %v1491 = vadd.f32 %v1312, %v1490
        %v1492 = vpop.f32.mrb[0].mxu0
        %v1493 = vadd.f32 %v1316, %v1492
        %1494 = vmatprep.mubr.bf16.mxu0 0
        %1495 = vmatmul.mubr.bf16.gmra.mrb[0].mxu0 %v1274
        %v1496 = vpop.f32.mrb[0].mxu0
        %v1497 = vadd.f32 %v1312, %v1496
        %v1498 = vpop.f32.mrb[0].mxu0
        %v1499 = vadd.f32 %v1316, %v1498
        %v1500 = vpop.f32.mrb[0].mxu0
        %v1501 = vadd.f32 %v1312, %v1500
        %v1502 = vpop.f32.mrb[0].mxu0
        %v1503 = vadd.f32 %v1316, %v1502
        %1504 = vdwg.mxu0
        %1505 = vmatprep.subr.bf16.mxu0 0
        %1506 = vmatpush1.bf16.msra.mxu0 %v1406
        %1507 = vmatprep.subr.bf16.mxu0 0
        %1508 = vmatpush1.bf16.msra.mxu0 %v1409
        %1509 = vmatprep.subr.bf16.mxu0 0
        %1510 = vmatpush1.bf16.msra.mxu0 %v1412
        %1511 = vmatprep.subr.bf16.mxu0 0
        %1512 = vmatpush1.bf16.msra.mxu0 %v1415
        %1513 = vmatprep.subr.bf16.mxu0 0
        %1514 = vmatpush1.bf16.msra.mxu0 %v1418
        %1515 = vmatprep.subr.bf16.mxu0 0
        %1516 = vmatpush1.bf16.msra.mxu0 %v1421
        %1517 = vmatprep.subr.bf16.mxu0 0
        %1518 = vmatpush1.bf16.msra.mxu0 %v1424
        %1519 = vmatprep.subr.bf16.mxu0 0
        %1520 = vmatpush1.bf16.msra.mxu0 %v1427
        %1521 = vmatprep.subr.bf16.mxu0 0
        %1522 = vmatpush1.bf16.msra.mxu0 0
        %1523 = vmatprep.subr.bf16.mxu0 0
        %1524 = vmatpush1.bf16.msra.mxu0 0
        %1525 = vmatprep.subr.bf16.mxu0 0
        %1526 = vmatpush1.bf16.msra.mxu0 0
        %1527 = vmatprep.subr.bf16.mxu0 0
        %1528 = vmatpush1.bf16.msra.mxu0 0
        %1529 = vmatprep.subr.bf16.mxu0 0
        %1530 = vmatpush1.bf16.msra.mxu0 0
        %1531 = vmatprep.subr.bf16.mxu0 0
        %1532 = vmatpush1.bf16.msra.mxu0 0
        %1533 = vmatprep.subr.bf16.mxu0 0
        %1534 = vmatpush1.bf16.msra.mxu0 0
        %1535 = vmatprep.subr.bf16.mxu0 0
        %1536 = vmatpush1.bf16.msra.mxu0 0
        %1537 = vmatprep.mubr.bf16.mxu0 0
        %1538 = vmatmul.mubr.bf16.gmra.mrb[0].mxu0 %v1273
        %v1539 = vpop.f32.mrb[0].mxu0
        %v1540 = vadd.f32 %v1320, %v1539
        %v1541 = vpop.f32.mrb[0].mxu0
        %v1542 = vpop.f32.mrb[0].mxu0
        %v1543 = vadd.f32 %v1320, %v1542
        %v1544 = vpop.f32.mrb[0].mxu0
        %1545 = vmatprep.mubr.bf16.mxu0 0
        %1546 = vmatmul.mubr.bf16.gmra.mrb[0].mxu0 %v1274
        %v1547 = vpop.f32.mrb[0].mxu0
        %v1548 = vadd.f32 %v1320, %v1547
        %v1549 = vpop.f32.mrb[0].mxu0
        %v1550 = vpop.f32.mrb[0].mxu0
        %v1551 = vadd.f32 %v1320, %v1550
        %v1552 = vpop.f32.mrb[0].mxu0
        %1553 = vdwg.mxu0
        %1554 = vst [vmem:[%s558] sm:$0xff] %v1489
        %1555 = vst [vmem:[%s558 + $0x8] sm:$0xff] %v1493
        %1556 = vst [vmem:[%s558 + $0x10] sm:$0xff] %v1499
        %1557 = vst [vmem:[%s558 + $0x18] sm:$0xff] %v1503
        %v1558 = vld [vmem:[#allocation5] sm:$0xff]
        %v1559 = vld [vmem:[#allocation5 + $0x8] sm:$0xff]
        %v1560 = vld [vmem:[#allocation5 + $0x10] sm:$0xff]
        %v1561 = vld [vmem:[#allocation5 + $0x18] sm:$0xff]
        %v1562 = vld [vmem:[%s569] sm:$0xf]
        %v1563 = vld [vmem:[%s569 + $0x4] sm:$0xf]
        %v1564 = vld [vmem:[%s569 + $0x8] sm:$0xf]
        %v1565 = vld [vmem:[%s569 + $0xc] sm:$0xf]
        %v1566 = vpack.c.bf16 %v1491, %v1487
        %v1567 = vpack.c.bf16 %v1501, %v1497
        %v1568 = vld [vmem:[%s575] sm:$0xf]
        %v1569 = vld [vmem:[%s575 + $0x4] sm:$0xf]
        %v1570 = vld [vmem:[%s575 + $0x8] sm:$0xf]
        %v1571 = vld [vmem:[%s575 + $0xc] sm:$0xf]
        %v1572 = vpack.c.bf16 %v1543, %v1540
        %v1573 = vpack.c.bf16 %v1551, %v1548
        %v1578 = vunpack.c.l.b16 %v1568
        %v1579 = vunpack.c.l.b16 %v1569
        %v1580 = vunpack.c.l.b16 %v1570
        %v1581 = vunpack.c.l.b16 %v1571
        %v1582 = vpack.c.b16 %v1579, %v1578
        %v1583 = vpack.c.b16 %v1581, %v1580
        %1586 = vxpose.xlu0.c.b16.start [1/8] %v1582, 128
        %1587 = vxpose.xlu0.c.b16.cont [2/8] %v1583, 128
        %1588 = vxpose.xlu0.c.b16.cont [3/8] 0, 128
        %1589 = vxpose.xlu0.c.b16.cont [4/8] 0, 128
        %1590 = vxpose.xlu0.c.b16.cont [5/8] 0, 128
        %1591 = vxpose.xlu0.c.b16.cont [6/8] 0, 128
        %1592 = vxpose.xlu0.c.b16.cont [7/8] 0, 128
        %1593 = vxpose.xlu0.c.b16.end [8/8] 0, 128
        %v1594 = vpop.trf.xlu0
        %v1595 = vpop.trf.xlu0
        %v1596 = vpop.trf.xlu0
        %v1597 = vpop.trf.xlu0
        %v1598 = vpop.trf.xlu0
        %v1599 = vpop.trf.xlu0
        %v1600 = vpop.trf.xlu0
        %v1601 = vpop.trf.xlu0
        %vm1602 = vcmask 261120
        %v1604 = vsel %vm1602, %v1594, 0
        %v1607 = vsel %vm1602, %v1595, 0
        %1609 = vmatprep.subr.bf16.mxu0 0
        %1610 = vmatpush1.bf16.msra.mxu0 %v1572
        %1611 = vmatprep.subr.bf16.mxu0 0
        %1612 = vmatpush1.bf16.msra.mxu0 %v1573
        %1613 = vmatprep.subr.bf16.mxu0 0
        %1614 = vmatpush1.bf16.msra.mxu0 0
        %1615 = vmatprep.subr.bf16.mxu0 0
        %1616 = vmatpush1.bf16.msra.mxu0 0
        %1617 = vmatprep.subr.bf16.mxu0 0
        %1618 = vmatpush1.bf16.msra.mxu0 0
        %1619 = vmatprep.subr.bf16.mxu0 0
        %1620 = vmatpush1.bf16.msra.mxu0 0
        %1621 = vmatprep.subr.bf16.mxu0 0
        %1622 = vmatpush1.bf16.msra.mxu0 0
        %1623 = vmatprep.subr.bf16.mxu0 0
        %1624 = vmatpush1.bf16.msra.mxu0 0
        %1625 = vmatprep.subr.bf16.mxu0 0
        %1626 = vmatpush1.bf16.msra.mxu0 0
        %1627 = vmatprep.subr.bf16.mxu0 0
        %1628 = vmatpush1.bf16.msra.mxu0 0
        %1629 = vmatprep.subr.bf16.mxu0 0
        %1630 = vmatpush1.bf16.msra.mxu0 0
        %1631 = vmatprep.subr.bf16.mxu0 0
        %1632 = vmatpush1.bf16.msra.mxu0 0
        %1633 = vmatprep.subr.bf16.mxu0 0
        %1634 = vmatpush1.bf16.msra.mxu0 0
        %1635 = vmatprep.subr.bf16.mxu0 0
        %1636 = vmatpush1.bf16.msra.mxu0 0
        %1637 = vmatprep.subr.bf16.mxu0 0
        %1638 = vmatpush1.bf16.msra.mxu0 0
        %1639 = vmatprep.subr.bf16.mxu0 0
        %1640 = vmatpush1.bf16.msra.mxu0 0
        %1641 = vmatprep.mubr.bf16.mxu0 0
        %1642 = vmatmul.mubr.bf16.gmra.mrb[0].mxu0 %v1604
        %v1643 = vpop.f32.mrb[0].mxu0
        %v1644 = vadd.f32 0.0, %v1643
        %v1645 = vpop.f32.mrb[0].mxu0
        %v1646 = vpop.f32.mrb[0].mxu0
        %v1647 = vadd.f32 0.0, %v1646
        %v1648 = vpop.f32.mrb[0].mxu0
        %1649 = vmatprep.mubr.bf16.mxu0 0
        %1650 = vmatmul.mubr.bf16.gmra.mrb[0].mxu0 %v1607
        %v1651 = vpop.f32.mrb[0].mxu0
        %v1652 = vadd.f32 0.0, %v1651
        %v1653 = vpop.f32.mrb[0].mxu0
        %v1654 = vpop.f32.mrb[0].mxu0
        %v1655 = vadd.f32 0.0, %v1654
        %v1656 = vpop.f32.mrb[0].mxu0
        %1657 = vdwg.mxu0
        %v1662 = vunpack.c.l.b16 %v1562
        %v1663 = vunpack.c.l.b16 %v1563
        %v1664 = vunpack.c.l.b16 %v1564
        %v1665 = vunpack.c.l.b16 %v1565
        %v1666 = vpack.c.b16 %v1663, %v1662
        %v1667 = vpack.c.b16 %v1665, %v1664
        %1670 = vxpose.xlu0.c.b16.start [1/8] %v1666, 128
        %1671 = vxpose.xlu0.c.b16.cont [2/8] %v1667, 128
        %1672 = vxpose.xlu0.c.b16.cont [3/8] 0, 128
        %1673 = vxpose.xlu0.c.b16.cont [4/8] 0, 128
        %1674 = vxpose.xlu0.c.b16.cont [5/8] 0, 128
        %1675 = vxpose.xlu0.c.b16.cont [6/8] 0, 128
        %1676 = vxpose.xlu0.c.b16.cont [7/8] 0, 128
        %1677 = vxpose.xlu0.c.b16.end [8/8] 0, 128
        %v1678 = vpop.trf.xlu0
        %v1679 = vpop.trf.xlu0
        %v1680 = vpop.trf.xlu0
        %v1681 = vpop.trf.xlu0
        %v1682 = vpop.trf.xlu0
        %v1683 = vpop.trf.xlu0
        %v1684 = vpop.trf.xlu0
        %v1685 = vpop.trf.xlu0
        %v1687 = vsel %vm1602, %v1678, 0
        %v1690 = vsel %vm1602, %v1679, 0
        %1692 = vmatprep.subr.bf16.mxu0 0
        %1693 = vmatpush1.bf16.msra.mxu0 %v1566
        %1694 = vmatprep.subr.bf16.mxu0 0
        %1695 = vmatpush1.bf16.msra.mxu0 %v1567
        %1696 = vmatprep.subr.bf16.mxu0 0
        %1697 = vmatpush1.bf16.msra.mxu0 0
        %1698 = vmatprep.subr.bf16.mxu0 0
        %1699 = vmatpush1.bf16.msra.mxu0 0
        %1700 = vmatprep.subr.bf16.mxu0 0
        %1701 = vmatpush1.bf16.msra.mxu0 0
        %1702 = vmatprep.subr.bf16.mxu0 0
        %1703 = vmatpush1.bf16.msra.mxu0 0
        %1704 = vmatprep.subr.bf16.mxu0 0
        %1705 = vmatpush1.bf16.msra.mxu0 0
        %1706 = vmatprep.subr.bf16.mxu0 0
        %1707 = vmatpush1.bf16.msra.mxu0 0
        %1708 = vmatprep.subr.bf16.mxu0 0
        %1709 = vmatpush1.bf16.msra.mxu0 0
        %1710 = vmatprep.subr.bf16.mxu0 0
        %1711 = vmatpush1.bf16.msra.mxu0 0
        %1712 = vmatprep.subr.bf16.mxu0 0
        %1713 = vmatpush1.bf16.msra.mxu0 0
        %1714 = vmatprep.subr.bf16.mxu0 0
        %1715 = vmatpush1.bf16.msra.mxu0 0
        %1716 = vmatprep.subr.bf16.mxu0 0
        %1717 = vmatpush1.bf16.msra.mxu0 0
        %1718 = vmatprep.subr.bf16.mxu0 0
        %1719 = vmatpush1.bf16.msra.mxu0 0
        %1720 = vmatprep.subr.bf16.mxu0 0
        %1721 = vmatpush1.bf16.msra.mxu0 0
        %1722 = vmatprep.subr.bf16.mxu0 0
        %1723 = vmatpush1.bf16.msra.mxu0 0
        %1724 = vmatprep.mubr.bf16.mxu0 0
        %1725 = vmatmul.mubr.bf16.gmra.mrb[0].mxu0 %v1687
        %v1726 = vpop.f32.mrb[0].mxu0
        %v1727 = vadd.f32 %v1644, %v1726
        %v1728 = vpop.f32.mrb[0].mxu0
        %v1729 = vpop.f32.mrb[0].mxu0
        %v1730 = vadd.f32 %v1647, %v1729
        %v1731 = vpop.f32.mrb[0].mxu0
        %1732 = vmatprep.mubr.bf16.mxu0 0
        %1733 = vmatmul.mubr.bf16.gmra.mrb[0].mxu0 %v1690
        %v1734 = vpop.f32.mrb[0].mxu0
        %v1735 = vadd.f32 %v1652, %v1734
        %v1736 = vpop.f32.mrb[0].mxu0
        %v1737 = vpop.f32.mrb[0].mxu0
        %v1738 = vadd.f32 %v1655, %v1737
        %v1739 = vpop.f32.mrb[0].mxu0
        %1740 = vdwg.mxu0
        %v1741 = vadd.f32 %v1558, %v1727
        %v1742 = vadd.f32 %v1559, %v1730
        %v1743 = vadd.f32 %v1560, %v1735
        %v1744 = vadd.f32 %v1561, %v1738
        %1745 = vst [vmem:[#allocation5] sm:$0xff] %v1741
        %1746 = vst [vmem:[#allocation5 + $0x8] sm:$0xff] %v1742
        %1747 = vst [vmem:[#allocation5 + $0x10] sm:$0xff] %v1743
        %1748 = vst [vmem:[#allocation5 + $0x18] sm:$0xff] %v1744
        %p1749 = scmp.eq.s32.totalorder %s44, 3
        // Predicated region
        $region85: #{batch_graph_triple_conv.1} parent=79 // pred_check
          %p1750 = pneg %p1749
        $region86: #{batch_graph_triple_conv.1} parent=79 // pred_check_branch
          %1752 = sbr.rel (%p1750) target = $region88
        $region87: #{batch_graph_triple_conv.1} parent=79 // pred_region
          %v1753 = vld [vmem:[#allocation5] sm:$0xff]
          %v1754 = vld [vmem:[#allocation5 + $0x8] sm:$0xff]
          %v1755 = vld [vmem:[#allocation5 + $0x10] sm:$0xff]
          %v1756 = vld [vmem:[#allocation5 + $0x18] sm:$0xff]
          %v1757 = vld [vmem:[%s6] sm:$0xff]
          %v1758 = vld [vmem:[%s6 + $0x8] sm:$0xff]
          %v1759 = vld [vmem:[%s6 + $0x10] sm:$0xff]
          %v1760 = vld [vmem:[%s6 + $0x18] sm:$0xff]
          %1762 = vset.pattern.permute.xlu0 0
          %1763 = vperm.xlu0 %1762, %v1757
          %v1764 = vpop.permute.xlu0 %1763
          %1767 = vset.pattern.permute.xlu0 0
          %1768 = vperm.xlu0 %1767, %v1758
          %v1769 = vpop.permute.xlu0 %1768
          %1772 = vset.pattern.permute.xlu0 0
          %1773 = vperm.xlu0 %1772, %v1759
          %v1774 = vpop.permute.xlu0 %1773
          %1777 = vset.pattern.permute.xlu0 0
          %1778 = vperm.xlu0 %1777, %v1760
          %v1779 = vpop.permute.xlu0 %1778
          %v1781 = vmul.f32 %v1753, %v1764
          %v1782 = vmul.f32 %v1754, %v1769
          %v1783 = vmul.f32 %v1755, %v1774
          %v1784 = vmul.f32 %v1756, %v1779
          %v1785 = vpack.c.bf16 %v1782, %v1781
          %v1786 = vpack.c.bf16 %v1784, %v1783
          %v1787 = vld [vmem:[%s13] sm:$0xf]
          %v1788 = vld [vmem:[%s13 + $0x4] sm:$0xf]
          %v1789 = vld [vmem:[%s13 + $0x8] sm:$0xf]
          %v1790 = vld [vmem:[%s13 + $0xc] sm:$0xf]
          %v1791 = vld [vmem:[%s13 + $0x10] sm:$0xf]
          %v1792 = vld [vmem:[%s13 + $0x14] sm:$0xf]
          %v1793 = vld [vmem:[%s13 + $0x18] sm:$0xf]
          %v1794 = vld [vmem:[%s13 + $0x1c] sm:$0xf]
          %v1795 = vld [vmem:[%s13 + $0x20] sm:$0xf]
          %v1796 = vld [vmem:[%s13 + $0x24] sm:$0xf]
          %v1797 = vld [vmem:[%s13 + $0x28] sm:$0xf]
          %v1798 = vld [vmem:[%s13 + $0x2c] sm:$0xf]
          %v1799 = vld [vmem:[%s13 + $0x30] sm:$0xf]
          %v1800 = vld [vmem:[%s13 + $0x34] sm:$0xf]
          %v1801 = vld [vmem:[%s13 + $0x38] sm:$0xf]
          %v1802 = vld [vmem:[%s13 + $0x3c] sm:$0xf]
          %v1803 = vld [vmem:[%s14] sm:$0x1]
          %v1805 = vlaneseq
          %v1806 = vshrl.u32 %v1805, 7
          %v1807 = vsub.s32 0, %v1806
          %v1808 = vrot.slane %v1803, %v1807
          %v1826 = vunpack.c.l.b16 %v1787
          %v1827 = vunpack.c.l.b16 %v1788
          %v1828 = vunpack.c.l.b16 %v1789
          %v1829 = vunpack.c.l.b16 %v1790
          %v1830 = vunpack.c.l.b16 %v1791
          %v1831 = vunpack.c.l.b16 %v1792
          %v1832 = vunpack.c.l.b16 %v1793
          %v1833 = vunpack.c.l.b16 %v1794
          %v1834 = vunpack.c.l.b16 %v1795
          %v1835 = vunpack.c.l.b16 %v1796
          %v1836 = vunpack.c.l.b16 %v1797
          %v1837 = vunpack.c.l.b16 %v1798
          %v1838 = vunpack.c.l.b16 %v1799
          %v1839 = vunpack.c.l.b16 %v1800
          %v1840 = vunpack.c.l.b16 %v1801
          %v1841 = vunpack.c.l.b16 %v1802
          %v1842 = vpack.c.b16 %v1827, %v1826
          %v1843 = vpack.c.b16 %v1829, %v1828
          %v1844 = vpack.c.b16 %v1831, %v1830
          %v1845 = vpack.c.b16 %v1833, %v1832
          %v1846 = vpack.c.b16 %v1835, %v1834
          %v1847 = vpack.c.b16 %v1837, %v1836
          %v1848 = vpack.c.b16 %v1839, %v1838
          %v1849 = vpack.c.b16 %v1841, %v1840
          %1858 = vmatprep.subr.bf16.mxu0 0
          %1859 = vmatpush1.bf16.msra.mxu0 %v1842
          %1860 = vmatprep.subr.bf16.mxu0 0
          %1861 = vmatpush1.bf16.msra.mxu0 %v1843
          %1862 = vmatprep.subr.bf16.mxu0 0
          %1863 = vmatpush1.bf16.msra.mxu0 %v1844
          %1864 = vmatprep.subr.bf16.mxu0 0
          %1865 = vmatpush1.bf16.msra.mxu0 %v1845
          %1866 = vmatprep.subr.bf16.mxu0 0
          %1867 = vmatpush1.bf16.msra.mxu0 %v1846
          %1868 = vmatprep.subr.bf16.mxu0 0
          %1869 = vmatpush1.bf16.msra.mxu0 %v1847
          %1870 = vmatprep.subr.bf16.mxu0 0
          %1871 = vmatpush1.bf16.msra.mxu0 %v1848
          %1872 = vmatprep.subr.bf16.mxu0 0
          %1873 = vmatpush1.bf16.msra.mxu0 %v1849
          %1874 = vmatprep.subr.bf16.mxu0 0
          %1875 = vmatpush1.bf16.msra.mxu0 0
          %1876 = vmatprep.subr.bf16.mxu0 0
          %1877 = vmatpush1.bf16.msra.mxu0 0
          %1878 = vmatprep.subr.bf16.mxu0 0
          %1879 = vmatpush1.bf16.msra.mxu0 0
          %1880 = vmatprep.subr.bf16.mxu0 0
          %1881 = vmatpush1.bf16.msra.mxu0 0
          %1882 = vmatprep.subr.bf16.mxu0 0
          %1883 = vmatpush1.bf16.msra.mxu0 0
          %1884 = vmatprep.subr.bf16.mxu0 0
          %1885 = vmatpush1.bf16.msra.mxu0 0
          %1886 = vmatprep.subr.bf16.mxu0 0
          %1887 = vmatpush1.bf16.msra.mxu0 0
          %1888 = vmatprep.subr.bf16.mxu0 0
          %1889 = vmatpush1.bf16.msra.mxu0 0
          %1890 = vmatprep.mubr.bf16.mxu0 0
          %1891 = vmatmul.mubr.bf16.gmra.mrb[0].mxu0 %v1785
          %v1892 = vpop.f32.mrb[0].mxu0
          %v1893 = vadd.f32 %v1808, %v1892
          %v1894 = vpop.f32.mrb[0].mxu0
          %v1895 = vpop.f32.mrb[0].mxu0
          %v1896 = vadd.f32 %v1808, %v1895
          %v1897 = vpop.f32.mrb[0].mxu0
          %1898 = vmatprep.mubr.bf16.mxu0 0
          %1899 = vmatmul.mubr.bf16.gmra.mrb[0].mxu0 %v1786
          %v1900 = vpop.f32.mrb[0].mxu0
          %v1901 = vadd.f32 %v1808, %v1900
          %v1902 = vpop.f32.mrb[0].mxu0
          %v1903 = vpop.f32.mrb[0].mxu0
          %v1904 = vadd.f32 %v1808, %v1903
          %v1905 = vpop.f32.mrb[0].mxu0
          %1906 = vdwg.mxu0
          %v1907 = vpack.c.bf16 %v1896, %v1893
          %v1908 = vpack.c.bf16 %v1904, %v1901
          %v1909 = vld [vmem:[%s15] sm:$0xf]
          %v1910 = vld [vmem:[%s15 + $0x4] sm:$0xf]
          %v1911 = vld [vmem:[%s15 + $0x8] sm:$0xf]
          %v1912 = vld [vmem:[%s15 + $0xc] sm:$0xf]
          %v1913 = vld [vmem:[%s15 + $0x10] sm:$0xf]
          %v1914 = vld [vmem:[%s15 + $0x14] sm:$0xf]
          %v1915 = vld [vmem:[%s15 + $0x18] sm:$0xf]
          %v1916 = vld [vmem:[%s15 + $0x1c] sm:$0xf]
          %v1917 = vld [vmem:[%s15 + $0x20] sm:$0xf]
          %v1918 = vld [vmem:[%s15 + $0x24] sm:$0xf]
          %v1919 = vld [vmem:[%s15 + $0x28] sm:$0xf]
          %v1920 = vld [vmem:[%s15 + $0x2c] sm:$0xf]
          %v1921 = vld [vmem:[%s15 + $0x30] sm:$0xf]
          %v1922 = vld [vmem:[%s15 + $0x34] sm:$0xf]
          %v1923 = vld [vmem:[%s15 + $0x38] sm:$0xf]
          %v1924 = vld [vmem:[%s15 + $0x3c] sm:$0xf]
          %v1925 = vld [vmem:[%s16] sm:$0x1]
          %v1927 = vlaneseq
          %v1928 = vshrl.u32 %v1927, 7
          %v1929 = vsub.s32 0, %v1928
          %v1930 = vrot.slane %v1925, %v1929
          %v1948 = vunpack.c.l.b16 %v1909
          %v1949 = vunpack.c.l.b16 %v1910
          %v1950 = vunpack.c.l.b16 %v1911
          %v1951 = vunpack.c.l.b16 %v1912
          %v1952 = vunpack.c.l.b16 %v1913
          %v1953 = vunpack.c.l.b16 %v1914
          %v1954 = vunpack.c.l.b16 %v1915
          %v1955 = vunpack.c.l.b16 %v1916
          %v1956 = vunpack.c.l.b16 %v1917
          %v1957 = vunpack.c.l.b16 %v1918
          %v1958 = vunpack.c.l.b16 %v1919
          %v1959 = vunpack.c.l.b16 %v1920
          %v1960 = vunpack.c.l.b16 %v1921
          %v1961 = vunpack.c.l.b16 %v1922
          %v1962 = vunpack.c.l.b16 %v1923
          %v1963 = vunpack.c.l.b16 %v1924
          %v1964 = vpack.c.b16 %v1949, %v1948
          %v1965 = vpack.c.b16 %v1951, %v1950
          %v1966 = vpack.c.b16 %v1953, %v1952
          %v1967 = vpack.c.b16 %v1955, %v1954
          %v1968 = vpack.c.b16 %v1957, %v1956
          %v1969 = vpack.c.b16 %v1959, %v1958
          %v1970 = vpack.c.b16 %v1961, %v1960
          %v1971 = vpack.c.b16 %v1963, %v1962
          %1980 = vmatprep.subr.bf16.mxu0 0
          %1981 = vmatpush1.bf16.msra.mxu0 %v1964
          %1982 = vmatprep.subr.bf16.mxu0 0
          %1983 = vmatpush1.bf16.msra.mxu0 %v1965
          %1984 = vmatprep.subr.bf16.mxu0 0
          %1985 = vmatpush1.bf16.msra.mxu0 %v1966
          %1986 = vmatprep.subr.bf16.mxu0 0
          %1987 = vmatpush1.bf16.msra.mxu0 %v1967
          %1988 = vmatprep.subr.bf16.mxu0 0
          %1989 = vmatpush1.bf16.msra.mxu0 %v1968
          %1990 = vmatprep.subr.bf16.mxu0 0
          %1991 = vmatpush1.bf16.msra.mxu0 %v1969
          %1992 = vmatprep.subr.bf16.mxu0 0
          %1993 = vmatpush1.bf16.msra.mxu0 %v1970
          %1994 = vmatprep.subr.bf16.mxu0 0
          %1995 = vmatpush1.bf16.msra.mxu0 %v1971
          %1996 = vmatprep.subr.bf16.mxu0 0
          %1997 = vmatpush1.bf16.msra.mxu0 0
          %1998 = vmatprep.subr.bf16.mxu0 0
          %1999 = vmatpush1.bf16.msra.mxu0 0
          %2000 = vmatprep.subr.bf16.mxu0 0
          %2001 = vmatpush1.bf16.msra.mxu0 0
          %2002 = vmatprep.subr.bf16.mxu0 0
          %2003 = vmatpush1.bf16.msra.mxu0 0
          %2004 = vmatprep.subr.bf16.mxu0 0
          %2005 = vmatpush1.bf16.msra.mxu0 0
          %2006 = vmatprep.subr.bf16.mxu0 0
          %2007 = vmatpush1.bf16.msra.mxu0 0
          %2008 = vmatprep.subr.bf16.mxu0 0
          %2009 = vmatpush1.bf16.msra.mxu0 0
          %2010 = vmatprep.subr.bf16.mxu0 0
          %2011 = vmatpush1.bf16.msra.mxu0 0
          %2012 = vmatprep.mubr.bf16.mxu0 0
          %2013 = vmatmul.mubr.bf16.gmra.mrb[0].mxu0 %v1907
          %v2014 = vpop.f32.mrb[0].mxu0
          %v2015 = vadd.f32 %v1930, %v2014
          %v2016 = vpop.f32.mrb[0].mxu0
          %v2017 = vpop.f32.mrb[0].mxu0
          %v2018 = vadd.f32 %v1930, %v2017
          %v2019 = vpop.f32.mrb[0].mxu0
          %2020 = vmatprep.mubr.bf16.mxu0 0
          %2021 = vmatmul.mubr.bf16.gmra.mrb[0].mxu0 %v1908
          %v2022 = vpop.f32.mrb[0].mxu0
          %v2023 = vadd.f32 %v1930, %v2022
          %v2024 = vpop.f32.mrb[0].mxu0
          %v2025 = vpop.f32.mrb[0].mxu0
          %v2026 = vadd.f32 %v1930, %v2025
          %v2027 = vpop.f32.mrb[0].mxu0
          %2028 = vdwg.mxu0
          %2029 = vst [vmem:[#allocation9] sm:$0xff] %v2015
          %2030 = vst [vmem:[#allocation9 + $0x8] sm:$0xff] %v2018
          %2031 = vst [vmem:[#allocation9 + $0x10] sm:$0xff] %v2023
          %2032 = vst [vmem:[#allocation9 + $0x18] sm:$0xff] %v2026
        $region88: #{batch_graph_triple_conv.1} parent=79 // pred_fallthru
          _
        %s2033 = sand.u32 %s403, 1
        %s2034 = scalar_lea.sflag [#allocation12], %s2033
        %s2035 = sand.u32 %s403, 1
        %s2036 = smul.addr %s2035, 32
        %s2037 = scalar_lea.vmem [#allocation11], %s2036
        // Predicated region
        $region89: #{batch_graph_triple_conv.1} parent=79 // pred_check
          %p2038 = pneg %p387
        $region90: #{batch_graph_triple_conv.1} parent=79 // pred_check_branch
          %2040 = sbr.rel (%p2038) target = $region92
        $region91: #{batch_graph_triple_conv.1} parent=79 // pred_region
          %s2042 = ssub.s32 512, 512
          %2043 = vsyncadd [#allocation10], %s2042
          %s2044 = sshll.u32 [#allocation9], 4
          %s2045 = int_to_ptr.vmem [resolvable:$true] %s2044
          %2050 = dma.vmem_to_hbm [thread:$0]  %s2045, 512, %s17, [#allocation10], 128, 128, 8
        $region92: #{batch_graph_triple_conv.1} parent=79 // pred_fallthru
          _
        // Predicated region
        $region93: #{batch_graph_triple_conv.1} parent=79 // pred_check
          %p2051 = pneg %p413
        $region94: #{batch_graph_triple_conv.1} parent=79 // pred_check_branch
          %2053 = sbr.rel (%p2051) target = $region96
        $region95: #{batch_graph_triple_conv.1} parent=79 // pred_region
          %s2054 = smul.u32 4, %s44
          %s2056 = ssub.s32 512, 512
          %2057 = vsyncadd %s2034, %s2056
          %s2058 = smul.addr %s2054, 128
          %s2059 = scalar_lea.hbm %s18, %s2058
          %s2060 = sshll.u32 %s2037, 4
          %s2061 = int_to_ptr.vmem [resolvable:$true] %s2060
          %2066 = dma.vmem_to_hbm [thread:$0]  %s2061, 512, %s2059, %s2034, 128, 128, 8
        $region96: #{batch_graph_triple_conv.1} parent=79 // pred_fallthru
          _
        // Predicated region
        $region97: #{batch_graph_triple_conv.1} parent=79 // pred_check
          %p2067 = pneg %p387
        $region98: #{batch_graph_triple_conv.1} parent=79 // pred_check_branch
          %2069 = sbr.rel (%p2067) target = $region100
        $region99: #{batch_graph_triple_conv.1} parent=79 // pred_region
          %2070 = dma.done [#allocation10], 512
        $region100: #{batch_graph_triple_conv.1} parent=79 // pred_fallthru
          _
      $region80: #{batch_graph_triple_conv.1} parent=5 // pred_fallthru
        _
      %p2071 = scmp.le.s32.totalorder 2, %s39
      // Predicated region
      $region101: #{batch_graph_triple_conv.1} parent=5 // pred_check
        %p2072 = pneg %p2071
      $region102: #{batch_graph_triple_conv.1} parent=5 // pred_check_branch
        %2074 = sbr.rel (%p2072) target = $region104
      $region103: #{batch_graph_triple_conv.1} parent=5 // pred_region
        %s2075 = ssub.s32 %s39, 2
        // Predicated region
        $region105: #{batch_graph_triple_conv.1} parent=103 // pred_check
          %p2076 = pneg %p419
        $region106: #{batch_graph_triple_conv.1} parent=103 // pred_check_branch
          %2078 = sbr.rel (%p2076) target = $region108
        $region107: #{batch_graph_triple_conv.1} parent=103 // pred_region
          %s2079 = sand.u32 %s404, 1
          %s2080 = scalar_lea.sflag [#allocation12], %s2079
          %s2081 = sand.u32 %s404, 1
          %s2082 = smul.addr %s2081, 32
          %s2083 = scalar_lea.vmem [#allocation11], %s2082
          %2084 = dma.done %s2080, 512
        $region108: #{batch_graph_triple_conv.1} parent=103 // pred_fallthru
          _
      $region104: #{batch_graph_triple_conv.1} parent=5 // pred_fallthru
        _
    $region6: #{batch_graph_triple_conv.1} parent=1 // loop_footer
      %s43 = sadd.s32 1, %s39
    $region7: #{batch_graph_triple_conv.1} parent=1 // loop_footer_branch
      %38 = sbr.rel target = $region3
    $region8: #{batch_graph_triple_conv.1} parent=1 // loop_exit
      _
    %2085 = vsyncpa [#allocation10], 1
    %s2086 = scalar_lea.sflag [#allocation10], 1
    %2087 = vsyncpa %s2086, 1
    %2088 = vsyncpa [#allocation12], 1
    %s2089 = scalar_lea.sflag [#allocation12], 1
    %2090 = vsyncpa %s2089, 1

</llo_original>
